<compile_context>
chip_gen: v5e
topology: v5e:2x2
jax: 0.10.0
libtpu: 0.0.40
codegen_flags: <defaults>
</compile_context>

<pallas_src>
import numpy as np
import jax
import jax.numpy as jnp
from jax import lax
from jax.experimental import pallas as pl
from jax.experimental.pallas import tpu as pltpu

BN_EPS = 1e-5
K = 3  # kernel size of every conv in the block


# --------------------------------------------------------------------------------------
# Pallas kernel (built as a closure over the static shape parameters)
# --------------------------------------------------------------------------------------
def _make_kernel(N, C, Cin, H, W):
    """Fused forward of OptimizedG_Block, operating on lane-dense (rows, N*H*W) slabs.

    Kernel argument layout (all 2D, f32, channel/phase rows x pixel lanes):
      p_ref    : (4*Cin, M1)   2x2-tap im2col patches of x   (rows = (dy*2+dx, ci))
      wt_ref   : (8*C,  4*Cin) fused phase weights            (rows = (branch*4+phase, co))
      bres_ref : (C, 1)        residual ConvT bias
      bsc_ref  : (C, 1)        shortcut ConvT bias
      wc_ref   : (9*C, C)      3x3 conv weights               (rows = (ky*3+kx, co), cols = ci)
      bcv_ref  : (C, 1)        3x3 conv bias
      g_ref    : (C, M1)       conditional-BN gamma, already broadcast per sample/pixel
      b_ref    : (C, M1)       conditional-BN beta,  already broadcast per sample/pixel
      mask_ref : (9, M1)       boundary masks for spatial shifts (da+1)*3+(db+1)
      out_ref  : (4, C, M1)    output phases: out[qy*2+qx, co, n*H*W + a*W + b]
                               == block_output[n, co, 2a+qy, 2b+qx]
    """
    M1 = N * H * W

    def in_phase(q, k):
        # input row/col index needed by output parity q and conv tap k:
        #   2*a + q + k - 1 == 2*(a + d) + parity
        v = q + k - 1
        par = v % 2
        return par, (v - par) // 2

    def kernel(p_ref, wt_ref, bres_ref, bsc_ref, wc_ref, bcv_ref,
               g_ref, b_ref, mask_ref, out_ref):
        P = p_ref[...]                                           # (4*Cin, M1)

        # ---- residual + shortcut transposed convs: shared patches, fused weight array,
        # ---- one MXU matmul per (branch, output-phase) row block ------------------------
        blocks = []
        for g in range(8):                                       # 0..3 residual, 4..7 shortcut
            wblk = wt_ref[pl.ds(g * C, C), :]                    # (C, 4*Cin)
            blocks.append(jnp.dot(wblk, P, preferred_element_type=jnp.float32))
        res_ph = [blocks[q] + bres_ref[...] for q in range(4)]   # (C, M1) each
        sc_ph = [blocks[4 + q] + bsc_ref[...] for q in range(4)]

        # ---- ConditionalBN (training-mode batch stats, single-pass moments) + ReLU ------
        inv_cnt = 1.0 / (4.0 * M1)                               # 4 phases == all 2H x 2W pixels
        s1 = jnp.zeros((C, 1), jnp.float32)
        s2 = jnp.zeros((C, 1), jnp.float32)
        for q in range(4):
            s1 = s1 + jnp.sum(res_ph[q], axis=1, keepdims=True)
            s2 = s2 + jnp.sum(res_ph[q] * res_ph[q], axis=1, keepdims=True)
        mean = s1 * inv_cnt                                      # (C, 1)
        var = s2 * inv_cnt - mean * mean                         # biased variance
        rstd = lax.rsqrt(var + BN_EPS)                           # (C, 1)
        scale = g_ref[...] * rstd                                # (C, M1)  gamma * rstd
        shift = b_ref[...] - scale * mean                        # (C, M1)  beta - gamma*rstd*mean
        r_ph = [jnp.maximum(scale * res_ph[q] + shift, 0.0) for q in range(4)]

        # ---- 3x3 Conv2d(pad=1) on the upsampled activation, phase-decomposed -----------
        # A spatial shift of (da, db) on the HxW phase grid is a static circular lane
        # shift by da*W+db plus a boundary mask (implements the zero padding exactly).
        def shifted(v, delta, mask_idx):
            k = delta % M1
            out = v if k == 0 else jnp.concatenate([v[:, k:], v[:, :k]], axis=1)
            if mask_idx is not None:
                out = out * mask_ref[pl.ds(mask_idx, 1), :]      # (1, M1) broadcast
            return out

        for qy in range(2):
            for qx in range(2):
                q = qy * 2 + qx
                acc = sc_ph[q] + bcv_ref[...]                    # shortcut + conv bias
                for ky in range(K):
                    py, da = in_phase(qy, ky)
                    for kx in range(K):
                        px, db = in_phase(qx, kx)
                        tapw = wc_ref[pl.ds((ky * K + kx) * C, C), :]   # (co, ci)
                        mi = None if (da == 0 and db == 0) else (da + 1) * 3 + (db + 1)
                        src = shifted(r_ph[py * 2 + px], da * W + db, mi)
                        acc = acc + jnp.dot(tapw, src, preferred_element_type=jnp.float32)
                out_ref[q, :, :] = acc.astype(out_ref.dtype)

    return kernel


# --------------------------------------------------------------------------------------
# Parameter setup (deterministic, synthetic)
# --------------------------------------------------------------------------------------
def _spectral_normalize(w):
    # TODO(synk): torch.spectral_norm uses 1-step power iteration with a persistent random
    # u; here we use the exact largest singular value (dim-0 matricization) via SVD.
    m = np.asarray(w).reshape(w.shape[0], -1)
    sigma = float(np.linalg.svd(m, compute_uv=False)[0])
    return (w / sigma).astype(jnp.float32)


def init_params(key, in_ch, out_ch, n_classes):
    ks = jax.random.split(key, 8)
    bnd = 1.0 / np.sqrt(in_ch * K * K)
    # ConvTranspose2d weights have PyTorch shape (in_ch, out_ch, 3, 3)
    w_res = jax.random.uniform(ks[0], (in_ch, out_ch, K, K), jnp.float32, -bnd, bnd)
    b_res = jax.random.uniform(ks[1], (out_ch,), jnp.float32, -bnd, bnd)
    w_sc = jax.random.uniform(ks[2], (in_ch, out_ch, K, K), jnp.float32, -bnd, bnd)
    b_sc = jax.random.uniform(ks[3], (out_ch,), jnp.float32, -bnd, bnd)
    # Conv2d weight (out_ch, in_ch, 3, 3), xavier-uniform
    lim = np.sqrt(6.0 / (in_ch * K * K + out_ch * K * K))
    w_cv = jax.random.uniform(ks[4], (out_ch, in_ch, K, K), jnp.float32, -lim, lim)
    b_cv = jax.random.uniform(ks[5], (out_ch,), jnp.float32, -bnd, bnd)
    gamma_tab = 1.0 + 0.02 * jax.random.normal(ks[6], (n_classes, out_ch), jnp.float32)
    beta_tab = 0.02 * jax.random.normal(ks[7], (n_classes, out_ch), jnp.float32)
    return dict(w_res=_spectral_normalize(w_res), b_res=b_res,
                w_sc=_spectral_normalize(w_sc), b_sc=b_sc,
                w_cv=_spectral_normalize(w_cv), b_cv=b_cv,
                gamma_tab=gamma_tab, beta_tab=beta_tab)


# --------------------------------------------------------------------------------------
# Weight / patch plumbing for the phase-decomposed transposed convs
# --------------------------------------------------------------------------------------
# Output parity q in {0,1} along one axis; taps list maps q -> ((input offset d, kernel idx k))
_TAPS = {0: ((0, 1),), 1: ((0, 2), (1, 0))}


def _phase_weights(w):
    """(Cin, Cout, 3, 3) ConvTranspose weight -> (4*Cout, 4*Cin) phase weight.

    Row = phase(qy*2+qx)*Cout + co ; Col = tap(dy*2+dx)*Cin + ci.
    out[n, co, 2a+qy, 2b+qx] = sum_{dy,dx,ci} x[n, ci, a+dy, b+dx] * W[row, col]
    (only the non-zero taps of the stride-2 transposed conv are represented: 1/2/2/4).
    """
    cin, cout = w.shape[0], w.shape[1]
    pw = jnp.zeros((4, cout, 2, 2, cin), jnp.float32)   # [phase, co, dy, dx, ci]
    for qy in range(2):
        for qx in range(2):
            q = qy * 2 + qx
            for dy, ky in _TAPS[qy]:
                for dx, kx in _TAPS[qx]:
                    pw = pw.at[q, :, dy, dx, :].add(w[:, :, ky, kx].T)
    return pw.reshape(4 * cout, 4 * cin)


# --------------------------------------------------------------------------------------
# Wrapper (layout plumbing, embedding lookup, single fused pallas_call)
# --------------------------------------------------------------------------------------
@jax.jit
def optimized_g_block_forward(x_nchw, y, p):
    N, Cin, H, W = x_nchw.shape
    Cout = p['w_res'].shape[1]
    # The reference module applies self.conv (in_ch -> out_ch) to an out_ch tensor,
    # which is only consistent when in_channels == out_channels.
    assert Cin == Cout, "OptimizedG_Block.conv requires in_channels == out_channels"
    C = Cout
    M1 = N * H * W
    Ho, Wo = 2 * H, 2 * W

    x = x_nchw.astype(jnp.float32)
    # 2x2-tap im2col for the phase-decomposed transposed convs (pad bottom/right by 1).
    xp = jnp.pad(x, ((0, 0), (0, 0), (0, 1), (0, 1)))           # (N, Cin, H+1, W+1)
    slabs = []
    for dy in (0, 1):
        for dx in (0, 1):
            s = xp[:, :, dy:dy + H, dx:dx + W]                   # (N, Cin, H, W)
            slabs.append(jnp.transpose(s, (1, 0, 2, 3)).reshape(Cin, M1))
    patches = jnp.concatenate(slabs, axis=0)                     # (4*Cin, M1), lane-dense

    # Fused residual+shortcut phase weights (single array, one DMA).
    wt_all = jnp.concatenate([_phase_weights(p['w_res']),
                              _phase_weights(p['w_sc'])], axis=0)    # (8*C, 4*Cin)
    # 3x3 conv weight in (tap, co) x (ci) layout (cross-correlation, no flip).
    wc2 = jnp.transpose(p['w_cv'], (2, 3, 0, 1)).reshape(K * K * C, C)

    # Conditional-BN embedding lookups, pre-broadcast to the lane-dense pixel layout.
    gamma = p['gamma_tab'][y]                                    # (N, C)
    beta = p['beta_tab'][y]
    g_full = jnp.repeat(gamma.T, H * W, axis=1).astype(jnp.float32)   # (C, M1)
    b_full = jnp.repeat(beta.T, H * W, axis=1).astype(jnp.float32)

    # Boundary masks for the 9 spatial shifts used by the phase-decomposed 3x3 conv.
    ar = jnp.arange(H).reshape(H, 1)
    br = jnp.arange(W).reshape(1, W)
    masks = []
    for da in (-1, 0, 1):
        for db in (-1, 0, 1):
            m = ((ar + da >= 0) & (ar + da < H) & (br + db >= 0) & (br + db < W))
            m = jnp.broadcast_to(m.astype(jnp.float32)[None], (N, H, W)).reshape(1, M1)
            masks.append(m)
    mask9 = jnp.concatenate(masks, axis=0)                       # (9, M1)

    bres = p['b_res'].reshape(C, 1).astype(jnp.float32)
    bsc = p['b_sc'].reshape(C, 1).astype(jnp.float32)
    bcv = p['b_cv'].reshape(C, 1).astype(jnp.float32)

    kernel = _make_kernel(N, C, Cin, H, W)

    out_ph = pl.pallas_call(
        kernel,
        out_shape=jax.ShapeDtypeStruct((4, C, M1), jnp.float32),     # lane-dense phase slab
        in_specs=[pl.BlockSpec(memory_space=pltpu.MemorySpace.VMEM)] * 9,
        out_specs=pl.BlockSpec(memory_space=pltpu.MemorySpace.VMEM),
    )(patches, wt_all, bres, bsc, wc2, bcv, g_full, b_full, mask9)

    # Phase interleave + NCHW restore on the well-tiled (last dim = N*H*W) kernel output.
    o = out_ph.reshape(2, 2, C, N, H, W)
    o = jnp.transpose(o, (3, 2, 4, 0, 5, 1)).reshape(N, C, Ho, Wo)
    return o


# --------------------------------------------------------------------------------------
# Pure-JAX reference (for verification only)
# --------------------------------------------------------------------------------------
def reference_forward(x_nchw, y, p):
    Cout = p['w_res'].shape[1]

    def conv_t(x, w, b):   # torch ConvTranspose2d(k=3, s=2, pad=1, out_pad=1)
        wk = jnp.transpose(w, (1, 0, 2, 3))[:, :, ::-1, ::-1]
        o = lax.conv_general_dilated(x, wk, window_strides=(1, 1),
                                     padding=[(1, 2), (1, 2)], lhs_dilation=(2, 2),
                                     dimension_numbers=('NCHW', 'OIHW', 'NCHW'))
        return o + b.reshape(1, -1, 1, 1)

    def conv(x, w, b):     # torch Conv2d(k=3, s=1, pad=1)
        o = lax.conv_general_dilated(x, w, window_strides=(1, 1),
                                     padding=[(1, 1), (1, 1)],
                                     dimension_numbers=('NCHW', 'OIHW', 'NCHW'))
        return o + b.reshape(1, -1, 1, 1)

    res = conv_t(x_nchw, p['w_res'], p['b_res'])
    sc = conv_t(x_nchw, p['w_sc'], p['b_sc'])
    mean = jnp.mean(res, axis=(0, 2, 3), keepdims=True)
    var = jnp.mean((res - mean) ** 2, axis=(0, 2, 3), keepdims=True)
    xn = (res - mean) / jnp.sqrt(var + BN_EPS)
    g = p['gamma_tab'][y].reshape(-1, Cout, 1, 1)
    b = p['beta_tab'][y].reshape(-1, Cout, 1, 1)
    r = jnp.maximum(g * xn + b, 0.0)
    return conv(r, p['w_cv'], p['b_cv']) + sc


if __name__ == "__main__":
    key = jax.random.PRNGKey(0)
    k_param, k_x, k_y = jax.random.split(key, 3)
    N, C, H, W, n_classes = 2, 4, 16, 16, 10

    params = init_params(k_param, C, C, n_classes)
    x = jax.random.normal(k_x, (N, C, H, W), jnp.float32)
    y = jax.random.randint(k_y, (N,), 0, n_classes)

    out = optimized_g_block_forward(x, y, params)
    out = jax.block_until_ready(out)
    assert out.shape == (N, C, 2 * H, 2 * W)

    ref = reference_forward(x, y, params)
    np.testing.assert_allclose(np.asarray(out), np.asarray(ref), rtol=2e-3, atol=2e-3)

    print("KERNEL_OK")
</pallas_src>

<mosaic_0001>
module attributes {stable_mosaic.version = 11 : i64} {
  func.func @kernel(%arg0: memref<16x512xf32, #tpu.memory_space<vmem>>, %arg1: memref<32x16xf32, #tpu.memory_space<vmem>>, %arg2: memref<4x1xf32, #tpu.memory_space<vmem>>, %arg3: memref<4x1xf32, #tpu.memory_space<vmem>>, %arg4: memref<36x4xf32, #tpu.memory_space<vmem>>, %arg5: memref<4x1xf32, #tpu.memory_space<vmem>>, %arg6: memref<4x512xf32, #tpu.memory_space<vmem>>, %arg7: memref<4x512xf32, #tpu.memory_space<vmem>>, %arg8: memref<9x512xf32, #tpu.memory_space<vmem>>, %arg9: memref<4x4x512xf32, #tpu.memory_space<vmem>>) attributes {dimension_semantics = [], scalar_prefetch = 0 : i64, scratch_operands = 0 : i64, tpu.core_type = #tpu.core_type<tc>} {
    %c0 = arith.constant 0 : index
    %c0_0 = arith.constant 0 : index
    %0 = vector.load %arg0[%c0, %c0_0] : memref<16x512xf32, #tpu.memory_space<vmem>>, vector<16x512xf32>
    %c0_1 = arith.constant 0 : index
    %c0_2 = arith.constant 0 : index
    %1 = vector.load %arg1[%c0_1, %c0_2] : memref<32x16xf32, #tpu.memory_space<vmem>>, vector<4x16xf32>
    %cst = arith.constant dense<0.000000e+00> : vector<4x512xf32>
    %2 = tpu.matmul %1, %0, %cst {dimension_numbers = #tpu.dot_dimension_numbers<[1], [0], [0], [1], [0, 0, 1, 1], [], []>} : vector<4x16xf32>, vector<16x512xf32>, vector<4x512xf32> -> vector<4x512xf32>
    %c4 = arith.constant 4 : index
    %c0_3 = arith.constant 0 : index
    %3 = vector.load %arg1[%c4, %c0_3] : memref<32x16xf32, #tpu.memory_space<vmem>>, vector<4x16xf32>
    %cst_4 = arith.constant dense<0.000000e+00> : vector<4x512xf32>
    %4 = tpu.matmul %3, %0, %cst_4 {dimension_numbers = #tpu.dot_dimension_numbers<[1], [0], [0], [1], [0, 0, 1, 1], [], []>} : vector<4x16xf32>, vector<16x512xf32>, vector<4x512xf32> -> vector<4x512xf32>
    %c8 = arith.constant 8 : index
    %c0_5 = arith.constant 0 : index
    %5 = vector.load %arg1[%c8, %c0_5] : memref<32x16xf32, #tpu.memory_space<vmem>>, vector<4x16xf32>
    %cst_6 = arith.constant dense<0.000000e+00> : vector<4x512xf32>
    %6 = tpu.matmul %5, %0, %cst_6 {dimension_numbers = #tpu.dot_dimension_numbers<[1], [0], [0], [1], [0, 0, 1, 1], [], []>} : vector<4x16xf32>, vector<16x512xf32>, vector<4x512xf32> -> vector<4x512xf32>
    %c12 = arith.constant 12 : index
    %c0_7 = arith.constant 0 : index
    %7 = vector.load %arg1[%c12, %c0_7] : memref<32x16xf32, #tpu.memory_space<vmem>>, vector<4x16xf32>
    %cst_8 = arith.constant dense<0.000000e+00> : vector<4x512xf32>
    %8 = tpu.matmul %7, %0, %cst_8 {dimension_numbers = #tpu.dot_dimension_numbers<[1], [0], [0], [1], [0, 0, 1, 1], [], []>} : vector<4x16xf32>, vector<16x512xf32>, vector<4x512xf32> -> vector<4x512xf32>
    %c16 = arith.constant 16 : index
    %c0_9 = arith.constant 0 : index
    %9 = vector.load %arg1[%c16, %c0_9] : memref<32x16xf32, #tpu.memory_space<vmem>>, vector<4x16xf32>
    %cst_10 = arith.constant dense<0.000000e+00> : vector<4x512xf32>
    %10 = tpu.matmul %9, %0, %cst_10 {dimension_numbers = #tpu.dot_dimension_numbers<[1], [0], [0], [1], [0, 0, 1, 1], [], []>} : vector<4x16xf32>, vector<16x512xf32>, vector<4x512xf32> -> vector<4x512xf32>
    %c20 = arith.constant 20 : index
    %c0_11 = arith.constant 0 : index
    %11 = vector.load %arg1[%c20, %c0_11] : memref<32x16xf32, #tpu.memory_space<vmem>>, vector<4x16xf32>
    %cst_12 = arith.constant dense<0.000000e+00> : vector<4x512xf32>
    %12 = tpu.matmul %11, %0, %cst_12 {dimension_numbers = #tpu.dot_dimension_numbers<[1], [0], [0], [1], [0, 0, 1, 1], [], []>} : vector<4x16xf32>, vector<16x512xf32>, vector<4x512xf32> -> vector<4x512xf32>
    %c24 = arith.constant 24 : index
    %c0_13 = arith.constant 0 : index
    %13 = vector.load %arg1[%c24, %c0_13] : memref<32x16xf32, #tpu.memory_space<vmem>>, vector<4x16xf32>
    %cst_14 = arith.constant dense<0.000000e+00> : vector<4x512xf32>
    %14 = tpu.matmul %13, %0, %cst_14 {dimension_numbers = #tpu.dot_dimension_numbers<[1], [0], [0], [1], [0, 0, 1, 1], [], []>} : vector<4x16xf32>, vector<16x512xf32>, vector<4x512xf32> -> vector<4x512xf32>
    %c28 = arith.constant 28 : index
    %c0_15 = arith.constant 0 : index
    %15 = vector.load %arg1[%c28, %c0_15] : memref<32x16xf32, #tpu.memory_space<vmem>>, vector<4x16xf32>
    %cst_16 = arith.constant dense<0.000000e+00> : vector<4x512xf32>
    %16 = tpu.matmul %15, %0, %cst_16 {dimension_numbers = #tpu.dot_dimension_numbers<[1], [0], [0], [1], [0, 0, 1, 1], [], []>} : vector<4x16xf32>, vector<16x512xf32>, vector<4x512xf32> -> vector<4x512xf32>
    %c0_17 = arith.constant 0 : index
    %c0_18 = arith.constant 0 : index
    %17 = vector.load %arg2[%c0_17, %c0_18] : memref<4x1xf32, #tpu.memory_space<vmem>>, vector<4x1xf32>
    %18 = vector.broadcast %17 : vector<4x1xf32> to vector<4x512xf32>
    %19 = arith.addf %2, %18 : vector<4x512xf32>
    %c0_19 = arith.constant 0 : index
    %c0_20 = arith.constant 0 : index
    %20 = vector.load %arg2[%c0_19, %c0_20] : memref<4x1xf32, #tpu.memory_space<vmem>>, vector<4x1xf32>
    %21 = vector.broadcast %20 : vector<4x1xf32> to vector<4x512xf32>
    %22 = arith.addf %4, %21 : vector<4x512xf32>
    %c0_21 = arith.constant 0 : index
    %c0_22 = arith.constant 0 : index
    %23 = vector.load %arg2[%c0_21, %c0_22] : memref<4x1xf32, #tpu.memory_space<vmem>>, vector<4x1xf32>
    %24 = vector.broadcast %23 : vector<4x1xf32> to vector<4x512xf32>
    %25 = arith.addf %6, %24 : vector<4x512xf32>
    %c0_23 = arith.constant 0 : index
    %c0_24 = arith.constant 0 : index
    %26 = vector.load %arg2[%c0_23, %c0_24] : memref<4x1xf32, #tpu.memory_space<vmem>>, vector<4x1xf32>
    %27 = vector.broadcast %26 : vector<4x1xf32> to vector<4x512xf32>
    %28 = arith.addf %8, %27 : vector<4x512xf32>
    %c0_25 = arith.constant 0 : index
    %c0_26 = arith.constant 0 : index
    %29 = vector.load %arg3[%c0_25, %c0_26] : memref<4x1xf32, #tpu.memory_space<vmem>>, vector<4x1xf32>
    %30 = vector.broadcast %29 : vector<4x1xf32> to vector<4x512xf32>
    %31 = arith.addf %10, %30 : vector<4x512xf32>
    %c0_27 = arith.constant 0 : index
    %c0_28 = arith.constant 0 : index
    %32 = vector.load %arg3[%c0_27, %c0_28] : memref<4x1xf32, #tpu.memory_space<vmem>>, vector<4x1xf32>
    %33 = vector.broadcast %32 : vector<4x1xf32> to vector<4x512xf32>
    %34 = arith.addf %12, %33 : vector<4x512xf32>
    %c0_29 = arith.constant 0 : index
    %c0_30 = arith.constant 0 : index
    %35 = vector.load %arg3[%c0_29, %c0_30] : memref<4x1xf32, #tpu.memory_space<vmem>>, vector<4x1xf32>
    %36 = vector.broadcast %35 : vector<4x1xf32> to vector<4x512xf32>
    %37 = arith.addf %14, %36 : vector<4x512xf32>
    %c0_31 = arith.constant 0 : index
    %c0_32 = arith.constant 0 : index
    %38 = vector.load %arg3[%c0_31, %c0_32] : memref<4x1xf32, #tpu.memory_space<vmem>>, vector<4x1xf32>
    %39 = vector.broadcast %38 : vector<4x1xf32> to vector<4x512xf32>
    %40 = arith.addf %16, %39 : vector<4x512xf32>
    %cst_33 = arith.constant 0.000000e+00 : f32
    %41 = vector.broadcast %cst_33 : f32 to vector<4x1xf32>
    %cst_34 = arith.constant 0.000000e+00 : f32
    %42 = vector.broadcast %cst_34 : f32 to vector<4x1xf32>
    %cst_35 = arith.constant dense<0.000000e+00> : vector<4xf32>
    %43 = vector.multi_reduction <add>, %19, %cst_35 [1] : vector<4x512xf32> to vector<4xf32>
    %44 = vector.shape_cast %43 : vector<4xf32> to vector<4x1xf32>
    %45 = arith.addf %41, %44 : vector<4x1xf32>
    %46 = arith.mulf %19, %19 : vector<4x512xf32>
    %cst_36 = arith.constant dense<0.000000e+00> : vector<4xf32>
    %47 = vector.multi_reduction <add>, %46, %cst_36 [1] : vector<4x512xf32> to vector<4xf32>
    %48 = vector.shape_cast %47 : vector<4xf32> to vector<4x1xf32>
    %49 = arith.addf %42, %48 : vector<4x1xf32>
    %cst_37 = arith.constant dense<0.000000e+00> : vector<4xf32>
    %50 = vector.multi_reduction <add>, %22, %cst_37 [1] : vector<4x512xf32> to vector<4xf32>
    %51 = vector.shape_cast %50 : vector<4xf32> to vector<4x1xf32>
    %52 = arith.addf %45, %51 : vector<4x1xf32>
    %53 = arith.mulf %22, %22 : vector<4x512xf32>
    %cst_38 = arith.constant dense<0.000000e+00> : vector<4xf32>
    %54 = vector.multi_reduction <add>, %53, %cst_38 [1] : vector<4x512xf32> to vector<4xf32>
    %55 = vector.shape_cast %54 : vector<4xf32> to vector<4x1xf32>
    %56 = arith.addf %49, %55 : vector<4x1xf32>
    %cst_39 = arith.constant dense<0.000000e+00> : vector<4xf32>
    %57 = vector.multi_reduction <add>, %25, %cst_39 [1] : vector<4x512xf32> to vector<4xf32>
    %58 = vector.shape_cast %57 : vector<4xf32> to vector<4x1xf32>
    %59 = arith.addf %52, %58 : vector<4x1xf32>
    %60 = arith.mulf %25, %25 : vector<4x512xf32>
    %cst_40 = arith.constant dense<0.000000e+00> : vector<4xf32>
    %61 = vector.multi_reduction <add>, %60, %cst_40 [1] : vector<4x512xf32> to vector<4xf32>
    %62 = vector.shape_cast %61 : vector<4xf32> to vector<4x1xf32>
    %63 = arith.addf %56, %62 : vector<4x1xf32>
    %cst_41 = arith.constant dense<0.000000e+00> : vector<4xf32>
    %64 = vector.multi_reduction <add>, %28, %cst_41 [1] : vector<4x512xf32> to vector<4xf32>
    %65 = vector.shape_cast %64 : vector<4xf32> to vector<4x1xf32>
    %66 = arith.addf %59, %65 : vector<4x1xf32>
    %67 = arith.mulf %28, %28 : vector<4x512xf32>
    %cst_42 = arith.constant dense<0.000000e+00> : vector<4xf32>
    %68 = vector.multi_reduction <add>, %67, %cst_42 [1] : vector<4x512xf32> to vector<4xf32>
    %69 = vector.shape_cast %68 : vector<4xf32> to vector<4x1xf32>
    %70 = arith.addf %63, %69 : vector<4x1xf32>
    %cst_43 = arith.constant 4.8828125E-4 : f32
    %71 = vector.broadcast %cst_43 : f32 to vector<4x1xf32>
    %72 = arith.mulf %66, %71 : vector<4x1xf32>
    %cst_44 = arith.constant 4.8828125E-4 : f32
    %73 = vector.broadcast %cst_44 : f32 to vector<4x1xf32>
    %74 = arith.mulf %70, %73 : vector<4x1xf32>
    %75 = arith.mulf %72, %72 : vector<4x1xf32>
    %76 = arith.subf %74, %75 : vector<4x1xf32>
    %cst_45 = arith.constant 9.99999974E-6 : f32
    %77 = vector.broadcast %cst_45 : f32 to vector<4x1xf32>
    %78 = arith.addf %76, %77 : vector<4x1xf32>
    %79 = math.rsqrt %78 : vector<4x1xf32>
    %c0_46 = arith.constant 0 : index
    %c0_47 = arith.constant 0 : index
    %80 = vector.load %arg6[%c0_46, %c0_47] : memref<4x512xf32, #tpu.memory_space<vmem>>, vector<4x512xf32>
    %81 = vector.broadcast %79 : vector<4x1xf32> to vector<4x512xf32>
    %82 = arith.mulf %80, %81 : vector<4x512xf32>
    %c0_48 = arith.constant 0 : index
    %c0_49 = arith.constant 0 : index
    %83 = vector.load %arg7[%c0_48, %c0_49] : memref<4x512xf32, #tpu.memory_space<vmem>>, vector<4x512xf32>
    %84 = vector.broadcast %72 : vector<4x1xf32> to vector<4x512xf32>
    %85 = arith.mulf %82, %84 : vector<4x512xf32>
    %86 = arith.subf %83, %85 : vector<4x512xf32>
    %87 = arith.mulf %82, %19 : vector<4x512xf32>
    %88 = arith.addf %87, %86 : vector<4x512xf32>
    %cst_50 = arith.constant 0.000000e+00 : f32
    %89 = vector.broadcast %cst_50 : f32 to vector<4x512xf32>
    %90 = arith.maximumf %88, %89 : vector<4x512xf32>
    %91 = arith.mulf %82, %22 : vector<4x512xf32>
    %92 = arith.addf %91, %86 : vector<4x512xf32>
    %cst_51 = arith.constant 0.000000e+00 : f32
    %93 = vector.broadcast %cst_51 : f32 to vector<4x512xf32>
    %94 = arith.maximumf %92, %93 : vector<4x512xf32>
    %95 = arith.mulf %82, %25 : vector<4x512xf32>
    %96 = arith.addf %95, %86 : vector<4x512xf32>
    %cst_52 = arith.constant 0.000000e+00 : f32
    %97 = vector.broadcast %cst_52 : f32 to vector<4x512xf32>
    %98 = arith.maximumf %96, %97 : vector<4x512xf32>
    %99 = arith.mulf %82, %28 : vector<4x512xf32>
    %100 = arith.addf %99, %86 : vector<4x512xf32>
    %cst_53 = arith.constant 0.000000e+00 : f32
    %101 = vector.broadcast %cst_53 : f32 to vector<4x512xf32>
    %102 = arith.maximumf %100, %101 : vector<4x512xf32>
    %c0_54 = arith.constant 0 : index
    %c0_55 = arith.constant 0 : index
    %103 = vector.load %arg5[%c0_54, %c0_55] : memref<4x1xf32, #tpu.memory_space<vmem>>, vector<4x1xf32>
    %104 = vector.broadcast %103 : vector<4x1xf32> to vector<4x512xf32>
    %105 = arith.addf %31, %104 : vector<4x512xf32>
    %c0_56 = arith.constant 0 : index
    %c0_57 = arith.constant 0 : index
    %106 = vector.load %arg4[%c0_56, %c0_57] : memref<36x4xf32, #tpu.memory_space<vmem>>, vector<4x4xf32>
    %107 = vector.extract_strided_slice %102 {offsets = [0, 495], sizes = [4, 17], strides = [1, 1]} : vector<4x512xf32> to vector<4x17xf32>
    %108 = vector.extract_strided_slice %102 {offsets = [0, 0], sizes = [4, 495], strides = [1, 1]} : vector<4x512xf32> to vector<4x495xf32>
    %109 = tpu.concatenate %107, %108 in 1 : vector<4x17xf32>, vector<4x495xf32> -> vector<4x512xf32>
    %c0_58 = arith.constant 0 : index
    %c0_59 = arith.constant 0 : index
    %110 = vector.load %arg8[%c0_58, %c0_59] : memref<9x512xf32, #tpu.memory_space<vmem>>, vector<1x512xf32>
    %111 = vector.broadcast %110 : vector<1x512xf32> to vector<4x512xf32>
    %112 = arith.mulf %109, %111 : vector<4x512xf32>
    %cst_60 = arith.constant dense<0.000000e+00> : vector<4x512xf32>
    %113 = tpu.matmul %106, %112, %cst_60 {dimension_numbers = #tpu.dot_dimension_numbers<[1], [0], [0], [1], [0, 0, 1, 1], [], []>} : vector<4x4xf32>, vector<4x512xf32>, vector<4x512xf32> -> vector<4x512xf32>
    %114 = arith.addf %105, %113 : vector<4x512xf32>
    %c4_61 = arith.constant 4 : index
    %c0_62 = arith.constant 0 : index
    %115 = vector.load %arg4[%c4_61, %c0_62] : memref<36x4xf32, #tpu.memory_space<vmem>>, vector<4x4xf32>
    %116 = vector.extract_strided_slice %98 {offsets = [0, 496], sizes = [4, 16], strides = [1, 1]} : vector<4x512xf32> to vector<4x16xf32>
    %117 = vector.extract_strided_slice %98 {offsets = [0, 0], sizes = [4, 496], strides = [1, 1]} : vector<4x512xf32> to vector<4x496xf32>
    %118 = tpu.concatenate %116, %117 in 1 : vector<4x16xf32>, vector<4x496xf32> -> vector<4x512xf32>
    %c1 = arith.constant 1 : index
    %c0_63 = arith.constant 0 : index
    %119 = vector.load %arg8[%c1, %c0_63] : memref<9x512xf32, #tpu.memory_space<vmem>>, vector<1x512xf32>
    %120 = vector.broadcast %119 : vector<1x512xf32> to vector<4x512xf32>
    %121 = arith.mulf %118, %120 : vector<4x512xf32>
    %cst_64 = arith.constant dense<0.000000e+00> : vector<4x512xf32>
    %122 = tpu.matmul %115, %121, %cst_64 {dimension_numbers = #tpu.dot_dimension_numbers<[1], [0], [0], [1], [0, 0, 1, 1], [], []>} : vector<4x4xf32>, vector<4x512xf32>, vector<4x512xf32> -> vector<4x512xf32>
    %123 = arith.addf %114, %122 : vector<4x512xf32>
    %c8_65 = arith.constant 8 : index
    %c0_66 = arith.constant 0 : index
    %124 = vector.load %arg4[%c8_65, %c0_66] : memref<36x4xf32, #tpu.memory_space<vmem>>, vector<4x4xf32>
    %125 = vector.extract_strided_slice %102 {offsets = [0, 496], sizes = [4, 16], strides = [1, 1]} : vector<4x512xf32> to vector<4x16xf32>
    %126 = vector.extract_strided_slice %102 {offsets = [0, 0], sizes = [4, 496], strides = [1, 1]} : vector<4x512xf32> to vector<4x496xf32>
    %127 = tpu.concatenate %125, %126 in 1 : vector<4x16xf32>, vector<4x496xf32> -> vector<4x512xf32>
    %c1_67 = arith.constant 1 : index
    %c0_68 = arith.constant 0 : index
    %128 = vector.load %arg8[%c1_67, %c0_68] : memref<9x512xf32, #tpu.memory_space<vmem>>, vector<1x512xf32>
    %129 = vector.broadcast %128 : vector<1x512xf32> to vector<4x512xf32>
    %130 = arith.mulf %127, %129 : vector<4x512xf32>
    %cst_69 = arith.constant dense<0.000000e+00> : vector<4x512xf32>
    %131 = tpu.matmul %124, %130, %cst_69 {dimension_numbers = #tpu.dot_dimension_numbers<[1], [0], [0], [1], [0, 0, 1, 1], [], []>} : vector<4x4xf32>, vector<4x512xf32>, vector<4x512xf32> -> vector<4x512xf32>
    %132 = arith.addf %123, %131 : vector<4x512xf32>
    %c12_70 = arith.constant 12 : index
    %c0_71 = arith.constant 0 : index
    %133 = vector.load %arg4[%c12_70, %c0_71] : memref<36x4xf32, #tpu.memory_space<vmem>>, vector<4x4xf32>
    %134 = vector.extract_strided_slice %94 {offsets = [0, 511], sizes = [4, 1], strides = [1, 1]} : vector<4x512xf32> to vector<4x1xf32>
    %135 = vector.extract_strided_slice %94 {offsets = [0, 0], sizes = [4, 511], strides = [1, 1]} : vector<4x512xf32> to vector<4x511xf32>
    %136 = tpu.concatenate %134, %135 in 1 : vector<4x1xf32>, vector<4x511xf32> -> vector<4x512xf32>
    %c3 = arith.constant 3 : index
    %c0_72 = arith.constant 0 : index
    %137 = vector.load %arg8[%c3, %c0_72] : memref<9x512xf32, #tpu.memory_space<vmem>>, vector<1x512xf32>
    %138 = vector.broadcast %137 : vector<1x512xf32> to vector<4x512xf32>
    %139 = arith.mulf %136, %138 : vector<4x512xf32>
    %cst_73 = arith.constant dense<0.000000e+00> : vector<4x512xf32>
    %140 = tpu.matmul %133, %139, %cst_73 {dimension_numbers = #tpu.dot_dimension_numbers<[1], [0], [0], [1], [0, 0, 1, 1], [], []>} : vector<4x4xf32>, vector<4x512xf32>, vector<4x512xf32> -> vector<4x512xf32>
    %141 = arith.addf %132, %140 : vector<4x512xf32>
    %c16_74 = arith.constant 16 : index
    %c0_75 = arith.constant 0 : index
    %142 = vector.load %arg4[%c16_74, %c0_75] : memref<36x4xf32, #tpu.memory_space<vmem>>, vector<4x4xf32>
    %cst_76 = arith.constant dense<0.000000e+00> : vector<4x512xf32>
    %143 = tpu.matmul %142, %90, %cst_76 {dimension_numbers = #tpu.dot_dimension_numbers<[1], [0], [0], [1], [0, 0, 1, 1], [], []>} : vector<4x4xf32>, vector<4x512xf32>, vector<4x512xf32> -> vector<4x512xf32>
    %144 = arith.addf %141, %143 : vector<4x512xf32>
    %c20_77 = arith.constant 20 : index
    %c0_78 = arith.constant 0 : index
    %145 = vector.load %arg4[%c20_77, %c0_78] : memref<36x4xf32, #tpu.memory_space<vmem>>, vector<4x4xf32>
    %cst_79 = arith.constant dense<0.000000e+00> : vector<4x512xf32>
    %146 = tpu.matmul %145, %94, %cst_79 {dimension_numbers = #tpu.dot_dimension_numbers<[1], [0], [0], [1], [0, 0, 1, 1], [], []>} : vector<4x4xf32>, vector<4x512xf32>, vector<4x512xf32> -> vector<4x512xf32>
    %147 = arith.addf %144, %146 : vector<4x512xf32>
    %c24_80 = arith.constant 24 : index
    %c0_81 = arith.constant 0 : index
    %148 = vector.load %arg4[%c24_80, %c0_81] : memref<36x4xf32, #tpu.memory_space<vmem>>, vector<4x4xf32>
    %149 = vector.extract_strided_slice %102 {offsets = [0, 511], sizes = [4, 1], strides = [1, 1]} : vector<4x512xf32> to vector<4x1xf32>
    %150 = vector.extract_strided_slice %102 {offsets = [0, 0], sizes = [4, 511], strides = [1, 1]} : vector<4x512xf32> to vector<4x511xf32>
    %151 = tpu.concatenate %149, %150 in 1 : vector<4x1xf32>, vector<4x511xf32> -> vector<4x512xf32>
    %c3_82 = arith.constant 3 : index
    %c0_83 = arith.constant 0 : index
    %152 = vector.load %arg8[%c3_82, %c0_83] : memref<9x512xf32, #tpu.memory_space<vmem>>, vector<1x512xf32>
    %153 = vector.broadcast %152 : vector<1x512xf32> to vector<4x512xf32>
    %154 = arith.mulf %151, %153 : vector<4x512xf32>
    %cst_84 = arith.constant dense<0.000000e+00> : vector<4x512xf32>
    %155 = tpu.matmul %148, %154, %cst_84 {dimension_numbers = #tpu.dot_dimension_numbers<[1], [0], [0], [1], [0, 0, 1, 1], [], []>} : vector<4x4xf32>, vector<4x512xf32>, vector<4x512xf32> -> vector<4x512xf32>
    %156 = arith.addf %147, %155 : vector<4x512xf32>
    %c28_85 = arith.constant 28 : index
    %c0_86 = arith.constant 0 : index
    %157 = vector.load %arg4[%c28_85, %c0_86] : memref<36x4xf32, #tpu.memory_space<vmem>>, vector<4x4xf32>
    %cst_87 = arith.constant dense<0.000000e+00> : vector<4x512xf32>
    %158 = tpu.matmul %157, %98, %cst_87 {dimension_numbers = #tpu.dot_dimension_numbers<[1], [0], [0], [1], [0, 0, 1, 1], [], []>} : vector<4x4xf32>, vector<4x512xf32>, vector<4x512xf32> -> vector<4x512xf32>
    %159 = arith.addf %156, %158 : vector<4x512xf32>
    %c32 = arith.constant 32 : index
    %c0_88 = arith.constant 0 : index
    %160 = vector.load %arg4[%c32, %c0_88] : memref<36x4xf32, #tpu.memory_space<vmem>>, vector<4x4xf32>
    %cst_89 = arith.constant dense<0.000000e+00> : vector<4x512xf32>
    %161 = tpu.matmul %160, %102, %cst_89 {dimension_numbers = #tpu.dot_dimension_numbers<[1], [0], [0], [1], [0, 0, 1, 1], [], []>} : vector<4x4xf32>, vector<4x512xf32>, vector<4x512xf32> -> vector<4x512xf32>
    %162 = arith.addf %159, %161 : vector<4x512xf32>
    %c0_90 = arith.constant 0 : index
    %c0_91 = arith.constant 0 : index
    %c0_92 = arith.constant 0 : index
    %163 = vector.load %arg9[%c0_90, %c0_91, %c0_92] : memref<4x4x512xf32, #tpu.memory_space<vmem>>, vector<1x4x512xf32>
    %164 = vector.shape_cast %163 : vector<1x4x512xf32> to vector<4x512xf32>
    %165 = vector.shape_cast %162 : vector<4x512xf32> to vector<1x4x512xf32>
    tpu.vector_store %arg9[%c0_90, %c0_91, %c0_92], %165 {strides = array<i32>} : memref<4x4x512xf32, #tpu.memory_space<vmem>>, vector<1x4x512xf32>,
    %c0_93 = arith.constant 0 : index
    %c0_94 = arith.constant 0 : index
    %166 = vector.load %arg5[%c0_93, %c0_94] : memref<4x1xf32, #tpu.memory_space<vmem>>, vector<4x1xf32>
    %167 = vector.broadcast %166 : vector<4x1xf32> to vector<4x512xf32>
    %168 = arith.addf %34, %167 : vector<4x512xf32>
    %c0_95 = arith.constant 0 : index
    %c0_96 = arith.constant 0 : index
    %169 = vector.load %arg4[%c0_95, %c0_96] : memref<36x4xf32, #tpu.memory_space<vmem>>, vector<4x4xf32>
    %170 = vector.extract_strided_slice %98 {offsets = [0, 496], sizes = [4, 16], strides = [1, 1]} : vector<4x512xf32> to vector<4x16xf32>
    %171 = vector.extract_strided_slice %98 {offsets = [0, 0], sizes = [4, 496], strides = [1, 1]} : vector<4x512xf32> to vector<4x496xf32>
    %172 = tpu.concatenate %170, %171 in 1 : vector<4x16xf32>, vector<4x496xf32> -> vector<4x512xf32>
    %c1_97 = arith.constant 1 : index
    %c0_98 = arith.constant 0 : index
    %173 = vector.load %arg8[%c1_97, %c0_98] : memref<9x512xf32, #tpu.memory_space<vmem>>, vector<1x512xf32>
    %174 = vector.broadcast %173 : vector<1x512xf32> to vector<4x512xf32>
    %175 = arith.mulf %172, %174 : vector<4x512xf32>
    %cst_99 = arith.constant dense<0.000000e+00> : vector<4x512xf32>
    %176 = tpu.matmul %169, %175, %cst_99 {dimension_numbers = #tpu.dot_dimension_numbers<[1], [0], [0], [1], [0, 0, 1, 1], [], []>} : vector<4x4xf32>, vector<4x512xf32>, vector<4x512xf32> -> vector<4x512xf32>
    %177 = arith.addf %168, %176 : vector<4x512xf32>
    %c4_100 = arith.constant 4 : index
    %c0_101 = arith.constant 0 : index
    %178 = vector.load %arg4[%c4_100, %c0_101] : memref<36x4xf32, #tpu.memory_space<vmem>>, vector<4x4xf32>
    %179 = vector.extract_strided_slice %102 {offsets = [0, 496], sizes = [4, 16], strides = [1, 1]} : vector<4x512xf32> to vector<4x16xf32>
    %180 = vector.extract_strided_slice %102 {offsets = [0, 0], sizes = [4, 496], strides = [1, 1]} : vector<4x512xf32> to vector<4x496xf32>
    %181 = tpu.concatenate %179, %180 in 1 : vector<4x16xf32>, vector<4x496xf32> -> vector<4x512xf32>
    %c1_102 = arith.constant 1 : index
    %c0_103 = arith.constant 0 : index
    %182 = vector.load %arg8[%c1_102, %c0_103] : memref<9x512xf32, #tpu.memory_space<vmem>>, vector<1x512xf32>
    %183 = vector.broadcast %182 : vector<1x512xf32> to vector<4x512xf32>
    %184 = arith.mulf %181, %183 : vector<4x512xf32>
    %cst_104 = arith.constant dense<0.000000e+00> : vector<4x512xf32>
    %185 = tpu.matmul %178, %184, %cst_104 {dimension_numbers = #tpu.dot_dimension_numbers<[1], [0], [0], [1], [0, 0, 1, 1], [], []>} : vector<4x4xf32>, vector<4x512xf32>, vector<4x512xf32> -> vector<4x512xf32>
    %186 = arith.addf %177, %185 : vector<4x512xf32>
    %c8_105 = arith.constant 8 : index
    %c0_106 = arith.constant 0 : index
    %187 = vector.load %arg4[%c8_105, %c0_106] : memref<36x4xf32, #tpu.memory_space<vmem>>, vector<4x4xf32>
    %188 = vector.extract_strided_slice %98 {offsets = [0, 497], sizes = [4, 15], strides = [1, 1]} : vector<4x512xf32> to vector<4x15xf32>
    %189 = vector.extract_strided_slice %98 {offsets = [0, 0], sizes = [4, 497], strides = [1, 1]} : vector<4x512xf32> to vector<4x497xf32>
    %190 = tpu.concatenate %188, %189 in 1 : vector<4x15xf32>, vector<4x497xf32> -> vector<4x512xf32>
    %c2 = arith.constant 2 : index
    %c0_107 = arith.constant 0 : index
    %191 = vector.load %arg8[%c2, %c0_107] : memref<9x512xf32, #tpu.memory_space<vmem>>, vector<1x512xf32>
    %192 = vector.broadcast %191 : vector<1x512xf32> to vector<4x512xf32>
    %193 = arith.mulf %190, %192 : vector<4x512xf32>
    %cst_108 = arith.constant dense<0.000000e+00> : vector<4x512xf32>
    %194 = tpu.matmul %187, %193, %cst_108 {dimension_numbers = #tpu.dot_dimension_numbers<[1], [0], [0], [1], [0, 0, 1, 1], [], []>} : vector<4x4xf32>, vector<4x512xf32>, vector<4x512xf32> -> vector<4x512xf32>
    %195 = arith.addf %186, %194 : vector<4x512xf32>
    %c12_109 = arith.constant 12 : index
    %c0_110 = arith.constant 0 : index
    %196 = vector.load %arg4[%c12_109, %c0_110] : memref<36x4xf32, #tpu.memory_space<vmem>>, vector<4x4xf32>
    %cst_111 = arith.constant dense<0.000000e+00> : vector<4x512xf32>
    %197 = tpu.matmul %196, %90, %cst_111 {dimension_numbers = #tpu.dot_dimension_numbers<[1], [0], [0], [1], [0, 0, 1, 1], [], []>} : vector<4x4xf32>, vector<4x512xf32>, vector<4x512xf32> -> vector<4x512xf32>
    %198 = arith.addf %195, %197 : vector<4x512xf32>
    %c16_112 = arith.constant 16 : index
    %c0_113 = arith.constant 0 : index
    %199 = vector.load %arg4[%c16_112, %c0_113] : memref<36x4xf32, #tpu.memory_space<vmem>>, vector<4x4xf32>
    %cst_114 = arith.constant dense<0.000000e+00> : vector<4x512xf32>
    %200 = tpu.matmul %199, %94, %cst_114 {dimension_numbers = #tpu.dot_dimension_numbers<[1], [0], [0], [1], [0, 0, 1, 1], [], []>} : vector<4x4xf32>, vector<4x512xf32>, vector<4x512xf32> -> vector<4x512xf32>
    %201 = arith.addf %198, %200 : vector<4x512xf32>
    %c20_115 = arith.constant 20 : index
    %c0_116 = arith.constant 0 : index
    %202 = vector.load %arg4[%c20_115, %c0_116] : memref<36x4xf32, #tpu.memory_space<vmem>>, vector<4x4xf32>
    %203 = vector.extract_strided_slice %90 {offsets = [0, 1], sizes = [4, 511], strides = [1, 1]} : vector<4x512xf32> to vector<4x511xf32>
    %204 = vector.extract_strided_slice %90 {offsets = [0, 0], sizes = [4, 1], strides = [1, 1]} : vector<4x512xf32> to vector<4x1xf32>
    %205 = tpu.concatenate %203, %204 in 1 : vector<4x511xf32>, vector<4x1xf32> -> vector<4x512xf32>
    %c5 = arith.constant 5 : index
    %c0_117 = arith.constant 0 : index
    %206 = vector.load %arg8[%c5, %c0_117] : memref<9x512xf32, #tpu.memory_space<vmem>>, vector<1x512xf32>
    %207 = vector.broadcast %206 : vector<1x512xf32> to vector<4x512xf32>
    %208 = arith.mulf %205, %207 : vector<4x512xf32>
    %cst_118 = arith.constant dense<0.000000e+00> : vector<4x512xf32>
    %209 = tpu.matmul %202, %208, %cst_118 {dimension_numbers = #tpu.dot_dimension_numbers<[1], [0], [0], [1], [0, 0, 1, 1], [], []>} : vector<4x4xf32>, vector<4x512xf32>, vector<4x512xf32> -> vector<4x512xf32>
    %210 = arith.addf %201, %209 : vector<4x512xf32>
    %c24_119 = arith.constant 24 : index
    %c0_120 = arith.constant 0 : index
    %211 = vector.load %arg4[%c24_119, %c0_120] : memref<36x4xf32, #tpu.memory_space<vmem>>, vector<4x4xf32>
    %cst_121 = arith.constant dense<0.000000e+00> : vector<4x512xf32>
    %212 = tpu.matmul %211, %98, %cst_121 {dimension_numbers = #tpu.dot_dimension_numbers<[1], [0], [0], [1], [0, 0, 1, 1], [], []>} : vector<4x4xf32>, vector<4x512xf32>, vector<4x512xf32> -> vector<4x512xf32>
    %213 = arith.addf %210, %212 : vector<4x512xf32>
    %c28_122 = arith.constant 28 : index
    %c0_123 = arith.constant 0 : index
    %214 = vector.load %arg4[%c28_122, %c0_123] : memref<36x4xf32, #tpu.memory_space<vmem>>, vector<4x4xf32>
    %cst_124 = arith.constant dense<0.000000e+00> : vector<4x512xf32>
    %215 = tpu.matmul %214, %102, %cst_124 {dimension_numbers = #tpu.dot_dimension_numbers<[1], [0], [0], [1], [0, 0, 1, 1], [], []>} : vector<4x4xf32>, vector<4x512xf32>, vector<4x512xf32> -> vector<4x512xf32>
    %216 = arith.addf %213, %215 : vector<4x512xf32>
    %c32_125 = arith.constant 32 : index
    %c0_126 = arith.constant 0 : index
    %217 = vector.load %arg4[%c32_125, %c0_126] : memref<36x4xf32, #tpu.memory_space<vmem>>, vector<4x4xf32>
    %218 = vector.extract_strided_slice %98 {offsets = [0, 1], sizes = [4, 511], strides = [1, 1]} : vector<4x512xf32> to vector<4x511xf32>
    %219 = vector.extract_strided_slice %98 {offsets = [0, 0], sizes = [4, 1], strides = [1, 1]} : vector<4x512xf32> to vector<4x1xf32>
    %220 = tpu.concatenate %218, %219 in 1 : vector<4x511xf32>, vector<4x1xf32> -> vector<4x512xf32>
    %c5_127 = arith.constant 5 : index
    %c0_128 = arith.constant 0 : index
    %221 = vector.load %arg8[%c5_127, %c0_128] : memref<9x512xf32, #tpu.memory_space<vmem>>, vector<1x512xf32>
    %222 = vector.broadcast %221 : vector<1x512xf32> to vector<4x512xf32>
    %223 = arith.mulf %220, %222 : vector<4x512xf32>
    %cst_129 = arith.constant dense<0.000000e+00> : vector<4x512xf32>
    %224 = tpu.matmul %217, %223, %cst_129 {dimension_numbers = #tpu.dot_dimension_numbers<[1], [0], [0], [1], [0, 0, 1, 1], [], []>} : vector<4x4xf32>, vector<4x512xf32>, vector<4x512xf32> -> vector<4x512xf32>
    %225 = arith.addf %216, %224 : vector<4x512xf32>
    %c1_130 = arith.constant 1 : index
    %c0_131 = arith.constant 0 : index
    %c0_132 = arith.constant 0 : index
    %226 = vector.load %arg9[%c1_130, %c0_131, %c0_132] : memref<4x4x512xf32, #tpu.memory_space<vmem>>, vector<1x4x512xf32>
    %227 = vector.shape_cast %226 : vector<1x4x512xf32> to vector<4x512xf32>
    %228 = vector.shape_cast %225 : vector<4x512xf32> to vector<1x4x512xf32>
    tpu.vector_store %arg9[%c1_130, %c0_131, %c0_132], %228 {strides = array<i32>} : memref<4x4x512xf32, #tpu.memory_space<vmem>>, vector<1x4x512xf32>,
    %c0_133 = arith.constant 0 : index
    %c0_134 = arith.constant 0 : index
    %229 = vector.load %arg5[%c0_133, %c0_134] : memref<4x1xf32, #tpu.memory_space<vmem>>, vector<4x1xf32>
    %230 = vector.broadcast %229 : vector<4x1xf32> to vector<4x512xf32>
    %231 = arith.addf %37, %230 : vector<4x512xf32>
    %c0_135 = arith.constant 0 : index
    %c0_136 = arith.constant 0 : index
    %232 = vector.load %arg4[%c0_135, %c0_136] : memref<36x4xf32, #tpu.memory_space<vmem>>, vector<4x4xf32>
    %233 = vector.extract_strided_slice %94 {offsets = [0, 511], sizes = [4, 1], strides = [1, 1]} : vector<4x512xf32> to vector<4x1xf32>
    %234 = vector.extract_strided_slice %94 {offsets = [0, 0], sizes = [4, 511], strides = [1, 1]} : vector<4x512xf32> to vector<4x511xf32>
    %235 = tpu.concatenate %233, %234 in 1 : vector<4x1xf32>, vector<4x511xf32> -> vector<4x512xf32>
    %c3_137 = arith.constant 3 : index
    %c0_138 = arith.constant 0 : index
    %236 = vector.load %arg8[%c3_137, %c0_138] : memref<9x512xf32, #tpu.memory_space<vmem>>, vector<1x512xf32>
    %237 = vector.broadcast %236 : vector<1x512xf32> to vector<4x512xf32>
    %238 = arith.mulf %235, %237 : vector<4x512xf32>
    %cst_139 = arith.constant dense<0.000000e+00> : vector<4x512xf32>
    %239 = tpu.matmul %232, %238, %cst_139 {dimension_numbers = #tpu.dot_dimension_numbers<[1], [0], [0], [1], [0, 0, 1, 1], [], []>} : vector<4x4xf32>, vector<4x512xf32>, vector<4x512xf32> -> vector<4x512xf32>
    %240 = arith.addf %231, %239 : vector<4x512xf32>
    %c4_140 = arith.constant 4 : index
    %c0_141 = arith.constant 0 : index
    %241 = vector.load %arg4[%c4_140, %c0_141] : memref<36x4xf32, #tpu.memory_space<vmem>>, vector<4x4xf32>
    %cst_142 = arith.constant dense<0.000000e+00> : vector<4x512xf32>
    %242 = tpu.matmul %241, %90, %cst_142 {dimension_numbers = #tpu.dot_dimension_numbers<[1], [0], [0], [1], [0, 0, 1, 1], [], []>} : vector<4x4xf32>, vector<4x512xf32>, vector<4x512xf32> -> vector<4x512xf32>
    %243 = arith.addf %240, %242 : vector<4x512xf32>
    %c8_143 = arith.constant 8 : index
    %c0_144 = arith.constant 0 : index
    %244 = vector.load %arg4[%c8_143, %c0_144] : memref<36x4xf32, #tpu.memory_space<vmem>>, vector<4x4xf32>
    %cst_145 = arith.constant dense<0.000000e+00> : vector<4x512xf32>
    %245 = tpu.matmul %244, %94, %cst_145 {dimension_numbers = #tpu.dot_dimension_numbers<[1], [0], [0], [1], [0, 0, 1, 1], [], []>} : vector<4x4xf32>, vector<4x512xf32>, vector<4x512xf32> -> vector<4x512xf32>
    %246 = arith.addf %243, %245 : vector<4x512xf32>
    %c12_146 = arith.constant 12 : index
    %c0_147 = arith.constant 0 : index
    %247 = vector.load %arg4[%c12_146, %c0_147] : memref<36x4xf32, #tpu.memory_space<vmem>>, vector<4x4xf32>
    %248 = vector.extract_strided_slice %102 {offsets = [0, 511], sizes = [4, 1], strides = [1, 1]} : vector<4x512xf32> to vector<4x1xf32>
    %249 = vector.extract_strided_slice %102 {offsets = [0, 0], sizes = [4, 511], strides = [1, 1]} : vector<4x512xf32> to vector<4x511xf32>
    %250 = tpu.concatenate %248, %249 in 1 : vector<4x1xf32>, vector<4x511xf32> -> vector<4x512xf32>
    %c3_148 = arith.constant 3 : index
    %c0_149 = arith.constant 0 : index
    %251 = vector.load %arg8[%c3_148, %c0_149] : memref<9x512xf32, #tpu.memory_space<vmem>>, vector<1x512xf32>
    %252 = vector.broadcast %251 : vector<1x512xf32> to vector<4x512xf32>
    %253 = arith.mulf %250, %252 : vector<4x512xf32>
    %cst_150 = arith.constant dense<0.000000e+00> : vector<4x512xf32>
    %254 = tpu.matmul %247, %253, %cst_150 {dimension_numbers = #tpu.dot_dimension_numbers<[1], [0], [0], [1], [0, 0, 1, 1], [], []>} : vector<4x4xf32>, vector<4x512xf32>, vector<4x512xf32> -> vector<4x512xf32>
    %255 = arith.addf %246, %254 : vector<4x512xf32>
    %c16_151 = arith.constant 16 : index
    %c0_152 = arith.constant 0 : index
    %256 = vector.load %arg4[%c16_151, %c0_152] : memref<36x4xf32, #tpu.memory_space<vmem>>, vector<4x4xf32>
    %cst_153 = arith.constant dense<0.000000e+00> : vector<4x512xf32>
    %257 = tpu.matmul %256, %98, %cst_153 {dimension_numbers = #tpu.dot_dimension_numbers<[1], [0], [0], [1], [0, 0, 1, 1], [], []>} : vector<4x4xf32>, vector<4x512xf32>, vector<4x512xf32> -> vector<4x512xf32>
    %258 = arith.addf %255, %257 : vector<4x512xf32>
    %c20_154 = arith.constant 20 : index
    %c0_155 = arith.constant 0 : index
    %259 = vector.load %arg4[%c20_154, %c0_155] : memref<36x4xf32, #tpu.memory_space<vmem>>, vector<4x4xf32>
    %cst_156 = arith.constant dense<0.000000e+00> : vector<4x512xf32>
    %260 = tpu.matmul %259, %102, %cst_156 {dimension_numbers = #tpu.dot_dimension_numbers<[1], [0], [0], [1], [0, 0, 1, 1], [], []>} : vector<4x4xf32>, vector<4x512xf32>, vector<4x512xf32> -> vector<4x512xf32>
    %261 = arith.addf %258, %260 : vector<4x512xf32>
    %c24_157 = arith.constant 24 : index
    %c0_158 = arith.constant 0 : index
    %262 = vector.load %arg4[%c24_157, %c0_158] : memref<36x4xf32, #tpu.memory_space<vmem>>, vector<4x4xf32>
    %263 = vector.extract_strided_slice %94 {offsets = [0, 15], sizes = [4, 497], strides = [1, 1]} : vector<4x512xf32> to vector<4x497xf32>
    %264 = vector.extract_strided_slice %94 {offsets = [0, 0], sizes = [4, 15], strides = [1, 1]} : vector<4x512xf32> to vector<4x15xf32>
    %265 = tpu.concatenate %263, %264 in 1 : vector<4x497xf32>, vector<4x15xf32> -> vector<4x512xf32>
    %c6 = arith.constant 6 : index
    %c0_159 = arith.constant 0 : index
    %266 = vector.load %arg8[%c6, %c0_159] : memref<9x512xf32, #tpu.memory_space<vmem>>, vector<1x512xf32>
    %267 = vector.broadcast %266 : vector<1x512xf32> to vector<4x512xf32>
    %268 = arith.mulf %265, %267 : vector<4x512xf32>
    %cst_160 = arith.constant dense<0.000000e+00> : vector<4x512xf32>
    %269 = tpu.matmul %262, %268, %cst_160 {dimension_numbers = #tpu.dot_dimension_numbers<[1], [0], [0], [1], [0, 0, 1, 1], [], []>} : vector<4x4xf32>, vector<4x512xf32>, vector<4x512xf32> -> vector<4x512xf32>
    %270 = arith.addf %261, %269 : vector<4x512xf32>
    %c28_161 = arith.constant 28 : index
    %c0_162 = arith.constant 0 : index
    %271 = vector.load %arg4[%c28_161, %c0_162] : memref<36x4xf32, #tpu.memory_space<vmem>>, vector<4x4xf32>
    %272 = vector.extract_strided_slice %90 {offsets = [0, 16], sizes = [4, 496], strides = [1, 1]} : vector<4x512xf32> to vector<4x496xf32>
    %273 = vector.extract_strided_slice %90 {offsets = [0, 0], sizes = [4, 16], strides = [1, 1]} : vector<4x512xf32> to vector<4x16xf32>
    %274 = tpu.concatenate %272, %273 in 1 : vector<4x496xf32>, vector<4x16xf32> -> vector<4x512xf32>
    %c7 = arith.constant 7 : index
    %c0_163 = arith.constant 0 : index
    %275 = vector.load %arg8[%c7, %c0_163] : memref<9x512xf32, #tpu.memory_space<vmem>>, vector<1x512xf32>
    %276 = vector.broadcast %275 : vector<1x512xf32> to vector<4x512xf32>
    %277 = arith.mulf %274, %276 : vector<4x512xf32>
    %cst_164 = arith.constant dense<0.000000e+00> : vector<4x512xf32>
    %278 = tpu.matmul %271, %277, %cst_164 {dimension_numbers = #tpu.dot_dimension_numbers<[1], [0], [0], [1], [0, 0, 1, 1], [], []>} : vector<4x4xf32>, vector<4x512xf32>, vector<4x512xf32> -> vector<4x512xf32>
    %279 = arith.addf %270, %278 : vector<4x512xf32>
    %c32_165 = arith.constant 32 : index
    %c0_166 = arith.constant 0 : index
    %280 = vector.load %arg4[%c32_165, %c0_166] : memref<36x4xf32, #tpu.memory_space<vmem>>, vector<4x4xf32>
    %281 = vector.extract_strided_slice %94 {offsets = [0, 16], sizes = [4, 496], strides = [1, 1]} : vector<4x512xf32> to vector<4x496xf32>
    %282 = vector.extract_strided_slice %94 {offsets = [0, 0], sizes = [4, 16], strides = [1, 1]} : vector<4x512xf32> to vector<4x16xf32>
    %283 = tpu.concatenate %281, %282 in 1 : vector<4x496xf32>, vector<4x16xf32> -> vector<4x512xf32>
    %c7_167 = arith.constant 7 : index
    %c0_168 = arith.constant 0 : index
    %284 = vector.load %arg8[%c7_167, %c0_168] : memref<9x512xf32, #tpu.memory_space<vmem>>, vector<1x512xf32>
    %285 = vector.broadcast %284 : vector<1x512xf32> to vector<4x512xf32>
    %286 = arith.mulf %283, %285 : vector<4x512xf32>
    %cst_169 = arith.constant dense<0.000000e+00> : vector<4x512xf32>
    %287 = tpu.matmul %280, %286, %cst_169 {dimension_numbers = #tpu.dot_dimension_numbers<[1], [0], [0], [1], [0, 0, 1, 1], [], []>} : vector<4x4xf32>, vector<4x512xf32>, vector<4x512xf32> -> vector<4x512xf32>
    %288 = arith.addf %279, %287 : vector<4x512xf32>
    %c2_170 = arith.constant 2 : index
    %c0_171 = arith.constant 0 : index
    %c0_172 = arith.constant 0 : index
    %289 = vector.load %arg9[%c2_170, %c0_171, %c0_172] : memref<4x4x512xf32, #tpu.memory_space<vmem>>, vector<1x4x512xf32>
    %290 = vector.shape_cast %289 : vector<1x4x512xf32> to vector<4x512xf32>
    %291 = vector.shape_cast %288 : vector<4x512xf32> to vector<1x4x512xf32>
    tpu.vector_store %arg9[%c2_170, %c0_171, %c0_172], %291 {strides = array<i32>} : memref<4x4x512xf32, #tpu.memory_space<vmem>>, vector<1x4x512xf32>,
    %c0_173 = arith.constant 0 : index
    %c0_174 = arith.constant 0 : index
    %292 = vector.load %arg5[%c0_173, %c0_174] : memref<4x1xf32, #tpu.memory_space<vmem>>, vector<4x1xf32>
    %293 = vector.broadcast %292 : vector<4x1xf32> to vector<4x512xf32>
    %294 = arith.addf %40, %293 : vector<4x512xf32>
    %c0_175 = arith.constant 0 : index
    %c0_176 = arith.constant 0 : index
    %295 = vector.load %arg4[%c0_175, %c0_176] : memref<36x4xf32, #tpu.memory_space<vmem>>, vector<4x4xf32>
    %cst_177 = arith.constant dense<0.000000e+00> : vector<4x512xf32>
    %296 = tpu.matmul %295, %90, %cst_177 {dimension_numbers = #tpu.dot_dimension_numbers<[1], [0], [0], [1], [0, 0, 1, 1], [], []>} : vector<4x4xf32>, vector<4x512xf32>, vector<4x512xf32> -> vector<4x512xf32>
    %297 = arith.addf %294, %296 : vector<4x512xf32>
    %c4_178 = arith.constant 4 : index
    %c0_179 = arith.constant 0 : index
    %298 = vector.load %arg4[%c4_178, %c0_179] : memref<36x4xf32, #tpu.memory_space<vmem>>, vector<4x4xf32>
    %cst_180 = arith.constant dense<0.000000e+00> : vector<4x512xf32>
    %299 = tpu.matmul %298, %94, %cst_180 {dimension_numbers = #tpu.dot_dimension_numbers<[1], [0], [0], [1], [0, 0, 1, 1], [], []>} : vector<4x4xf32>, vector<4x512xf32>, vector<4x512xf32> -> vector<4x512xf32>
    %300 = arith.addf %297, %299 : vector<4x512xf32>
    %c8_181 = arith.constant 8 : index
    %c0_182 = arith.constant 0 : index
    %301 = vector.load %arg4[%c8_181, %c0_182] : memref<36x4xf32, #tpu.memory_space<vmem>>, vector<4x4xf32>
    %302 = vector.extract_strided_slice %90 {offsets = [0, 1], sizes = [4, 511], strides = [1, 1]} : vector<4x512xf32> to vector<4x511xf32>
    %303 = vector.extract_strided_slice %90 {offsets = [0, 0], sizes = [4, 1], strides = [1, 1]} : vector<4x512xf32> to vector<4x1xf32>
    %304 = tpu.concatenate %302, %303 in 1 : vector<4x511xf32>, vector<4x1xf32> -> vector<4x512xf32>
    %c5_183 = arith.constant 5 : index
    %c0_184 = arith.constant 0 : index
    %305 = vector.load %arg8[%c5_183, %c0_184] : memref<9x512xf32, #tpu.memory_space<vmem>>, vector<1x512xf32>
    %306 = vector.broadcast %305 : vector<1x512xf32> to vector<4x512xf32>
    %307 = arith.mulf %304, %306 : vector<4x512xf32>
    %cst_185 = arith.constant dense<0.000000e+00> : vector<4x512xf32>
    %308 = tpu.matmul %301, %307, %cst_185 {dimension_numbers = #tpu.dot_dimension_numbers<[1], [0], [0], [1], [0, 0, 1, 1], [], []>} : vector<4x4xf32>, vector<4x512xf32>, vector<4x512xf32> -> vector<4x512xf32>
    %309 = arith.addf %300, %308 : vector<4x512xf32>
    %c12_186 = arith.constant 12 : index
    %c0_187 = arith.constant 0 : index
    %310 = vector.load %arg4[%c12_186, %c0_187] : memref<36x4xf32, #tpu.memory_space<vmem>>, vector<4x4xf32>
    %cst_188 = arith.constant dense<0.000000e+00> : vector<4x512xf32>
    %311 = tpu.matmul %310, %98, %cst_188 {dimension_numbers = #tpu.dot_dimension_numbers<[1], [0], [0], [1], [0, 0, 1, 1], [], []>} : vector<4x4xf32>, vector<4x512xf32>, vector<4x512xf32> -> vector<4x512xf32>
    %312 = arith.addf %309, %311 : vector<4x512xf32>
    %c16_189 = arith.constant 16 : index
    %c0_190 = arith.constant 0 : index
    %313 = vector.load %arg4[%c16_189, %c0_190] : memref<36x4xf32, #tpu.memory_space<vmem>>, vector<4x4xf32>
    %cst_191 = arith.constant dense<0.000000e+00> : vector<4x512xf32>
    %314 = tpu.matmul %313, %102, %cst_191 {dimension_numbers = #tpu.dot_dimension_numbers<[1], [0], [0], [1], [0, 0, 1, 1], [], []>} : vector<4x4xf32>, vector<4x512xf32>, vector<4x512xf32> -> vector<4x512xf32>
    %315 = arith.addf %312, %314 : vector<4x512xf32>
    %c20_192 = arith.constant 20 : index
    %c0_193 = arith.constant 0 : index
    %316 = vector.load %arg4[%c20_192, %c0_193] : memref<36x4xf32, #tpu.memory_space<vmem>>, vector<4x4xf32>
    %317 = vector.extract_strided_slice %98 {offsets = [0, 1], sizes = [4, 511], strides = [1, 1]} : vector<4x512xf32> to vector<4x511xf32>
    %318 = vector.extract_strided_slice %98 {offsets = [0, 0], sizes = [4, 1], strides = [1, 1]} : vector<4x512xf32> to vector<4x1xf32>
    %319 = tpu.concatenate %317, %318 in 1 : vector<4x511xf32>, vector<4x1xf32> -> vector<4x512xf32>
    %c5_194 = arith.constant 5 : index
    %c0_195 = arith.constant 0 : index
    %320 = vector.load %arg8[%c5_194, %c0_195] : memref<9x512xf32, #tpu.memory_space<vmem>>, vector<1x512xf32>
    %321 = vector.broadcast %320 : vector<1x512xf32> to vector<4x512xf32>
    %322 = arith.mulf %319, %321 : vector<4x512xf32>
    %cst_196 = arith.constant dense<0.000000e+00> : vector<4x512xf32>
    %323 = tpu.matmul %316, %322, %cst_196 {dimension_numbers = #tpu.dot_dimension_numbers<[1], [0], [0], [1], [0, 0, 1, 1], [], []>} : vector<4x4xf32>, vector<4x512xf32>, vector<4x512xf32> -> vector<4x512xf32>
    %324 = arith.addf %315, %323 : vector<4x512xf32>
    %c24_197 = arith.constant 24 : index
    %c0_198 = arith.constant 0 : index
    %325 = vector.load %arg4[%c24_197, %c0_198] : memref<36x4xf32, #tpu.memory_space<vmem>>, vector<4x4xf32>
    %326 = vector.extract_strided_slice %90 {offsets = [0, 16], sizes = [4, 496], strides = [1, 1]} : vector<4x512xf32> to vector<4x496xf32>
    %327 = vector.extract_strided_slice %90 {offsets = [0, 0], sizes = [4, 16], strides = [1, 1]} : vector<4x512xf32> to vector<4x16xf32>
    %328 = tpu.concatenate %326, %327 in 1 : vector<4x496xf32>, vector<4x16xf32> -> vector<4x512xf32>
    %c7_199 = arith.constant 7 : index
    %c0_200 = arith.constant 0 : index
    %329 = vector.load %arg8[%c7_199, %c0_200] : memref<9x512xf32, #tpu.memory_space<vmem>>, vector<1x512xf32>
    %330 = vector.broadcast %329 : vector<1x512xf32> to vector<4x512xf32>
    %331 = arith.mulf %328, %330 : vector<4x512xf32>
    %cst_201 = arith.constant dense<0.000000e+00> : vector<4x512xf32>
    %332 = tpu.matmul %325, %331, %cst_201 {dimension_numbers = #tpu.dot_dimension_numbers<[1], [0], [0], [1], [0, 0, 1, 1], [], []>} : vector<4x4xf32>, vector<4x512xf32>, vector<4x512xf32> -> vector<4x512xf32>
    %333 = arith.addf %324, %332 : vector<4x512xf32>
    %c28_202 = arith.constant 28 : index
    %c0_203 = arith.constant 0 : index
    %334 = vector.load %arg4[%c28_202, %c0_203] : memref<36x4xf32, #tpu.memory_space<vmem>>, vector<4x4xf32>
    %335 = vector.extract_strided_slice %94 {offsets = [0, 16], sizes = [4, 496], strides = [1, 1]} : vector<4x512xf32> to vector<4x496xf32>
    %336 = vector.extract_strided_slice %94 {offsets = [0, 0], sizes = [4, 16], strides = [1, 1]} : vector<4x512xf32> to vector<4x16xf32>
    %337 = tpu.concatenate %335, %336 in 1 : vector<4x496xf32>, vector<4x16xf32> -> vector<4x512xf32>
    %c7_204 = arith.constant 7 : index
    %c0_205 = arith.constant 0 : index
    %338 = vector.load %arg8[%c7_204, %c0_205] : memref<9x512xf32, #tpu.memory_space<vmem>>, vector<1x512xf32>
    %339 = vector.broadcast %338 : vector<1x512xf32> to vector<4x512xf32>
    %340 = arith.mulf %337, %339 : vector<4x512xf32>
    %cst_206 = arith.constant dense<0.000000e+00> : vector<4x512xf32>
    %341 = tpu.matmul %334, %340, %cst_206 {dimension_numbers = #tpu.dot_dimension_numbers<[1], [0], [0], [1], [0, 0, 1, 1], [], []>} : vector<4x4xf32>, vector<4x512xf32>, vector<4x512xf32> -> vector<4x512xf32>
    %342 = arith.addf %333, %341 : vector<4x512xf32>
    %c32_207 = arith.constant 32 : index
    %c0_208 = arith.constant 0 : index
    %343 = vector.load %arg4[%c32_207, %c0_208] : memref<36x4xf32, #tpu.memory_space<vmem>>, vector<4x4xf32>
    %344 = vector.extract_strided_slice %90 {offsets = [0, 17], sizes = [4, 495], strides = [1, 1]} : vector<4x512xf32> to vector<4x495xf32>
    %345 = vector.extract_strided_slice %90 {offsets = [0, 0], sizes = [4, 17], strides = [1, 1]} : vector<4x512xf32> to vector<4x17xf32>
    %346 = tpu.concatenate %344, %345 in 1 : vector<4x495xf32>, vector<4x17xf32> -> vector<4x512xf32>
    %c8_209 = arith.constant 8 : index
    %c0_210 = arith.constant 0 : index
    %347 = vector.load %arg8[%c8_209, %c0_210] : memref<9x512xf32, #tpu.memory_space<vmem>>, vector<1x512xf32>
    %348 = vector.broadcast %347 : vector<1x512xf32> to vector<4x512xf32>
    %349 = arith.mulf %346, %348 : vector<4x512xf32>
    %cst_211 = arith.constant dense<0.000000e+00> : vector<4x512xf32>
    %350 = tpu.matmul %343, %349, %cst_211 {dimension_numbers = #tpu.dot_dimension_numbers<[1], [0], [0], [1], [0, 0, 1, 1], [], []>} : vector<4x4xf32>, vector<4x512xf32>, vector<4x512xf32> -> vector<4x512xf32>
    %351 = arith.addf %342, %350 : vector<4x512xf32>
    %c3_212 = arith.constant 3 : index
    %c0_213 = arith.constant 0 : index
    %c0_214 = arith.constant 0 : index
    %352 = vector.load %arg9[%c3_212, %c0_213, %c0_214] : memref<4x4x512xf32, #tpu.memory_space<vmem>>, vector<1x4x512xf32>
    %353 = vector.shape_cast %352 : vector<1x4x512xf32> to vector<4x512xf32>
    %354 = vector.shape_cast %351 : vector<4x512xf32> to vector<1x4x512xf32>
    tpu.vector_store %arg9[%c3_212, %c0_213, %c0_214], %354 {strides = array<i32>} : memref<4x4x512xf32, #tpu.memory_space<vmem>>, vector<1x4x512xf32>,
    return
  }
}

</mosaic_0001>

<llo_original>
// kernel: optimized_g_block_forward.1
$region0: #{optimized_g_block_forward.1}
  #allocation0 [shape = 'u32[]', space=smem, size = 0x4, offset = 0x4, fixed_abs, tag = 'smem constant byte address 0x4 - core index']
  #allocation1 [shape = 'u32[72,128]{1,0:T(1,128)}', space=vmem, size = 0x9000, scoped, tag = 'internal scratch']
  %s0 = inlined_call_operand.vmem [shape: f32[16,512], index: 0, kind: input, shape index: {}]
  %s1 = inlined_call_operand.vmem [shape: f32[32,16], index: 1, kind: input, shape index: {}]
  %s2 = inlined_call_operand.vmem [shape: f32[4,1], index: 2, kind: input, shape index: {}]
  %s3 = inlined_call_operand.vmem [shape: f32[4,1], index: 3, kind: input, shape index: {}]
  %s4 = inlined_call_operand.vmem [shape: f32[36,4], index: 4, kind: input, shape index: {}]
  %s5 = inlined_call_operand.vmem [shape: f32[4,1], index: 5, kind: input, shape index: {}]
  %s6 = inlined_call_operand.vmem [shape: f32[4,512], index: 6, kind: input, shape index: {}]
  %s7 = inlined_call_operand.vmem [shape: f32[4,512], index: 7, kind: input, shape index: {}]
  %s8 = inlined_call_operand.vmem [shape: f32[9,512], index: 8, kind: input, shape index: {}]
  %s9 = inlined_call_operand.vmem [shape: f32[4,4,512], index: 9, kind: output, shape index: {}]
  %s10 = sld [smem:[#allocation0]]
  $region46: #{optimized_g_block_forward.1} parent=0
    _
  %s12 = ssub.s32 1, %s10
  %s13 = scalar_select 0, %s12, %s10
  // Predicated region
  $region2: #{optimized_g_block_forward.1} parent=0 // pred_check
    _
  $region3: #{optimized_g_block_forward.1} parent=0 // pred_check_branch
    %15 = sbr.rel (0) target = $region5
  $region4: #{optimized_g_block_forward.1} parent=0 // pred_region
    _
  $region5: #{optimized_g_block_forward.1} parent=0 // pred_fallthru
    _
  // Predicated region
  $region6: #{optimized_g_block_forward.1} parent=0 // pred_check
    _
  $region7: #{optimized_g_block_forward.1} parent=0 // pred_check_branch
    %17 = sbr.rel (0) target = $region9
  $region8: #{optimized_g_block_forward.1} parent=0 // pred_region
    _
  $region9: #{optimized_g_block_forward.1} parent=0 // pred_fallthru
    _
  // Predicated region
  $region10: #{optimized_g_block_forward.1} parent=0 // pred_check
    _
  $region11: #{optimized_g_block_forward.1} parent=0 // pred_check_branch
    %19 = sbr.rel (0) target = $region13
  $region12: #{optimized_g_block_forward.1} parent=0 // pred_region
    _
  $region13: #{optimized_g_block_forward.1} parent=0 // pred_fallthru
    _
  // Predicated region
  $region14: #{optimized_g_block_forward.1} parent=0 // pred_check
    _
  $region15: #{optimized_g_block_forward.1} parent=0 // pred_check_branch
    %21 = sbr.rel (0) target = $region17
  $region16: #{optimized_g_block_forward.1} parent=0 // pred_region
    _
  $region17: #{optimized_g_block_forward.1} parent=0 // pred_fallthru
    _
  // Predicated region
  $region18: #{optimized_g_block_forward.1} parent=0 // pred_check
    _
  $region19: #{optimized_g_block_forward.1} parent=0 // pred_check_branch
    %23 = sbr.rel (0) target = $region21
  $region20: #{optimized_g_block_forward.1} parent=0 // pred_region
    _
  $region21: #{optimized_g_block_forward.1} parent=0 // pred_fallthru
    _
  // Predicated region
  $region22: #{optimized_g_block_forward.1} parent=0 // pred_check
    _
  $region23: #{optimized_g_block_forward.1} parent=0 // pred_check_branch
    %25 = sbr.rel (0) target = $region25
  $region24: #{optimized_g_block_forward.1} parent=0 // pred_region
    _
  $region25: #{optimized_g_block_forward.1} parent=0 // pred_fallthru
    _
  // Predicated region
  $region26: #{optimized_g_block_forward.1} parent=0 // pred_check
    _
  $region27: #{optimized_g_block_forward.1} parent=0 // pred_check_branch
    %27 = sbr.rel (0) target = $region29
  $region28: #{optimized_g_block_forward.1} parent=0 // pred_region
    _
  $region29: #{optimized_g_block_forward.1} parent=0 // pred_fallthru
    _
  // Predicated region
  $region30: #{optimized_g_block_forward.1} parent=0 // pred_check
    _
  $region31: #{optimized_g_block_forward.1} parent=0 // pred_check_branch
    %29 = sbr.rel (0) target = $region33
  $region32: #{optimized_g_block_forward.1} parent=0 // pred_region
    _
  $region33: #{optimized_g_block_forward.1} parent=0 // pred_fallthru
    _
  // Predicated region
  $region34: #{optimized_g_block_forward.1} parent=0 // pred_check
    _
  $region35: #{optimized_g_block_forward.1} parent=0 // pred_check_branch
    %31 = sbr.rel (0) target = $region37
  $region36: #{optimized_g_block_forward.1} parent=0 // pred_region
    _
  $region37: #{optimized_g_block_forward.1} parent=0 // pred_fallthru
    _
  %v32 = vld [vmem:[%s0] sm:$0xff]
  %v33 = vld [vmem:[%s0 + $0x8] sm:$0xff]
  %v34 = vld [vmem:[%s0 + $0x10] sm:$0xff]
  %v35 = vld [vmem:[%s0 + $0x18] sm:$0xff]
  %v36 = vld [vmem:[%s0 + $0x20] sm:$0xff]
  %v37 = vld [vmem:[%s0 + $0x28] sm:$0xff]
  %v38 = vld [vmem:[%s0 + $0x30] sm:$0xff]
  %v39 = vld [vmem:[%s0 + $0x38] sm:$0xff]
  %v40 = vld [vmem:[%s1] sm:$0xf]
  %v41 = vld [vmem:[%s1 + $0x4] sm:$0xf]
  %v42 = vld [vmem:[%s1 + $0x8] sm:$0xf]
  %v43 = vld [vmem:[%s1 + $0xc] sm:$0xf]
  %v44 = vld [vmem:[%s1 + $0x10] sm:$0xf]
  %v45 = vld [vmem:[%s1 + $0x14] sm:$0xf]
  %v46 = vld [vmem:[%s1 + $0x18] sm:$0xf]
  %v47 = vld [vmem:[%s1 + $0x1c] sm:$0xf]
  %v48 = vld [vmem:[%s2] sm:$0xf]
  %50 = vset.pattern.permute.xlu0 0
  %51 = vperm.xlu0 %50, %v48
  %v52 = vpop.permute.xlu0 %51
  %vm54 = vcmask 130048
  %v56 = vsel %vm54, %v40, 0
  %58 = vmatpush.msra.mxu0 0.0
  %59 = vmatpush.msra.mxu0 0.0
  %60 = vmatpush.msra.mxu0 0.0
  %61 = vmatpush.msra.mxu0 0.0
  %62 = vmatpush.msra.mxu0 0.0
  %63 = vmatpush.msra.mxu0 0.0
  %64 = vmatpush.msra.mxu0 0.0
  %65 = vmatpush.msra.mxu0 0.0
  %66 = vmatpush.msra.mxu0 0.0
  %67 = vmatpush.msra.mxu0 0.0
  %68 = vmatpush.msra.mxu0 0.0
  %69 = vmatpush.msra.mxu0 0.0
  %70 = vmatpush.msra.mxu0 0.0
  %71 = vmatpush.msra.mxu0 0.0
  %72 = vmatpush.msra.mxu0 %v36
  %73 = vmatpush.msra.mxu0 %v32
  %74 = vmatmul.f32.gmra.mxu0 %v56
  %v75 = vpop.f32.mrf.mxu0
  %v76 = vadd.f32 %v52, %v75
  %77 = vdwg.mxu0
  %78 = vmatpush.msra.mxu0 0.0
  %79 = vmatpush.msra.mxu0 0.0
  %80 = vmatpush.msra.mxu0 0.0
  %81 = vmatpush.msra.mxu0 0.0
  %82 = vmatpush.msra.mxu0 0.0
  %83 = vmatpush.msra.mxu0 0.0
  %84 = vmatpush.msra.mxu0 0.0
  %85 = vmatpush.msra.mxu0 0.0
  %86 = vmatpush.msra.mxu0 0.0
  %87 = vmatpush.msra.mxu0 0.0
  %88 = vmatpush.msra.mxu0 0.0
  %89 = vmatpush.msra.mxu0 0.0
  %90 = vmatpush.msra.mxu0 0.0
  %91 = vmatpush.msra.mxu0 0.0
  %92 = vmatpush.msra.mxu0 %v37
  %93 = vmatpush.msra.mxu0 %v33
  %94 = vmatmul.f32.gmra.mxu0 %v56
  %v95 = vpop.f32.mrf.mxu0
  %v96 = vadd.f32 %v52, %v95
  %97 = vdwg.mxu0
  %98 = vmatpush.msra.mxu0 0.0
  %99 = vmatpush.msra.mxu0 0.0
  %100 = vmatpush.msra.mxu0 0.0
  %101 = vmatpush.msra.mxu0 0.0
  %102 = vmatpush.msra.mxu0 0.0
  %103 = vmatpush.msra.mxu0 0.0
  %104 = vmatpush.msra.mxu0 0.0
  %105 = vmatpush.msra.mxu0 0.0
  %106 = vmatpush.msra.mxu0 0.0
  %107 = vmatpush.msra.mxu0 0.0
  %108 = vmatpush.msra.mxu0 0.0
  %109 = vmatpush.msra.mxu0 0.0
  %110 = vmatpush.msra.mxu0 0.0
  %111 = vmatpush.msra.mxu0 0.0
  %112 = vmatpush.msra.mxu0 %v38
  %113 = vmatpush.msra.mxu0 %v34
  %114 = vmatmul.f32.gmra.mxu0 %v56
  %v115 = vpop.f32.mrf.mxu0
  %v116 = vadd.f32 %v52, %v115
  %117 = vdwg.mxu0
  %118 = vmatpush.msra.mxu0 0.0
  %119 = vmatpush.msra.mxu0 0.0
  %120 = vmatpush.msra.mxu0 0.0
  %121 = vmatpush.msra.mxu0 0.0
  %122 = vmatpush.msra.mxu0 0.0
  %123 = vmatpush.msra.mxu0 0.0
  %124 = vmatpush.msra.mxu0 0.0
  %125 = vmatpush.msra.mxu0 0.0
  %126 = vmatpush.msra.mxu0 0.0
  %127 = vmatpush.msra.mxu0 0.0
  %128 = vmatpush.msra.mxu0 0.0
  %129 = vmatpush.msra.mxu0 0.0
  %130 = vmatpush.msra.mxu0 0.0
  %131 = vmatpush.msra.mxu0 0.0
  %132 = vmatpush.msra.mxu0 %v39
  %133 = vmatpush.msra.mxu0 %v35
  %134 = vmatmul.f32.gmra.mxu0 %v56
  %v135 = vpop.f32.mrf.mxu0
  %v136 = vadd.f32 %v52, %v135
  %137 = vdwg.mxu0
  %v139 = vsel %vm54, %v41, 0
  %141 = vmatpush.msra.mxu0 0.0
  %142 = vmatpush.msra.mxu0 0.0
  %143 = vmatpush.msra.mxu0 0.0
  %144 = vmatpush.msra.mxu0 0.0
  %145 = vmatpush.msra.mxu0 0.0
  %146 = vmatpush.msra.mxu0 0.0
  %147 = vmatpush.msra.mxu0 0.0
  %148 = vmatpush.msra.mxu0 0.0
  %149 = vmatpush.msra.mxu0 0.0
  %150 = vmatpush.msra.mxu0 0.0
  %151 = vmatpush.msra.mxu0 0.0
  %152 = vmatpush.msra.mxu0 0.0
  %153 = vmatpush.msra.mxu0 0.0
  %154 = vmatpush.msra.mxu0 0.0
  %155 = vmatpush.msra.mxu0 %v36
  %156 = vmatpush.msra.mxu0 %v32
  %157 = vmatmul.f32.gmra.mxu0 %v139
  %v158 = vpop.f32.mrf.mxu0
  %v159 = vadd.f32 %v52, %v158
  %160 = vdwg.mxu0
  %161 = vmatpush.msra.mxu0 0.0
  %162 = vmatpush.msra.mxu0 0.0
  %163 = vmatpush.msra.mxu0 0.0
  %164 = vmatpush.msra.mxu0 0.0
  %165 = vmatpush.msra.mxu0 0.0
  %166 = vmatpush.msra.mxu0 0.0
  %167 = vmatpush.msra.mxu0 0.0
  %168 = vmatpush.msra.mxu0 0.0
  %169 = vmatpush.msra.mxu0 0.0
  %170 = vmatpush.msra.mxu0 0.0
  %171 = vmatpush.msra.mxu0 0.0
  %172 = vmatpush.msra.mxu0 0.0
  %173 = vmatpush.msra.mxu0 0.0
  %174 = vmatpush.msra.mxu0 0.0
  %175 = vmatpush.msra.mxu0 %v37
  %176 = vmatpush.msra.mxu0 %v33
  %177 = vmatmul.f32.gmra.mxu0 %v139
  %v178 = vpop.f32.mrf.mxu0
  %v179 = vadd.f32 %v52, %v178
  %180 = vdwg.mxu0
  %181 = vmatpush.msra.mxu0 0.0
  %182 = vmatpush.msra.mxu0 0.0
  %183 = vmatpush.msra.mxu0 0.0
  %184 = vmatpush.msra.mxu0 0.0
  %185 = vmatpush.msra.mxu0 0.0
  %186 = vmatpush.msra.mxu0 0.0
  %187 = vmatpush.msra.mxu0 0.0
  %188 = vmatpush.msra.mxu0 0.0
  %189 = vmatpush.msra.mxu0 0.0
  %190 = vmatpush.msra.mxu0 0.0
  %191 = vmatpush.msra.mxu0 0.0
  %192 = vmatpush.msra.mxu0 0.0
  %193 = vmatpush.msra.mxu0 0.0
  %194 = vmatpush.msra.mxu0 0.0
  %195 = vmatpush.msra.mxu0 %v38
  %196 = vmatpush.msra.mxu0 %v34
  %197 = vmatmul.f32.gmra.mxu0 %v139
  %v198 = vpop.f32.mrf.mxu0
  %v199 = vadd.f32 %v52, %v198
  %200 = vdwg.mxu0
  %201 = vmatpush.msra.mxu0 0.0
  %202 = vmatpush.msra.mxu0 0.0
  %203 = vmatpush.msra.mxu0 0.0
  %204 = vmatpush.msra.mxu0 0.0
  %205 = vmatpush.msra.mxu0 0.0
  %206 = vmatpush.msra.mxu0 0.0
  %207 = vmatpush.msra.mxu0 0.0
  %208 = vmatpush.msra.mxu0 0.0
  %209 = vmatpush.msra.mxu0 0.0
  %210 = vmatpush.msra.mxu0 0.0
  %211 = vmatpush.msra.mxu0 0.0
  %212 = vmatpush.msra.mxu0 0.0
  %213 = vmatpush.msra.mxu0 0.0
  %214 = vmatpush.msra.mxu0 0.0
  %215 = vmatpush.msra.mxu0 %v39
  %216 = vmatpush.msra.mxu0 %v35
  %217 = vmatmul.f32.gmra.mxu0 %v139
  %v218 = vpop.f32.mrf.mxu0
  %v219 = vadd.f32 %v52, %v218
  %220 = vdwg.mxu0
  %v222 = vsel %vm54, %v42, 0
  %224 = vmatpush.msra.mxu0 0.0
  %225 = vmatpush.msra.mxu0 0.0
  %226 = vmatpush.msra.mxu0 0.0
  %227 = vmatpush.msra.mxu0 0.0
  %228 = vmatpush.msra.mxu0 0.0
  %229 = vmatpush.msra.mxu0 0.0
  %230 = vmatpush.msra.mxu0 0.0
  %231 = vmatpush.msra.mxu0 0.0
  %232 = vmatpush.msra.mxu0 0.0
  %233 = vmatpush.msra.mxu0 0.0
  %234 = vmatpush.msra.mxu0 0.0
  %235 = vmatpush.msra.mxu0 0.0
  %236 = vmatpush.msra.mxu0 0.0
  %237 = vmatpush.msra.mxu0 0.0
  %238 = vmatpush.msra.mxu0 %v36
  %239 = vmatpush.msra.mxu0 %v32
  %240 = vmatmul.f32.gmra.mxu0 %v222
  %v241 = vpop.f32.mrf.mxu0
  %v242 = vadd.f32 %v52, %v241
  %243 = vdwg.mxu0
  %244 = vmatpush.msra.mxu0 0.0
  %245 = vmatpush.msra.mxu0 0.0
  %246 = vmatpush.msra.mxu0 0.0
  %247 = vmatpush.msra.mxu0 0.0
  %248 = vmatpush.msra.mxu0 0.0
  %249 = vmatpush.msra.mxu0 0.0
  %250 = vmatpush.msra.mxu0 0.0
  %251 = vmatpush.msra.mxu0 0.0
  %252 = vmatpush.msra.mxu0 0.0
  %253 = vmatpush.msra.mxu0 0.0
  %254 = vmatpush.msra.mxu0 0.0
  %255 = vmatpush.msra.mxu0 0.0
  %256 = vmatpush.msra.mxu0 0.0
  %257 = vmatpush.msra.mxu0 0.0
  %258 = vmatpush.msra.mxu0 %v37
  %259 = vmatpush.msra.mxu0 %v33
  %260 = vmatmul.f32.gmra.mxu0 %v222
  %v261 = vpop.f32.mrf.mxu0
  %v262 = vadd.f32 %v52, %v261
  %263 = vdwg.mxu0
  %264 = vmatpush.msra.mxu0 0.0
  %265 = vmatpush.msra.mxu0 0.0
  %266 = vmatpush.msra.mxu0 0.0
  %267 = vmatpush.msra.mxu0 0.0
  %268 = vmatpush.msra.mxu0 0.0
  %269 = vmatpush.msra.mxu0 0.0
  %270 = vmatpush.msra.mxu0 0.0
  %271 = vmatpush.msra.mxu0 0.0
  %272 = vmatpush.msra.mxu0 0.0
  %273 = vmatpush.msra.mxu0 0.0
  %274 = vmatpush.msra.mxu0 0.0
  %275 = vmatpush.msra.mxu0 0.0
  %276 = vmatpush.msra.mxu0 0.0
  %277 = vmatpush.msra.mxu0 0.0
  %278 = vmatpush.msra.mxu0 %v38
  %279 = vmatpush.msra.mxu0 %v34
  %280 = vmatmul.f32.gmra.mxu0 %v222
  %v281 = vpop.f32.mrf.mxu0
  %v282 = vadd.f32 %v52, %v281
  %283 = vdwg.mxu0
  %284 = vmatpush.msra.mxu0 0.0
  %285 = vmatpush.msra.mxu0 0.0
  %286 = vmatpush.msra.mxu0 0.0
  %287 = vmatpush.msra.mxu0 0.0
  %288 = vmatpush.msra.mxu0 0.0
  %289 = vmatpush.msra.mxu0 0.0
  %290 = vmatpush.msra.mxu0 0.0
  %291 = vmatpush.msra.mxu0 0.0
  %292 = vmatpush.msra.mxu0 0.0
  %293 = vmatpush.msra.mxu0 0.0
  %294 = vmatpush.msra.mxu0 0.0
  %295 = vmatpush.msra.mxu0 0.0
  %296 = vmatpush.msra.mxu0 0.0
  %297 = vmatpush.msra.mxu0 0.0
  %298 = vmatpush.msra.mxu0 %v39
  %299 = vmatpush.msra.mxu0 %v35
  %300 = vmatmul.f32.gmra.mxu0 %v222
  %v301 = vpop.f32.mrf.mxu0
  %v302 = vadd.f32 %v52, %v301
  %303 = vdwg.mxu0
  %v305 = vsel %vm54, %v43, 0
  %307 = vmatpush.msra.mxu0 0.0
  %308 = vmatpush.msra.mxu0 0.0
  %309 = vmatpush.msra.mxu0 0.0
  %310 = vmatpush.msra.mxu0 0.0
  %311 = vmatpush.msra.mxu0 0.0
  %312 = vmatpush.msra.mxu0 0.0
  %313 = vmatpush.msra.mxu0 0.0
  %314 = vmatpush.msra.mxu0 0.0
  %315 = vmatpush.msra.mxu0 0.0
  %316 = vmatpush.msra.mxu0 0.0
  %317 = vmatpush.msra.mxu0 0.0
  %318 = vmatpush.msra.mxu0 0.0
  %319 = vmatpush.msra.mxu0 0.0
  %320 = vmatpush.msra.mxu0 0.0
  %321 = vmatpush.msra.mxu0 %v36
  %322 = vmatpush.msra.mxu0 %v32
  %323 = vmatmul.f32.gmra.mxu0 %v305
  %v324 = vpop.f32.mrf.mxu0
  %v325 = vadd.f32 %v52, %v324
  %326 = vdwg.mxu0
  %327 = vmatpush.msra.mxu0 0.0
  %328 = vmatpush.msra.mxu0 0.0
  %329 = vmatpush.msra.mxu0 0.0
  %330 = vmatpush.msra.mxu0 0.0
  %331 = vmatpush.msra.mxu0 0.0
  %332 = vmatpush.msra.mxu0 0.0
  %333 = vmatpush.msra.mxu0 0.0
  %334 = vmatpush.msra.mxu0 0.0
  %335 = vmatpush.msra.mxu0 0.0
  %336 = vmatpush.msra.mxu0 0.0
  %337 = vmatpush.msra.mxu0 0.0
  %338 = vmatpush.msra.mxu0 0.0
  %339 = vmatpush.msra.mxu0 0.0
  %340 = vmatpush.msra.mxu0 0.0
  %341 = vmatpush.msra.mxu0 %v37
  %342 = vmatpush.msra.mxu0 %v33
  %343 = vmatmul.f32.gmra.mxu0 %v305
  %v344 = vpop.f32.mrf.mxu0
  %v345 = vadd.f32 %v52, %v344
  %346 = vdwg.mxu0
  %347 = vmatpush.msra.mxu0 0.0
  %348 = vmatpush.msra.mxu0 0.0
  %349 = vmatpush.msra.mxu0 0.0
  %350 = vmatpush.msra.mxu0 0.0
  %351 = vmatpush.msra.mxu0 0.0
  %352 = vmatpush.msra.mxu0 0.0
  %353 = vmatpush.msra.mxu0 0.0
  %354 = vmatpush.msra.mxu0 0.0
  %355 = vmatpush.msra.mxu0 0.0
  %356 = vmatpush.msra.mxu0 0.0
  %357 = vmatpush.msra.mxu0 0.0
  %358 = vmatpush.msra.mxu0 0.0
  %359 = vmatpush.msra.mxu0 0.0
  %360 = vmatpush.msra.mxu0 0.0
  %361 = vmatpush.msra.mxu0 %v38
  %362 = vmatpush.msra.mxu0 %v34
  %363 = vmatmul.f32.gmra.mxu0 %v305
  %v364 = vpop.f32.mrf.mxu0
  %v365 = vadd.f32 %v52, %v364
  %366 = vdwg.mxu0
  %367 = vmatpush.msra.mxu0 0.0
  %368 = vmatpush.msra.mxu0 0.0
  %369 = vmatpush.msra.mxu0 0.0
  %370 = vmatpush.msra.mxu0 0.0
  %371 = vmatpush.msra.mxu0 0.0
  %372 = vmatpush.msra.mxu0 0.0
  %373 = vmatpush.msra.mxu0 0.0
  %374 = vmatpush.msra.mxu0 0.0
  %375 = vmatpush.msra.mxu0 0.0
  %376 = vmatpush.msra.mxu0 0.0
  %377 = vmatpush.msra.mxu0 0.0
  %378 = vmatpush.msra.mxu0 0.0
  %379 = vmatpush.msra.mxu0 0.0
  %380 = vmatpush.msra.mxu0 0.0
  %381 = vmatpush.msra.mxu0 %v39
  %382 = vmatpush.msra.mxu0 %v35
  %383 = vmatmul.f32.gmra.mxu0 %v305
  %v384 = vpop.f32.mrf.mxu0
  %v385 = vadd.f32 %v52, %v384
  %386 = vdwg.mxu0
  %v387 = vld [vmem:[%s3] sm:$0xf]
  %389 = vset.pattern.permute.xlu0 0
  %390 = vperm.xlu0 %389, %v387
  %v391 = vpop.permute.xlu0 %390
  %v394 = vsel %vm54, %v44, 0
  %396 = vmatpush.msra.mxu0 0.0
  %397 = vmatpush.msra.mxu0 0.0
  %398 = vmatpush.msra.mxu0 0.0
  %399 = vmatpush.msra.mxu0 0.0
  %400 = vmatpush.msra.mxu0 0.0
  %401 = vmatpush.msra.mxu0 0.0
  %402 = vmatpush.msra.mxu0 0.0
  %403 = vmatpush.msra.mxu0 0.0
  %404 = vmatpush.msra.mxu0 0.0
  %405 = vmatpush.msra.mxu0 0.0
  %406 = vmatpush.msra.mxu0 0.0
  %407 = vmatpush.msra.mxu0 0.0
  %408 = vmatpush.msra.mxu0 0.0
  %409 = vmatpush.msra.mxu0 0.0
  %410 = vmatpush.msra.mxu0 %v36
  %411 = vmatpush.msra.mxu0 %v32
  %412 = vmatmul.f32.gmra.mxu0 %v394
  %v413 = vpop.f32.mrf.mxu0
  %v414 = vadd.f32 %v391, %v413
  %415 = vdwg.mxu0
  %416 = vmatpush.msra.mxu0 0.0
  %417 = vmatpush.msra.mxu0 0.0
  %418 = vmatpush.msra.mxu0 0.0
  %419 = vmatpush.msra.mxu0 0.0
  %420 = vmatpush.msra.mxu0 0.0
  %421 = vmatpush.msra.mxu0 0.0
  %422 = vmatpush.msra.mxu0 0.0
  %423 = vmatpush.msra.mxu0 0.0
  %424 = vmatpush.msra.mxu0 0.0
  %425 = vmatpush.msra.mxu0 0.0
  %426 = vmatpush.msra.mxu0 0.0
  %427 = vmatpush.msra.mxu0 0.0
  %428 = vmatpush.msra.mxu0 0.0
  %429 = vmatpush.msra.mxu0 0.0
  %430 = vmatpush.msra.mxu0 %v37
  %431 = vmatpush.msra.mxu0 %v33
  %432 = vmatmul.f32.gmra.mxu0 %v394
  %v433 = vpop.f32.mrf.mxu0
  %v434 = vadd.f32 %v391, %v433
  %435 = vdwg.mxu0
  %436 = vmatpush.msra.mxu0 0.0
  %437 = vmatpush.msra.mxu0 0.0
  %438 = vmatpush.msra.mxu0 0.0
  %439 = vmatpush.msra.mxu0 0.0
  %440 = vmatpush.msra.mxu0 0.0
  %441 = vmatpush.msra.mxu0 0.0
  %442 = vmatpush.msra.mxu0 0.0
  %443 = vmatpush.msra.mxu0 0.0
  %444 = vmatpush.msra.mxu0 0.0
  %445 = vmatpush.msra.mxu0 0.0
  %446 = vmatpush.msra.mxu0 0.0
  %447 = vmatpush.msra.mxu0 0.0
  %448 = vmatpush.msra.mxu0 0.0
  %449 = vmatpush.msra.mxu0 0.0
  %450 = vmatpush.msra.mxu0 %v38
  %451 = vmatpush.msra.mxu0 %v34
  %452 = vmatmul.f32.gmra.mxu0 %v394
  %v453 = vpop.f32.mrf.mxu0
  %v454 = vadd.f32 %v391, %v453
  %455 = vdwg.mxu0
  %456 = vmatpush.msra.mxu0 0.0
  %457 = vmatpush.msra.mxu0 0.0
  %458 = vmatpush.msra.mxu0 0.0
  %459 = vmatpush.msra.mxu0 0.0
  %460 = vmatpush.msra.mxu0 0.0
  %461 = vmatpush.msra.mxu0 0.0
  %462 = vmatpush.msra.mxu0 0.0
  %463 = vmatpush.msra.mxu0 0.0
  %464 = vmatpush.msra.mxu0 0.0
  %465 = vmatpush.msra.mxu0 0.0
  %466 = vmatpush.msra.mxu0 0.0
  %467 = vmatpush.msra.mxu0 0.0
  %468 = vmatpush.msra.mxu0 0.0
  %469 = vmatpush.msra.mxu0 0.0
  %470 = vmatpush.msra.mxu0 %v39
  %471 = vmatpush.msra.mxu0 %v35
  %472 = vmatmul.f32.gmra.mxu0 %v394
  %v473 = vpop.f32.mrf.mxu0
  %v474 = vadd.f32 %v391, %v473
  %475 = vdwg.mxu0
  %v477 = vsel %vm54, %v45, 0
  %479 = vmatpush.msra.mxu0 0.0
  %480 = vmatpush.msra.mxu0 0.0
  %481 = vmatpush.msra.mxu0 0.0
  %482 = vmatpush.msra.mxu0 0.0
  %483 = vmatpush.msra.mxu0 0.0
  %484 = vmatpush.msra.mxu0 0.0
  %485 = vmatpush.msra.mxu0 0.0
  %486 = vmatpush.msra.mxu0 0.0
  %487 = vmatpush.msra.mxu0 0.0
  %488 = vmatpush.msra.mxu0 0.0
  %489 = vmatpush.msra.mxu0 0.0
  %490 = vmatpush.msra.mxu0 0.0
  %491 = vmatpush.msra.mxu0 0.0
  %492 = vmatpush.msra.mxu0 0.0
  %493 = vmatpush.msra.mxu0 %v36
  %494 = vmatpush.msra.mxu0 %v32
  %495 = vmatmul.f32.gmra.mxu0 %v477
  %v496 = vpop.f32.mrf.mxu0
  %v497 = vadd.f32 %v391, %v496
  %498 = vdwg.mxu0
  %499 = vmatpush.msra.mxu0 0.0
  %500 = vmatpush.msra.mxu0 0.0
  %501 = vmatpush.msra.mxu0 0.0
  %502 = vmatpush.msra.mxu0 0.0
  %503 = vmatpush.msra.mxu0 0.0
  %504 = vmatpush.msra.mxu0 0.0
  %505 = vmatpush.msra.mxu0 0.0
  %506 = vmatpush.msra.mxu0 0.0
  %507 = vmatpush.msra.mxu0 0.0
  %508 = vmatpush.msra.mxu0 0.0
  %509 = vmatpush.msra.mxu0 0.0
  %510 = vmatpush.msra.mxu0 0.0
  %511 = vmatpush.msra.mxu0 0.0
  %512 = vmatpush.msra.mxu0 0.0
  %513 = vmatpush.msra.mxu0 %v37
  %514 = vmatpush.msra.mxu0 %v33
  %515 = vmatmul.f32.gmra.mxu0 %v477
  %v516 = vpop.f32.mrf.mxu0
  %v517 = vadd.f32 %v391, %v516
  %518 = vdwg.mxu0
  %519 = vmatpush.msra.mxu0 0.0
  %520 = vmatpush.msra.mxu0 0.0
  %521 = vmatpush.msra.mxu0 0.0
  %522 = vmatpush.msra.mxu0 0.0
  %523 = vmatpush.msra.mxu0 0.0
  %524 = vmatpush.msra.mxu0 0.0
  %525 = vmatpush.msra.mxu0 0.0
  %526 = vmatpush.msra.mxu0 0.0
  %527 = vmatpush.msra.mxu0 0.0
  %528 = vmatpush.msra.mxu0 0.0
  %529 = vmatpush.msra.mxu0 0.0
  %530 = vmatpush.msra.mxu0 0.0
  %531 = vmatpush.msra.mxu0 0.0
  %532 = vmatpush.msra.mxu0 0.0
  %533 = vmatpush.msra.mxu0 %v38
  %534 = vmatpush.msra.mxu0 %v34
  %535 = vmatmul.f32.gmra.mxu0 %v477
  %v536 = vpop.f32.mrf.mxu0
  %v537 = vadd.f32 %v391, %v536
  %538 = vdwg.mxu0
  %539 = vmatpush.msra.mxu0 0.0
  %540 = vmatpush.msra.mxu0 0.0
  %541 = vmatpush.msra.mxu0 0.0
  %542 = vmatpush.msra.mxu0 0.0
  %543 = vmatpush.msra.mxu0 0.0
  %544 = vmatpush.msra.mxu0 0.0
  %545 = vmatpush.msra.mxu0 0.0
  %546 = vmatpush.msra.mxu0 0.0
  %547 = vmatpush.msra.mxu0 0.0
  %548 = vmatpush.msra.mxu0 0.0
  %549 = vmatpush.msra.mxu0 0.0
  %550 = vmatpush.msra.mxu0 0.0
  %551 = vmatpush.msra.mxu0 0.0
  %552 = vmatpush.msra.mxu0 0.0
  %553 = vmatpush.msra.mxu0 %v39
  %554 = vmatpush.msra.mxu0 %v35
  %555 = vmatmul.f32.gmra.mxu0 %v477
  %v556 = vpop.f32.mrf.mxu0
  %v557 = vadd.f32 %v391, %v556
  %558 = vdwg.mxu0
  %v560 = vsel %vm54, %v46, 0
  %562 = vmatpush.msra.mxu0 0.0
  %563 = vmatpush.msra.mxu0 0.0
  %564 = vmatpush.msra.mxu0 0.0
  %565 = vmatpush.msra.mxu0 0.0
  %566 = vmatpush.msra.mxu0 0.0
  %567 = vmatpush.msra.mxu0 0.0
  %568 = vmatpush.msra.mxu0 0.0
  %569 = vmatpush.msra.mxu0 0.0
  %570 = vmatpush.msra.mxu0 0.0
  %571 = vmatpush.msra.mxu0 0.0
  %572 = vmatpush.msra.mxu0 0.0
  %573 = vmatpush.msra.mxu0 0.0
  %574 = vmatpush.msra.mxu0 0.0
  %575 = vmatpush.msra.mxu0 0.0
  %576 = vmatpush.msra.mxu0 %v36
  %577 = vmatpush.msra.mxu0 %v32
  %578 = vmatmul.f32.gmra.mxu0 %v560
  %v579 = vpop.f32.mrf.mxu0
  %v580 = vadd.f32 %v391, %v579
  %581 = vdwg.mxu0
  %582 = vmatpush.msra.mxu0 0.0
  %583 = vmatpush.msra.mxu0 0.0
  %584 = vmatpush.msra.mxu0 0.0
  %585 = vmatpush.msra.mxu0 0.0
  %586 = vmatpush.msra.mxu0 0.0
  %587 = vmatpush.msra.mxu0 0.0
  %588 = vmatpush.msra.mxu0 0.0
  %589 = vmatpush.msra.mxu0 0.0
  %590 = vmatpush.msra.mxu0 0.0
  %591 = vmatpush.msra.mxu0 0.0
  %592 = vmatpush.msra.mxu0 0.0
  %593 = vmatpush.msra.mxu0 0.0
  %594 = vmatpush.msra.mxu0 0.0
  %595 = vmatpush.msra.mxu0 0.0
  %596 = vmatpush.msra.mxu0 %v37
  %597 = vmatpush.msra.mxu0 %v33
  %598 = vmatmul.f32.gmra.mxu0 %v560
  %v599 = vpop.f32.mrf.mxu0
  %v600 = vadd.f32 %v391, %v599
  %601 = vdwg.mxu0
  %602 = vmatpush.msra.mxu0 0.0
  %603 = vmatpush.msra.mxu0 0.0
  %604 = vmatpush.msra.mxu0 0.0
  %605 = vmatpush.msra.mxu0 0.0
  %606 = vmatpush.msra.mxu0 0.0
  %607 = vmatpush.msra.mxu0 0.0
  %608 = vmatpush.msra.mxu0 0.0
  %609 = vmatpush.msra.mxu0 0.0
  %610 = vmatpush.msra.mxu0 0.0
  %611 = vmatpush.msra.mxu0 0.0
  %612 = vmatpush.msra.mxu0 0.0
  %613 = vmatpush.msra.mxu0 0.0
  %614 = vmatpush.msra.mxu0 0.0
  %615 = vmatpush.msra.mxu0 0.0
  %616 = vmatpush.msra.mxu0 %v38
  %617 = vmatpush.msra.mxu0 %v34
  %618 = vmatmul.f32.gmra.mxu0 %v560
  %v619 = vpop.f32.mrf.mxu0
  %v620 = vadd.f32 %v391, %v619
  %621 = vdwg.mxu0
  %622 = vmatpush.msra.mxu0 0.0
  %623 = vmatpush.msra.mxu0 0.0
  %624 = vmatpush.msra.mxu0 0.0
  %625 = vmatpush.msra.mxu0 0.0
  %626 = vmatpush.msra.mxu0 0.0
  %627 = vmatpush.msra.mxu0 0.0
  %628 = vmatpush.msra.mxu0 0.0
  %629 = vmatpush.msra.mxu0 0.0
  %630 = vmatpush.msra.mxu0 0.0
  %631 = vmatpush.msra.mxu0 0.0
  %632 = vmatpush.msra.mxu0 0.0
  %633 = vmatpush.msra.mxu0 0.0
  %634 = vmatpush.msra.mxu0 0.0
  %635 = vmatpush.msra.mxu0 0.0
  %636 = vmatpush.msra.mxu0 %v39
  %637 = vmatpush.msra.mxu0 %v35
  %638 = vmatmul.f32.gmra.mxu0 %v560
  %v639 = vpop.f32.mrf.mxu0
  %v640 = vadd.f32 %v391, %v639
  %641 = vdwg.mxu0
  %v643 = vsel %vm54, %v47, 0
  %645 = vmatpush.msra.mxu0 0.0
  %646 = vmatpush.msra.mxu0 0.0
  %647 = vmatpush.msra.mxu0 0.0
  %648 = vmatpush.msra.mxu0 0.0
  %649 = vmatpush.msra.mxu0 0.0
  %650 = vmatpush.msra.mxu0 0.0
  %651 = vmatpush.msra.mxu0 0.0
  %652 = vmatpush.msra.mxu0 0.0
  %653 = vmatpush.msra.mxu0 0.0
  %654 = vmatpush.msra.mxu0 0.0
  %655 = vmatpush.msra.mxu0 0.0
  %656 = vmatpush.msra.mxu0 0.0
  %657 = vmatpush.msra.mxu0 0.0
  %658 = vmatpush.msra.mxu0 0.0
  %659 = vmatpush.msra.mxu0 %v36
  %660 = vmatpush.msra.mxu0 %v32
  %661 = vmatmul.f32.gmra.mxu0 %v643
  %v662 = vpop.f32.mrf.mxu0
  %v663 = vadd.f32 %v391, %v662
  %664 = vdwg.mxu0
  %665 = vmatpush.msra.mxu0 0.0
  %666 = vmatpush.msra.mxu0 0.0
  %667 = vmatpush.msra.mxu0 0.0
  %668 = vmatpush.msra.mxu0 0.0
  %669 = vmatpush.msra.mxu0 0.0
  %670 = vmatpush.msra.mxu0 0.0
  %671 = vmatpush.msra.mxu0 0.0
  %672 = vmatpush.msra.mxu0 0.0
  %673 = vmatpush.msra.mxu0 0.0
  %674 = vmatpush.msra.mxu0 0.0
  %675 = vmatpush.msra.mxu0 0.0
  %676 = vmatpush.msra.mxu0 0.0
  %677 = vmatpush.msra.mxu0 0.0
  %678 = vmatpush.msra.mxu0 0.0
  %679 = vmatpush.msra.mxu0 %v37
  %680 = vmatpush.msra.mxu0 %v33
  %681 = vmatmul.f32.gmra.mxu0 %v643
  %v682 = vpop.f32.mrf.mxu0
  %v683 = vadd.f32 %v391, %v682
  %684 = vdwg.mxu0
  %685 = vmatpush.msra.mxu0 0.0
  %686 = vmatpush.msra.mxu0 0.0
  %687 = vmatpush.msra.mxu0 0.0
  %688 = vmatpush.msra.mxu0 0.0
  %689 = vmatpush.msra.mxu0 0.0
  %690 = vmatpush.msra.mxu0 0.0
  %691 = vmatpush.msra.mxu0 0.0
  %692 = vmatpush.msra.mxu0 0.0
  %693 = vmatpush.msra.mxu0 0.0
  %694 = vmatpush.msra.mxu0 0.0
  %695 = vmatpush.msra.mxu0 0.0
  %696 = vmatpush.msra.mxu0 0.0
  %697 = vmatpush.msra.mxu0 0.0
  %698 = vmatpush.msra.mxu0 0.0
  %699 = vmatpush.msra.mxu0 %v38
  %700 = vmatpush.msra.mxu0 %v34
  %701 = vmatmul.f32.gmra.mxu0 %v643
  %v702 = vpop.f32.mrf.mxu0
  %v703 = vadd.f32 %v391, %v702
  %704 = vdwg.mxu0
  %705 = vmatpush.msra.mxu0 0.0
  %706 = vmatpush.msra.mxu0 0.0
  %707 = vmatpush.msra.mxu0 0.0
  %708 = vmatpush.msra.mxu0 0.0
  %709 = vmatpush.msra.mxu0 0.0
  %710 = vmatpush.msra.mxu0 0.0
  %711 = vmatpush.msra.mxu0 0.0
  %712 = vmatpush.msra.mxu0 0.0
  %713 = vmatpush.msra.mxu0 0.0
  %714 = vmatpush.msra.mxu0 0.0
  %715 = vmatpush.msra.mxu0 0.0
  %716 = vmatpush.msra.mxu0 0.0
  %717 = vmatpush.msra.mxu0 0.0
  %718 = vmatpush.msra.mxu0 0.0
  %719 = vmatpush.msra.mxu0 %v39
  %720 = vmatpush.msra.mxu0 %v35
  %721 = vmatmul.f32.gmra.mxu0 %v643
  %v722 = vpop.f32.mrf.mxu0
  %v723 = vadd.f32 %v391, %v722
  %724 = vdwg.mxu0
  %vm725 = vcmask 1043456
  %v726 = vsel %vm725, %v76, 0.0
  %v727 = vsel %vm725, %v96, 0.0
  %v728 = vadd.f32 %v726, %v727
  %v729 = vsel %vm725, %v116, 0.0
  %v730 = vadd.f32 %v728, %v729
  %v731 = vsel %vm725, %v136, 0.0
  %v732 = vadd.f32 %v730, %v731
  %733 = vadd.xlane.f32.xlu0 %v732
  %v734 = vpop.xlane.xlu0 %733
  %v735 = vadd.f32 %v734, 0.0
  %v736 = vmul.f32 %v76, %v76
  %v737 = vmul.f32 %v96, %v96
  %v738 = vmul.f32 %v116, %v116
  %v739 = vmul.f32 %v136, %v136
  %v740 = vsel %vm725, %v736, 0.0
  %v741 = vsel %vm725, %v737, 0.0
  %v742 = vadd.f32 %v740, %v741
  %v743 = vsel %vm725, %v738, 0.0
  %v744 = vadd.f32 %v742, %v743
  %v745 = vsel %vm725, %v739, 0.0
  %v746 = vadd.f32 %v744, %v745
  %747 = vadd.xlane.f32.xlu0 %v746
  %v748 = vpop.xlane.xlu0 %747
  %v749 = vadd.f32 %v748, 0.0
  %v750 = vsel %vm725, %v159, 0.0
  %v751 = vsel %vm725, %v179, 0.0
  %v752 = vadd.f32 %v750, %v751
  %v753 = vsel %vm725, %v199, 0.0
  %v754 = vadd.f32 %v752, %v753
  %v755 = vsel %vm725, %v219, 0.0
  %v756 = vadd.f32 %v754, %v755
  %757 = vadd.xlane.f32.xlu0 %v756
  %v758 = vpop.xlane.xlu0 %757
  %v759 = vadd.f32 %v735, %v758
  %v760 = vmul.f32 %v159, %v159
  %v761 = vmul.f32 %v179, %v179
  %v762 = vmul.f32 %v199, %v199
  %v763 = vmul.f32 %v219, %v219
  %v764 = vsel %vm725, %v760, 0.0
  %v765 = vsel %vm725, %v761, 0.0
  %v766 = vadd.f32 %v764, %v765
  %v767 = vsel %vm725, %v762, 0.0
  %v768 = vadd.f32 %v766, %v767
  %v769 = vsel %vm725, %v763, 0.0
  %v770 = vadd.f32 %v768, %v769
  %771 = vadd.xlane.f32.xlu0 %v770
  %v772 = vpop.xlane.xlu0 %771
  %v773 = vadd.f32 %v749, %v772
  %v774 = vsel %vm725, %v242, 0.0
  %v775 = vsel %vm725, %v262, 0.0
  %v776 = vadd.f32 %v774, %v775
  %v777 = vsel %vm725, %v282, 0.0
  %v778 = vadd.f32 %v776, %v777
  %v779 = vsel %vm725, %v302, 0.0
  %v780 = vadd.f32 %v778, %v779
  %781 = vadd.xlane.f32.xlu0 %v780
  %v782 = vpop.xlane.xlu0 %781
  %v783 = vadd.f32 %v759, %v782
  %v784 = vmul.f32 %v242, %v242
  %v785 = vmul.f32 %v262, %v262
  %v786 = vmul.f32 %v282, %v282
  %v787 = vmul.f32 %v302, %v302
  %v788 = vsel %vm725, %v784, 0.0
  %v789 = vsel %vm725, %v785, 0.0
  %v790 = vadd.f32 %v788, %v789
  %v791 = vsel %vm725, %v786, 0.0
  %v792 = vadd.f32 %v790, %v791
  %v793 = vsel %vm725, %v787, 0.0
  %v794 = vadd.f32 %v792, %v793
  %795 = vadd.xlane.f32.xlu0 %v794
  %v796 = vpop.xlane.xlu0 %795
  %v797 = vadd.f32 %v773, %v796
  %v798 = vsel %vm725, %v325, 0.0
  %v799 = vsel %vm725, %v345, 0.0
  %v800 = vadd.f32 %v798, %v799
  %v801 = vsel %vm725, %v365, 0.0
  %v802 = vadd.f32 %v800, %v801
  %v803 = vsel %vm725, %v385, 0.0
  %v804 = vadd.f32 %v802, %v803
  %805 = vadd.xlane.f32.xlu0 %v804
  %v806 = vpop.xlane.xlu0 %805
  %v807 = vadd.f32 %v783, %v806
  %v808 = vmul.f32 %v325, %v325
  %v809 = vmul.f32 %v345, %v345
  %v810 = vmul.f32 %v365, %v365
  %v811 = vmul.f32 %v385, %v385
  %v812 = vsel %vm725, %v808, 0.0
  %v813 = vsel %vm725, %v809, 0.0
  %v814 = vadd.f32 %v812, %v813
  %v815 = vsel %vm725, %v810, 0.0
  %v816 = vadd.f32 %v814, %v815
  %v817 = vsel %vm725, %v811, 0.0
  %v818 = vadd.f32 %v816, %v817
  %819 = vadd.xlane.f32.xlu0 %v818
  %v820 = vpop.xlane.xlu0 %819
  %v821 = vadd.f32 %v797, %v820
  %v822 = vmul.f32 %v807, 0.00048828125
  %v823 = vmul.f32 %v821, 0.00048828125
  %v824 = vmul.f32 %v822, %v822
  %v825 = vsub.f32 %v823, %v824
  %v826 = vadd.f32 %v825, 1e-05
  %v827 = vrsqrt.pop %v826
  %v828 = vmul.f32 %v827, %v826
  %v829 = vmul.f32 %v828, %v827
  %v830 = vmul.f32 0.5, %v829
  %v831 = vsub.f32 1.5, %v830
  %v832 = vmul.f32 %v827, %v831
  %vm833 = vweird.f32 %v826
  %vm834 = vweird.f32 %v827
  %vm835 = vmor %vm833, %vm834
  %v836 = vsel %vm835, %v827, %v832
  %v837 = vld [vmem:[%s6] sm:$0xff]
  %v838 = vld [vmem:[%s6 + $0x8] sm:$0xff]
  %v841 = vunpack.c.l.s4 839922192
  %v842 = vunpack.c.0.s8 %v841
  %v843 = vperm.slane %v836, %v842
  %v845 = vmul.f32 %v837, %v843
  %v846 = vmul.f32 %v838, %v843
  %v847 = vld [vmem:[%s7] sm:$0xff]
  %v848 = vld [vmem:[%s7 + $0x8] sm:$0xff]
  %v851 = vunpack.c.l.s4 839922192
  %v852 = vunpack.c.0.s8 %v851
  %v853 = vperm.slane %v822, %v852
  %v855 = vmul.f32 %v845, %v853
  %v856 = vmul.f32 %v846, %v853
  %v857 = vsub.f32 %v847, %v855
  %v858 = vsub.f32 %v848, %v856
  %v863 = vrot.slane %v96, 4
  %v864 = vrot.slane %v136, 4
  %v865 = vsel %vm725, %v76, %v863
  %v866 = vsel %vm725, %v116, %v864
  %v869 = vmul.f32 %v845, %v865
  %v870 = vmul.f32 %v846, %v866
  %v871 = vadd.f32 %v869, %v857
  %v872 = vadd.f32 %v870, %v858
  %v873 = vmax.f32 %v871, 0.0
  %v874 = vmax.f32 %v872, 0.0
  %v879 = vrot.slane %v179, 4
  %v880 = vrot.slane %v219, 4
  %v881 = vsel %vm725, %v159, %v879
  %v882 = vsel %vm725, %v199, %v880
  %v885 = vmul.f32 %v845, %v881
  %v886 = vmul.f32 %v846, %v882
  %v887 = vadd.f32 %v885, %v857
  %v888 = vadd.f32 %v886, %v858
  %v889 = vmax.f32 %v887, 0.0
  %v890 = vmax.f32 %v888, 0.0
  %v895 = vrot.slane %v262, 4
  %v896 = vrot.slane %v302, 4
  %v897 = vsel %vm725, %v242, %v895
  %v898 = vsel %vm725, %v282, %v896
  %v901 = vmul.f32 %v845, %v897
  %v902 = vmul.f32 %v846, %v898
  %v903 = vadd.f32 %v901, %v857
  %v904 = vadd.f32 %v902, %v858
  %v905 = vmax.f32 %v903, 0.0
  %v906 = vmax.f32 %v904, 0.0
  %v911 = vrot.slane %v345, 4
  %v912 = vrot.slane %v385, 4
  %v913 = vsel %vm725, %v325, %v911
  %v914 = vsel %vm725, %v365, %v912
  %v917 = vmul.f32 %v845, %v913
  %v918 = vmul.f32 %v846, %v914
  %v919 = vadd.f32 %v917, %v857
  %v920 = vadd.f32 %v918, %v858
  %v921 = vmax.f32 %v919, 0.0
  %v922 = vmax.f32 %v920, 0.0
  %v923 = vld [vmem:[%s5] sm:$0xf]
  %925 = vset.pattern.permute.xlu0 0
  %926 = vperm.xlu0 %925, %v923
  %v927 = vpop.permute.xlu0 %926
  %v929 = vadd.f32 %v414, %v927
  %v930 = vadd.f32 %v434, %v927
  %v931 = vadd.f32 %v454, %v927
  %v932 = vadd.f32 %v474, %v927
  %v933 = vld [vmem:[%s4] sm:$0xf]
  %935 = vst [vmem:[#allocation1] ss:$2 sm:$0xff] %v922
  %v936 = vld.sshfl [vmem:[#allocation1 + $0x8] sm:$0xff pattern:$0x75316420]
  %937 = vrot.lane.b32.xlu0 %v936, 17
  %v938 = vpop.permute.xlu0 %937
  %941 = vst [vmem:[#allocation1] ss:$2 sm:$0xff] %v921
  %s942 = scalar_lea.vmem [#allocation1], 16
  %943 = vst [vmem:[%s942] ss:$2 sm:$0xff] %v922
  %v944 = vld.sshfl [vmem:[#allocation1] sm:$0xff pattern:$0x75316420]
  %v945 = vld.sshfl [vmem:[#allocation1 + $0x8] sm:$0xff pattern:$0x75316420]
  %v946 = vld.sshfl [vmem:[#allocation1 + $0x10] sm:$0xff pattern:$0x75316420]
  %v947 = vld.sshfl [vmem:[#allocation1 + $0x18] sm:$0xff pattern:$0x75316420]
  %948 = vrot.lane.b32.xlu0 %v944, 17
  %v949 = vpop.permute.xlu0 %948
  %950 = vrot.lane.b32.xlu0 %v945, 17
  %v951 = vpop.permute.xlu0 %950
  %952 = vrot.lane.b32.xlu0 %v946, 17
  %v953 = vpop.permute.xlu0 %952
  %954 = vrot.lane.b32.xlu0 %v947, 17
  %v955 = vpop.permute.xlu0 %954
  %vm956 = vcmask 138240
  %v957 = vsel %vm956, %v949, %v951
  %v958 = vsel %vm956, %v951, %v953
  %v959 = vsel %vm956, %v953, %v955
  %v964 = vsel %vm956, %v938, %v949
  %v965 = vld [vmem:[%s8] ss:$8 sm:$0xf]
  %v967 = vperm.slane %v965, 0
  %v968 = vperm.slane %v965, 1
  %v969 = vperm.slane %v965, 2
  %v970 = vperm.slane %v965, 3
  %v975 = vmul.f32 %v964, %v967
  %v976 = vmul.f32 %v957, %v968
  %v977 = vmul.f32 %v958, %v969
  %v978 = vmul.f32 %v959, %v970
  %vm979 = vcmask 31744
  %v981 = vsel %vm979, %v933, 0
  %v984 = vsel %vm725, %v975, 0
  %v987 = vsel %vm725, %v976, 0
  %v990 = vsel %vm725, %v977, 0
  %v993 = vsel %vm725, %v978, 0
  %995 = vmatpush.msra.mxu0 0.0
  %996 = vmatpush.msra.mxu0 0.0
  %997 = vmatpush.msra.mxu0 0.0
  %998 = vmatpush.msra.mxu0 0.0
  %999 = vmatpush.msra.mxu0 0.0
  %1000 = vmatpush.msra.mxu0 0.0
  %1001 = vmatpush.msra.mxu0 0.0
  %1002 = vmatpush.msra.mxu0 0.0
  %1003 = vmatpush.msra.mxu0 0.0
  %1004 = vmatpush.msra.mxu0 0.0
  %1005 = vmatpush.msra.mxu0 0.0
  %1006 = vmatpush.msra.mxu0 0.0
  %1007 = vmatpush.msra.mxu0 0.0
  %1008 = vmatpush.msra.mxu0 0.0
  %1009 = vmatpush.msra.mxu0 0.0
  %1010 = vmatpush.msra.mxu0 %v984
  %1011 = vmatmul.f32.gmra.mxu0 %v981
  %v1012 = vpop.f32.mrf.mxu0
  %v1013 = vadd.f32 0.0, %v1012
  %1014 = vdwg.mxu0
  %1015 = vmatpush.msra.mxu0 0.0
  %1016 = vmatpush.msra.mxu0 0.0
  %1017 = vmatpush.msra.mxu0 0.0
  %1018 = vmatpush.msra.mxu0 0.0
  %1019 = vmatpush.msra.mxu0 0.0
  %1020 = vmatpush.msra.mxu0 0.0
  %1021 = vmatpush.msra.mxu0 0.0
  %1022 = vmatpush.msra.mxu0 0.0
  %1023 = vmatpush.msra.mxu0 0.0
  %1024 = vmatpush.msra.mxu0 0.0
  %1025 = vmatpush.msra.mxu0 0.0
  %1026 = vmatpush.msra.mxu0 0.0
  %1027 = vmatpush.msra.mxu0 0.0
  %1028 = vmatpush.msra.mxu0 0.0
  %1029 = vmatpush.msra.mxu0 0.0
  %1030 = vmatpush.msra.mxu0 %v987
  %1031 = vmatmul.f32.gmra.mxu0 %v981
  %v1032 = vpop.f32.mrf.mxu0
  %v1033 = vadd.f32 0.0, %v1032
  %1034 = vdwg.mxu0
  %1035 = vmatpush.msra.mxu0 0.0
  %1036 = vmatpush.msra.mxu0 0.0
  %1037 = vmatpush.msra.mxu0 0.0
  %1038 = vmatpush.msra.mxu0 0.0
  %1039 = vmatpush.msra.mxu0 0.0
  %1040 = vmatpush.msra.mxu0 0.0
  %1041 = vmatpush.msra.mxu0 0.0
  %1042 = vmatpush.msra.mxu0 0.0
  %1043 = vmatpush.msra.mxu0 0.0
  %1044 = vmatpush.msra.mxu0 0.0
  %1045 = vmatpush.msra.mxu0 0.0
  %1046 = vmatpush.msra.mxu0 0.0
  %1047 = vmatpush.msra.mxu0 0.0
  %1048 = vmatpush.msra.mxu0 0.0
  %1049 = vmatpush.msra.mxu0 0.0
  %1050 = vmatpush.msra.mxu0 %v990
  %1051 = vmatmul.f32.gmra.mxu0 %v981
  %v1052 = vpop.f32.mrf.mxu0
  %v1053 = vadd.f32 0.0, %v1052
  %1054 = vdwg.mxu0
  %1055 = vmatpush.msra.mxu0 0.0
  %1056 = vmatpush.msra.mxu0 0.0
  %1057 = vmatpush.msra.mxu0 0.0
  %1058 = vmatpush.msra.mxu0 0.0
  %1059 = vmatpush.msra.mxu0 0.0
  %1060 = vmatpush.msra.mxu0 0.0
  %1061 = vmatpush.msra.mxu0 0.0
  %1062 = vmatpush.msra.mxu0 0.0
  %1063 = vmatpush.msra.mxu0 0.0
  %1064 = vmatpush.msra.mxu0 0.0
  %1065 = vmatpush.msra.mxu0 0.0
  %1066 = vmatpush.msra.mxu0 0.0
  %1067 = vmatpush.msra.mxu0 0.0
  %1068 = vmatpush.msra.mxu0 0.0
  %1069 = vmatpush.msra.mxu0 0.0
  %1070 = vmatpush.msra.mxu0 %v993
  %1071 = vmatmul.f32.gmra.mxu0 %v981
  %v1072 = vpop.f32.mrf.mxu0
  %v1073 = vadd.f32 0.0, %v1072
  %1074 = vdwg.mxu0
  %v1075 = vadd.f32 %v929, %v1013
  %v1076 = vadd.f32 %v930, %v1033
  %v1077 = vadd.f32 %v931, %v1053
  %v1078 = vadd.f32 %v932, %v1073
  %v1079 = vld [vmem:[%s4 + $0x4] sm:$0xf]
  %1081 = vst [vmem:[#allocation1] ss:$2 sm:$0xff] %v906
  %v1082 = vld.sshfl [vmem:[#allocation1 + $0x8] sm:$0xff pattern:$0x75316420]
  %1083 = vrot.lane.b32.xlu0 %v1082, 16
  %v1084 = vpop.permute.xlu0 %1083
  %1087 = vst [vmem:[#allocation1] ss:$2 sm:$0xff] %v905
  %s1088 = scalar_lea.vmem [#allocation1], 16
  %1089 = vst [vmem:[%s1088] ss:$2 sm:$0xff] %v906
  %v1090 = vld.sshfl [vmem:[#allocation1] sm:$0xff pattern:$0x75316420]
  %v1091 = vld.sshfl [vmem:[#allocation1 + $0x8] sm:$0xff pattern:$0x75316420]
  %v1092 = vld.sshfl [vmem:[#allocation1 + $0x10] sm:$0xff pattern:$0x75316420]
  %v1093 = vld.sshfl [vmem:[#allocation1 + $0x18] sm:$0xff pattern:$0x75316420]
  %1094 = vrot.lane.b32.xlu0 %v1090, 16
  %v1095 = vpop.permute.xlu0 %1094
  %1096 = vrot.lane.b32.xlu0 %v1091, 16
  %v1097 = vpop.permute.xlu0 %1096
  %1098 = vrot.lane.b32.xlu0 %v1092, 16
  %v1099 = vpop.permute.xlu0 %1098
  %1100 = vrot.lane.b32.xlu0 %v1093, 16
  %v1101 = vpop.permute.xlu0 %1100
  %v1102 = vsel %vm54, %v1095, %v1097
  %v1103 = vsel %vm54, %v1097, %v1099
  %v1104 = vsel %vm54, %v1099, %v1101
  %v1109 = vsel %vm54, %v1084, %v1095
  %s1110 = scalar_lea.vmem %s8, 1
  %v1111 = vld [vmem:[%s1110] ss:$8 sm:$0xf]
  %v1113 = vperm.slane %v1111, 0
  %v1114 = vperm.slane %v1111, 1
  %v1115 = vperm.slane %v1111, 2
  %v1116 = vperm.slane %v1111, 3
  %v1121 = vmul.f32 %v1109, %v1113
  %v1122 = vmul.f32 %v1102, %v1114
  %v1123 = vmul.f32 %v1103, %v1115
  %v1124 = vmul.f32 %v1104, %v1116
  %v1126 = vsel %vm979, %v1079, 0
  %v1129 = vsel %vm725, %v1121, 0
  %v1132 = vsel %vm725, %v1122, 0
  %v1135 = vsel %vm725, %v1123, 0
  %v1138 = vsel %vm725, %v1124, 0
  %1140 = vmatpush.msra.mxu0 0.0
  %1141 = vmatpush.msra.mxu0 0.0
  %1142 = vmatpush.msra.mxu0 0.0
  %1143 = vmatpush.msra.mxu0 0.0
  %1144 = vmatpush.msra.mxu0 0.0
  %1145 = vmatpush.msra.mxu0 0.0
  %1146 = vmatpush.msra.mxu0 0.0
  %1147 = vmatpush.msra.mxu0 0.0
  %1148 = vmatpush.msra.mxu0 0.0
  %1149 = vmatpush.msra.mxu0 0.0
  %1150 = vmatpush.msra.mxu0 0.0
  %1151 = vmatpush.msra.mxu0 0.0
  %1152 = vmatpush.msra.mxu0 0.0
  %1153 = vmatpush.msra.mxu0 0.0
  %1154 = vmatpush.msra.mxu0 0.0
  %1155 = vmatpush.msra.mxu0 %v1129
  %1156 = vmatmul.f32.gmra.mxu0 %v1126
  %v1157 = vpop.f32.mrf.mxu0
  %v1158 = vadd.f32 0.0, %v1157
  %1159 = vdwg.mxu0
  %1160 = vmatpush.msra.mxu0 0.0
  %1161 = vmatpush.msra.mxu0 0.0
  %1162 = vmatpush.msra.mxu0 0.0
  %1163 = vmatpush.msra.mxu0 0.0
  %1164 = vmatpush.msra.mxu0 0.0
  %1165 = vmatpush.msra.mxu0 0.0
  %1166 = vmatpush.msra.mxu0 0.0
  %1167 = vmatpush.msra.mxu0 0.0
  %1168 = vmatpush.msra.mxu0 0.0
  %1169 = vmatpush.msra.mxu0 0.0
  %1170 = vmatpush.msra.mxu0 0.0
  %1171 = vmatpush.msra.mxu0 0.0
  %1172 = vmatpush.msra.mxu0 0.0
  %1173 = vmatpush.msra.mxu0 0.0
  %1174 = vmatpush.msra.mxu0 0.0
  %1175 = vmatpush.msra.mxu0 %v1132
  %1176 = vmatmul.f32.gmra.mxu0 %v1126
  %v1177 = vpop.f32.mrf.mxu0
  %v1178 = vadd.f32 0.0, %v1177
  %1179 = vdwg.mxu0
  %1180 = vmatpush.msra.mxu0 0.0
  %1181 = vmatpush.msra.mxu0 0.0
  %1182 = vmatpush.msra.mxu0 0.0
  %1183 = vmatpush.msra.mxu0 0.0
  %1184 = vmatpush.msra.mxu0 0.0
  %1185 = vmatpush.msra.mxu0 0.0
  %1186 = vmatpush.msra.mxu0 0.0
  %1187 = vmatpush.msra.mxu0 0.0
  %1188 = vmatpush.msra.mxu0 0.0
  %1189 = vmatpush.msra.mxu0 0.0
  %1190 = vmatpush.msra.mxu0 0.0
  %1191 = vmatpush.msra.mxu0 0.0
  %1192 = vmatpush.msra.mxu0 0.0
  %1193 = vmatpush.msra.mxu0 0.0
  %1194 = vmatpush.msra.mxu0 0.0
  %1195 = vmatpush.msra.mxu0 %v1135
  %1196 = vmatmul.f32.gmra.mxu0 %v1126
  %v1197 = vpop.f32.mrf.mxu0
  %v1198 = vadd.f32 0.0, %v1197
  %1199 = vdwg.mxu0
  %1200 = vmatpush.msra.mxu0 0.0
  %1201 = vmatpush.msra.mxu0 0.0
  %1202 = vmatpush.msra.mxu0 0.0
  %1203 = vmatpush.msra.mxu0 0.0
  %1204 = vmatpush.msra.mxu0 0.0
  %1205 = vmatpush.msra.mxu0 0.0
  %1206 = vmatpush.msra.mxu0 0.0
  %1207 = vmatpush.msra.mxu0 0.0
  %1208 = vmatpush.msra.mxu0 0.0
  %1209 = vmatpush.msra.mxu0 0.0
  %1210 = vmatpush.msra.mxu0 0.0
  %1211 = vmatpush.msra.mxu0 0.0
  %1212 = vmatpush.msra.mxu0 0.0
  %1213 = vmatpush.msra.mxu0 0.0
  %1214 = vmatpush.msra.mxu0 0.0
  %1215 = vmatpush.msra.mxu0 %v1138
  %1216 = vmatmul.f32.gmra.mxu0 %v1126
  %v1217 = vpop.f32.mrf.mxu0
  %v1218 = vadd.f32 0.0, %v1217
  %1219 = vdwg.mxu0
  %v1220 = vadd.f32 %v1075, %v1158
  %v1221 = vadd.f32 %v1076, %v1178
  %v1222 = vadd.f32 %v1077, %v1198
  %v1223 = vadd.f32 %v1078, %v1218
  %v1224 = vld [vmem:[%s4 + $0x8] sm:$0xf]
  %1225 = vst [vmem:[#allocation1] ss:$2 sm:$0xff] %v922
  %v1226 = vld.sshfl [vmem:[#allocation1 + $0x8] sm:$0xff pattern:$0x75316420]
  %1227 = vrot.lane.b32.xlu0 %v1226, 16
  %v1228 = vpop.permute.xlu0 %1227
  %1230 = vst [vmem:[#allocation1] ss:$2 sm:$0xff] %v921
  %s1231 = scalar_lea.vmem [#allocation1], 16
  %1232 = vst [vmem:[%s1231] ss:$2 sm:$0xff] %v922
  %v1233 = vld.sshfl [vmem:[#allocation1] sm:$0xff pattern:$0x75316420]
  %v1234 = vld.sshfl [vmem:[#allocation1 + $0x8] sm:$0xff pattern:$0x75316420]
  %v1235 = vld.sshfl [vmem:[#allocation1 + $0x10] sm:$0xff pattern:$0x75316420]
  %v1236 = vld.sshfl [vmem:[#allocation1 + $0x18] sm:$0xff pattern:$0x75316420]
  %1237 = vrot.lane.b32.xlu0 %v1233, 16
  %v1238 = vpop.permute.xlu0 %1237
  %1239 = vrot.lane.b32.xlu0 %v1234, 16
  %v1240 = vpop.permute.xlu0 %1239
  %1241 = vrot.lane.b32.xlu0 %v1235, 16
  %v1242 = vpop.permute.xlu0 %1241
  %1243 = vrot.lane.b32.xlu0 %v1236, 16
  %v1244 = vpop.permute.xlu0 %1243
  %v1245 = vsel %vm54, %v1238, %v1240
  %v1246 = vsel %vm54, %v1240, %v1242
  %v1247 = vsel %vm54, %v1242, %v1244
  %v1252 = vsel %vm54, %v1228, %v1238
  %v1253 = vmul.f32 %v1252, %v1113
  %v1254 = vmul.f32 %v1245, %v1114
  %v1255 = vmul.f32 %v1246, %v1115
  %v1256 = vmul.f32 %v1247, %v1116
  %v1258 = vsel %vm979, %v1224, 0
  %v1261 = vsel %vm725, %v1253, 0
  %v1264 = vsel %vm725, %v1254, 0
  %v1267 = vsel %vm725, %v1255, 0
  %v1270 = vsel %vm725, %v1256, 0
  %1272 = vmatpush.msra.mxu0 0.0
  %1273 = vmatpush.msra.mxu0 0.0
  %1274 = vmatpush.msra.mxu0 0.0
  %1275 = vmatpush.msra.mxu0 0.0
  %1276 = vmatpush.msra.mxu0 0.0
  %1277 = vmatpush.msra.mxu0 0.0
  %1278 = vmatpush.msra.mxu0 0.0
  %1279 = vmatpush.msra.mxu0 0.0
  %1280 = vmatpush.msra.mxu0 0.0
  %1281 = vmatpush.msra.mxu0 0.0
  %1282 = vmatpush.msra.mxu0 0.0
  %1283 = vmatpush.msra.mxu0 0.0
  %1284 = vmatpush.msra.mxu0 0.0
  %1285 = vmatpush.msra.mxu0 0.0
  %1286 = vmatpush.msra.mxu0 0.0
  %1287 = vmatpush.msra.mxu0 %v1261
  %1288 = vmatmul.f32.gmra.mxu0 %v1258
  %v1289 = vpop.f32.mrf.mxu0
  %v1290 = vadd.f32 0.0, %v1289
  %1291 = vdwg.mxu0
  %1292 = vmatpush.msra.mxu0 0.0
  %1293 = vmatpush.msra.mxu0 0.0
  %1294 = vmatpush.msra.mxu0 0.0
  %1295 = vmatpush.msra.mxu0 0.0
  %1296 = vmatpush.msra.mxu0 0.0
  %1297 = vmatpush.msra.mxu0 0.0
  %1298 = vmatpush.msra.mxu0 0.0
  %1299 = vmatpush.msra.mxu0 0.0
  %1300 = vmatpush.msra.mxu0 0.0
  %1301 = vmatpush.msra.mxu0 0.0
  %1302 = vmatpush.msra.mxu0 0.0
  %1303 = vmatpush.msra.mxu0 0.0
  %1304 = vmatpush.msra.mxu0 0.0
  %1305 = vmatpush.msra.mxu0 0.0
  %1306 = vmatpush.msra.mxu0 0.0
  %1307 = vmatpush.msra.mxu0 %v1264
  %1308 = vmatmul.f32.gmra.mxu0 %v1258
  %v1309 = vpop.f32.mrf.mxu0
  %v1310 = vadd.f32 0.0, %v1309
  %1311 = vdwg.mxu0
  %1312 = vmatpush.msra.mxu0 0.0
  %1313 = vmatpush.msra.mxu0 0.0
  %1314 = vmatpush.msra.mxu0 0.0
  %1315 = vmatpush.msra.mxu0 0.0
  %1316 = vmatpush.msra.mxu0 0.0
  %1317 = vmatpush.msra.mxu0 0.0
  %1318 = vmatpush.msra.mxu0 0.0
  %1319 = vmatpush.msra.mxu0 0.0
  %1320 = vmatpush.msra.mxu0 0.0
  %1321 = vmatpush.msra.mxu0 0.0
  %1322 = vmatpush.msra.mxu0 0.0
  %1323 = vmatpush.msra.mxu0 0.0
  %1324 = vmatpush.msra.mxu0 0.0
  %1325 = vmatpush.msra.mxu0 0.0
  %1326 = vmatpush.msra.mxu0 0.0
  %1327 = vmatpush.msra.mxu0 %v1267
  %1328 = vmatmul.f32.gmra.mxu0 %v1258
  %v1329 = vpop.f32.mrf.mxu0
  %v1330 = vadd.f32 0.0, %v1329
  %1331 = vdwg.mxu0
  %1332 = vmatpush.msra.mxu0 0.0
  %1333 = vmatpush.msra.mxu0 0.0
  %1334 = vmatpush.msra.mxu0 0.0
  %1335 = vmatpush.msra.mxu0 0.0
  %1336 = vmatpush.msra.mxu0 0.0
  %1337 = vmatpush.msra.mxu0 0.0
  %1338 = vmatpush.msra.mxu0 0.0
  %1339 = vmatpush.msra.mxu0 0.0
  %1340 = vmatpush.msra.mxu0 0.0
  %1341 = vmatpush.msra.mxu0 0.0
  %1342 = vmatpush.msra.mxu0 0.0
  %1343 = vmatpush.msra.mxu0 0.0
  %1344 = vmatpush.msra.mxu0 0.0
  %1345 = vmatpush.msra.mxu0 0.0
  %1346 = vmatpush.msra.mxu0 0.0
  %1347 = vmatpush.msra.mxu0 %v1270
  %1348 = vmatmul.f32.gmra.mxu0 %v1258
  %v1349 = vpop.f32.mrf.mxu0
  %v1350 = vadd.f32 0.0, %v1349
  %1351 = vdwg.mxu0
  %v1352 = vadd.f32 %v1220, %v1290
  %v1353 = vadd.f32 %v1221, %v1310
  %v1354 = vadd.f32 %v1222, %v1330
  %v1355 = vadd.f32 %v1223, %v1350
  %v1356 = vld [vmem:[%s4 + $0xc] sm:$0xf]
  %1358 = vst [vmem:[#allocation1] ss:$2 sm:$0xff] %v890
  %v1359 = vld.sshfl [vmem:[#allocation1 + $0x8] sm:$0xff pattern:$0x75316420]
  %1360 = vrot.lane.b32.xlu0 %v1359, 1
  %v1361 = vpop.permute.xlu0 %1360
  %1364 = vst [vmem:[#allocation1] ss:$2 sm:$0xff] %v889
  %s1365 = scalar_lea.vmem [#allocation1], 16
  %1366 = vst [vmem:[%s1365] ss:$2 sm:$0xff] %v890
  %v1367 = vld.sshfl [vmem:[#allocation1] sm:$0xff pattern:$0x75316420]
  %v1368 = vld.sshfl [vmem:[#allocation1 + $0x8] sm:$0xff pattern:$0x75316420]
  %v1369 = vld.sshfl [vmem:[#allocation1 + $0x10] sm:$0xff pattern:$0x75316420]
  %v1370 = vld.sshfl [vmem:[#allocation1 + $0x18] sm:$0xff pattern:$0x75316420]
  %1371 = vrot.lane.b32.xlu0 %v1367, 1
  %v1372 = vpop.permute.xlu0 %1371
  %1373 = vrot.lane.b32.xlu0 %v1368, 1
  %v1374 = vpop.permute.xlu0 %1373
  %1375 = vrot.lane.b32.xlu0 %v1369, 1
  %v1376 = vpop.permute.xlu0 %1375
  %1377 = vrot.lane.b32.xlu0 %v1370, 1
  %v1378 = vpop.permute.xlu0 %1377
  %vm1379 = vcmask 7168
  %v1380 = vsel %vm1379, %v1372, %v1374
  %v1381 = vsel %vm1379, %v1374, %v1376
  %v1382 = vsel %vm1379, %v1376, %v1378
  %v1387 = vsel %vm1379, %v1361, %v1372
  %s1388 = scalar_lea.vmem %s8, 3
  %v1389 = vld [vmem:[%s1388] ss:$8 sm:$0xf]
  %v1391 = vperm.slane %v1389, 0
  %v1392 = vperm.slane %v1389, 1
  %v1393 = vperm.slane %v1389, 2
  %v1394 = vperm.slane %v1389, 3
  %v1399 = vmul.f32 %v1387, %v1391
  %v1400 = vmul.f32 %v1380, %v1392
  %v1401 = vmul.f32 %v1381, %v1393
  %v1402 = vmul.f32 %v1382, %v1394
  %v1404 = vsel %vm979, %v1356, 0
  %v1407 = vsel %vm725, %v1399, 0
  %v1410 = vsel %vm725, %v1400, 0
  %v1413 = vsel %vm725, %v1401, 0
  %v1416 = vsel %vm725, %v1402, 0
  %1418 = vmatpush.msra.mxu0 0.0
  %1419 = vmatpush.msra.mxu0 0.0
  %1420 = vmatpush.msra.mxu0 0.0
  %1421 = vmatpush.msra.mxu0 0.0
  %1422 = vmatpush.msra.mxu0 0.0
  %1423 = vmatpush.msra.mxu0 0.0
  %1424 = vmatpush.msra.mxu0 0.0
  %1425 = vmatpush.msra.mxu0 0.0
  %1426 = vmatpush.msra.mxu0 0.0
  %1427 = vmatpush.msra.mxu0 0.0
  %1428 = vmatpush.msra.mxu0 0.0
  %1429 = vmatpush.msra.mxu0 0.0
  %1430 = vmatpush.msra.mxu0 0.0
  %1431 = vmatpush.msra.mxu0 0.0
  %1432 = vmatpush.msra.mxu0 0.0
  %1433 = vmatpush.msra.mxu0 %v1407
  %1434 = vmatmul.f32.gmra.mxu0 %v1404
  %v1435 = vpop.f32.mrf.mxu0
  %v1436 = vadd.f32 0.0, %v1435
  %1437 = vdwg.mxu0
  %1438 = vmatpush.msra.mxu0 0.0
  %1439 = vmatpush.msra.mxu0 0.0
  %1440 = vmatpush.msra.mxu0 0.0
  %1441 = vmatpush.msra.mxu0 0.0
  %1442 = vmatpush.msra.mxu0 0.0
  %1443 = vmatpush.msra.mxu0 0.0
  %1444 = vmatpush.msra.mxu0 0.0
  %1445 = vmatpush.msra.mxu0 0.0
  %1446 = vmatpush.msra.mxu0 0.0
  %1447 = vmatpush.msra.mxu0 0.0
  %1448 = vmatpush.msra.mxu0 0.0
  %1449 = vmatpush.msra.mxu0 0.0
  %1450 = vmatpush.msra.mxu0 0.0
  %1451 = vmatpush.msra.mxu0 0.0
  %1452 = vmatpush.msra.mxu0 0.0
  %1453 = vmatpush.msra.mxu0 %v1410
  %1454 = vmatmul.f32.gmra.mxu0 %v1404
  %v1455 = vpop.f32.mrf.mxu0
  %v1456 = vadd.f32 0.0, %v1455
  %1457 = vdwg.mxu0
  %1458 = vmatpush.msra.mxu0 0.0
  %1459 = vmatpush.msra.mxu0 0.0
  %1460 = vmatpush.msra.mxu0 0.0
  %1461 = vmatpush.msra.mxu0 0.0
  %1462 = vmatpush.msra.mxu0 0.0
  %1463 = vmatpush.msra.mxu0 0.0
  %1464 = vmatpush.msra.mxu0 0.0
  %1465 = vmatpush.msra.mxu0 0.0
  %1466 = vmatpush.msra.mxu0 0.0
  %1467 = vmatpush.msra.mxu0 0.0
  %1468 = vmatpush.msra.mxu0 0.0
  %1469 = vmatpush.msra.mxu0 0.0
  %1470 = vmatpush.msra.mxu0 0.0
  %1471 = vmatpush.msra.mxu0 0.0
  %1472 = vmatpush.msra.mxu0 0.0
  %1473 = vmatpush.msra.mxu0 %v1413
  %1474 = vmatmul.f32.gmra.mxu0 %v1404
  %v1475 = vpop.f32.mrf.mxu0
  %v1476 = vadd.f32 0.0, %v1475
  %1477 = vdwg.mxu0
  %1478 = vmatpush.msra.mxu0 0.0
  %1479 = vmatpush.msra.mxu0 0.0
  %1480 = vmatpush.msra.mxu0 0.0
  %1481 = vmatpush.msra.mxu0 0.0
  %1482 = vmatpush.msra.mxu0 0.0
  %1483 = vmatpush.msra.mxu0 0.0
  %1484 = vmatpush.msra.mxu0 0.0
  %1485 = vmatpush.msra.mxu0 0.0
  %1486 = vmatpush.msra.mxu0 0.0
  %1487 = vmatpush.msra.mxu0 0.0
  %1488 = vmatpush.msra.mxu0 0.0
  %1489 = vmatpush.msra.mxu0 0.0
  %1490 = vmatpush.msra.mxu0 0.0
  %1491 = vmatpush.msra.mxu0 0.0
  %1492 = vmatpush.msra.mxu0 0.0
  %1493 = vmatpush.msra.mxu0 %v1416
  %1494 = vmatmul.f32.gmra.mxu0 %v1404
  %v1495 = vpop.f32.mrf.mxu0
  %v1496 = vadd.f32 0.0, %v1495
  %1497 = vdwg.mxu0
  %v1498 = vadd.f32 %v1352, %v1436
  %v1499 = vadd.f32 %v1353, %v1456
  %v1500 = vadd.f32 %v1354, %v1476
  %v1501 = vadd.f32 %v1355, %v1496
  %v1502 = vld [vmem:[%s4 + $0x10] sm:$0xf]
  %1505 = vst [vmem:[#allocation1] ss:$2 sm:$0xff] %v873
  %s1506 = scalar_lea.vmem [#allocation1], 16
  %1507 = vst [vmem:[%s1506] ss:$2 sm:$0xff] %v874
  %v1508 = vld.sshfl [vmem:[#allocation1] sm:$0xff pattern:$0x75316420]
  %v1509 = vld.sshfl [vmem:[#allocation1 + $0x8] sm:$0xff pattern:$0x75316420]
  %v1510 = vld.sshfl [vmem:[#allocation1 + $0x10] sm:$0xff pattern:$0x75316420]
  %v1511 = vld.sshfl [vmem:[#allocation1 + $0x18] sm:$0xff pattern:$0x75316420]
  %v1513 = vsel %vm979, %v1502, 0
  %v1515 = vsel %vm725, %v1508, 0
  %v1517 = vsel %vm725, %v1509, 0
  %v1519 = vsel %vm725, %v1510, 0
  %v1521 = vsel %vm725, %v1511, 0
  %1523 = vmatpush.msra.mxu0 0.0
  %1524 = vmatpush.msra.mxu0 0.0
  %1525 = vmatpush.msra.mxu0 0.0
  %1526 = vmatpush.msra.mxu0 0.0
  %1527 = vmatpush.msra.mxu0 0.0
  %1528 = vmatpush.msra.mxu0 0.0
  %1529 = vmatpush.msra.mxu0 0.0
  %1530 = vmatpush.msra.mxu0 0.0
  %1531 = vmatpush.msra.mxu0 0.0
  %1532 = vmatpush.msra.mxu0 0.0
  %1533 = vmatpush.msra.mxu0 0.0
  %1534 = vmatpush.msra.mxu0 0.0
  %1535 = vmatpush.msra.mxu0 0.0
  %1536 = vmatpush.msra.mxu0 0.0
  %1537 = vmatpush.msra.mxu0 0.0
  %1538 = vmatpush.msra.mxu0 %v1515
  %1539 = vmatmul.f32.gmra.mxu0 %v1513
  %v1540 = vpop.f32.mrf.mxu0
  %v1541 = vadd.f32 0.0, %v1540
  %1542 = vdwg.mxu0
  %1543 = vmatpush.msra.mxu0 0.0
  %1544 = vmatpush.msra.mxu0 0.0
  %1545 = vmatpush.msra.mxu0 0.0
  %1546 = vmatpush.msra.mxu0 0.0
  %1547 = vmatpush.msra.mxu0 0.0
  %1548 = vmatpush.msra.mxu0 0.0
  %1549 = vmatpush.msra.mxu0 0.0
  %1550 = vmatpush.msra.mxu0 0.0
  %1551 = vmatpush.msra.mxu0 0.0
  %1552 = vmatpush.msra.mxu0 0.0
  %1553 = vmatpush.msra.mxu0 0.0
  %1554 = vmatpush.msra.mxu0 0.0
  %1555 = vmatpush.msra.mxu0 0.0
  %1556 = vmatpush.msra.mxu0 0.0
  %1557 = vmatpush.msra.mxu0 0.0
  %1558 = vmatpush.msra.mxu0 %v1517
  %1559 = vmatmul.f32.gmra.mxu0 %v1513
  %v1560 = vpop.f32.mrf.mxu0
  %v1561 = vadd.f32 0.0, %v1560
  %1562 = vdwg.mxu0
  %1563 = vmatpush.msra.mxu0 0.0
  %1564 = vmatpush.msra.mxu0 0.0
  %1565 = vmatpush.msra.mxu0 0.0
  %1566 = vmatpush.msra.mxu0 0.0
  %1567 = vmatpush.msra.mxu0 0.0
  %1568 = vmatpush.msra.mxu0 0.0
  %1569 = vmatpush.msra.mxu0 0.0
  %1570 = vmatpush.msra.mxu0 0.0
  %1571 = vmatpush.msra.mxu0 0.0
  %1572 = vmatpush.msra.mxu0 0.0
  %1573 = vmatpush.msra.mxu0 0.0
  %1574 = vmatpush.msra.mxu0 0.0
  %1575 = vmatpush.msra.mxu0 0.0
  %1576 = vmatpush.msra.mxu0 0.0
  %1577 = vmatpush.msra.mxu0 0.0
  %1578 = vmatpush.msra.mxu0 %v1519
  %1579 = vmatmul.f32.gmra.mxu0 %v1513
  %v1580 = vpop.f32.mrf.mxu0
  %v1581 = vadd.f32 0.0, %v1580
  %1582 = vdwg.mxu0
  %1583 = vmatpush.msra.mxu0 0.0
  %1584 = vmatpush.msra.mxu0 0.0
  %1585 = vmatpush.msra.mxu0 0.0
  %1586 = vmatpush.msra.mxu0 0.0
  %1587 = vmatpush.msra.mxu0 0.0
  %1588 = vmatpush.msra.mxu0 0.0
  %1589 = vmatpush.msra.mxu0 0.0
  %1590 = vmatpush.msra.mxu0 0.0
  %1591 = vmatpush.msra.mxu0 0.0
  %1592 = vmatpush.msra.mxu0 0.0
  %1593 = vmatpush.msra.mxu0 0.0
  %1594 = vmatpush.msra.mxu0 0.0
  %1595 = vmatpush.msra.mxu0 0.0
  %1596 = vmatpush.msra.mxu0 0.0
  %1597 = vmatpush.msra.mxu0 0.0
  %1598 = vmatpush.msra.mxu0 %v1521
  %1599 = vmatmul.f32.gmra.mxu0 %v1513
  %v1600 = vpop.f32.mrf.mxu0
  %v1601 = vadd.f32 0.0, %v1600
  %1602 = vdwg.mxu0
  %v1603 = vadd.f32 %v1498, %v1541
  %v1604 = vadd.f32 %v1499, %v1561
  %v1605 = vadd.f32 %v1500, %v1581
  %v1606 = vadd.f32 %v1501, %v1601
  %v1607 = vld [vmem:[%s4 + $0x14] sm:$0xf]
  %1608 = vst [vmem:[#allocation1] ss:$2 sm:$0xff] %v889
  %s1609 = scalar_lea.vmem [#allocation1], 16
  %1610 = vst [vmem:[%s1609] ss:$2 sm:$0xff] %v890
  %v1611 = vld.sshfl [vmem:[#allocation1] sm:$0xff pattern:$0x75316420]
  %v1612 = vld.sshfl [vmem:[#allocation1 + $0x8] sm:$0xff pattern:$0x75316420]
  %v1613 = vld.sshfl [vmem:[#allocation1 + $0x10] sm:$0xff pattern:$0x75316420]
  %v1614 = vld.sshfl [vmem:[#allocation1 + $0x18] sm:$0xff pattern:$0x75316420]
  %v1616 = vsel %vm979, %v1607, 0
  %v1618 = vsel %vm725, %v1611, 0
  %v1620 = vsel %vm725, %v1612, 0
  %v1622 = vsel %vm725, %v1613, 0
  %v1624 = vsel %vm725, %v1614, 0
  %1626 = vmatpush.msra.mxu0 0.0
  %1627 = vmatpush.msra.mxu0 0.0
  %1628 = vmatpush.msra.mxu0 0.0
  %1629 = vmatpush.msra.mxu0 0.0
  %1630 = vmatpush.msra.mxu0 0.0
  %1631 = vmatpush.msra.mxu0 0.0
  %1632 = vmatpush.msra.mxu0 0.0
  %1633 = vmatpush.msra.mxu0 0.0
  %1634 = vmatpush.msra.mxu0 0.0
  %1635 = vmatpush.msra.mxu0 0.0
  %1636 = vmatpush.msra.mxu0 0.0
  %1637 = vmatpush.msra.mxu0 0.0
  %1638 = vmatpush.msra.mxu0 0.0
  %1639 = vmatpush.msra.mxu0 0.0
  %1640 = vmatpush.msra.mxu0 0.0
  %1641 = vmatpush.msra.mxu0 %v1618
  %1642 = vmatmul.f32.gmra.mxu0 %v1616
  %v1643 = vpop.f32.mrf.mxu0
  %v1644 = vadd.f32 0.0, %v1643
  %1645 = vdwg.mxu0
  %1646 = vmatpush.msra.mxu0 0.0
  %1647 = vmatpush.msra.mxu0 0.0
  %1648 = vmatpush.msra.mxu0 0.0
  %1649 = vmatpush.msra.mxu0 0.0
  %1650 = vmatpush.msra.mxu0 0.0
  %1651 = vmatpush.msra.mxu0 0.0
  %1652 = vmatpush.msra.mxu0 0.0
  %1653 = vmatpush.msra.mxu0 0.0
  %1654 = vmatpush.msra.mxu0 0.0
  %1655 = vmatpush.msra.mxu0 0.0
  %1656 = vmatpush.msra.mxu0 0.0
  %1657 = vmatpush.msra.mxu0 0.0
  %1658 = vmatpush.msra.mxu0 0.0
  %1659 = vmatpush.msra.mxu0 0.0
  %1660 = vmatpush.msra.mxu0 0.0
  %1661 = vmatpush.msra.mxu0 %v1620
  %1662 = vmatmul.f32.gmra.mxu0 %v1616
  %v1663 = vpop.f32.mrf.mxu0
  %v1664 = vadd.f32 0.0, %v1663
  %1665 = vdwg.mxu0
  %1666 = vmatpush.msra.mxu0 0.0
  %1667 = vmatpush.msra.mxu0 0.0
  %1668 = vmatpush.msra.mxu0 0.0
  %1669 = vmatpush.msra.mxu0 0.0
  %1670 = vmatpush.msra.mxu0 0.0
  %1671 = vmatpush.msra.mxu0 0.0
  %1672 = vmatpush.msra.mxu0 0.0
  %1673 = vmatpush.msra.mxu0 0.0
  %1674 = vmatpush.msra.mxu0 0.0
  %1675 = vmatpush.msra.mxu0 0.0
  %1676 = vmatpush.msra.mxu0 0.0
  %1677 = vmatpush.msra.mxu0 0.0
  %1678 = vmatpush.msra.mxu0 0.0
  %1679 = vmatpush.msra.mxu0 0.0
  %1680 = vmatpush.msra.mxu0 0.0
  %1681 = vmatpush.msra.mxu0 %v1622
  %1682 = vmatmul.f32.gmra.mxu0 %v1616
  %v1683 = vpop.f32.mrf.mxu0
  %v1684 = vadd.f32 0.0, %v1683
  %1685 = vdwg.mxu0
  %1686 = vmatpush.msra.mxu0 0.0
  %1687 = vmatpush.msra.mxu0 0.0
  %1688 = vmatpush.msra.mxu0 0.0
  %1689 = vmatpush.msra.mxu0 0.0
  %1690 = vmatpush.msra.mxu0 0.0
  %1691 = vmatpush.msra.mxu0 0.0
  %1692 = vmatpush.msra.mxu0 0.0
  %1693 = vmatpush.msra.mxu0 0.0
  %1694 = vmatpush.msra.mxu0 0.0
  %1695 = vmatpush.msra.mxu0 0.0
  %1696 = vmatpush.msra.mxu0 0.0
  %1697 = vmatpush.msra.mxu0 0.0
  %1698 = vmatpush.msra.mxu0 0.0
  %1699 = vmatpush.msra.mxu0 0.0
  %1700 = vmatpush.msra.mxu0 0.0
  %1701 = vmatpush.msra.mxu0 %v1624
  %1702 = vmatmul.f32.gmra.mxu0 %v1616
  %v1703 = vpop.f32.mrf.mxu0
  %v1704 = vadd.f32 0.0, %v1703
  %1705 = vdwg.mxu0
  %v1706 = vadd.f32 %v1603, %v1644
  %v1707 = vadd.f32 %v1604, %v1664
  %v1708 = vadd.f32 %v1605, %v1684
  %v1709 = vadd.f32 %v1606, %v1704
  %v1710 = vld [vmem:[%s4 + $0x18] sm:$0xf]
  %1711 = vst [vmem:[#allocation1] ss:$2 sm:$0xff] %v922
  %v1712 = vld.sshfl [vmem:[#allocation1 + $0x8] sm:$0xff pattern:$0x75316420]
  %1713 = vrot.lane.b32.xlu0 %v1712, 1
  %v1714 = vpop.permute.xlu0 %1713
  %1716 = vst [vmem:[#allocation1] ss:$2 sm:$0xff] %v921
  %s1717 = scalar_lea.vmem [#allocation1], 16
  %1718 = vst [vmem:[%s1717] ss:$2 sm:$0xff] %v922
  %v1719 = vld.sshfl [vmem:[#allocation1] sm:$0xff pattern:$0x75316420]
  %v1720 = vld.sshfl [vmem:[#allocation1 + $0x8] sm:$0xff pattern:$0x75316420]
  %v1721 = vld.sshfl [vmem:[#allocation1 + $0x10] sm:$0xff pattern:$0x75316420]
  %v1722 = vld.sshfl [vmem:[#allocation1 + $0x18] sm:$0xff pattern:$0x75316420]
  %1723 = vrot.lane.b32.xlu0 %v1719, 1
  %v1724 = vpop.permute.xlu0 %1723
  %1725 = vrot.lane.b32.xlu0 %v1720, 1
  %v1726 = vpop.permute.xlu0 %1725
  %1727 = vrot.lane.b32.xlu0 %v1721, 1
  %v1728 = vpop.permute.xlu0 %1727
  %1729 = vrot.lane.b32.xlu0 %v1722, 1
  %v1730 = vpop.permute.xlu0 %1729
  %v1731 = vsel %vm1379, %v1724, %v1726
  %v1732 = vsel %vm1379, %v1726, %v1728
  %v1733 = vsel %vm1379, %v1728, %v1730
  %v1738 = vsel %vm1379, %v1714, %v1724
  %v1739 = vmul.f32 %v1738, %v1391
  %v1740 = vmul.f32 %v1731, %v1392
  %v1741 = vmul.f32 %v1732, %v1393
  %v1742 = vmul.f32 %v1733, %v1394
  %v1744 = vsel %vm979, %v1710, 0
  %v1747 = vsel %vm725, %v1739, 0
  %v1750 = vsel %vm725, %v1740, 0
  %v1753 = vsel %vm725, %v1741, 0
  %v1756 = vsel %vm725, %v1742, 0
  %1758 = vmatpush.msra.mxu0 0.0
  %1759 = vmatpush.msra.mxu0 0.0
  %1760 = vmatpush.msra.mxu0 0.0
  %1761 = vmatpush.msra.mxu0 0.0
  %1762 = vmatpush.msra.mxu0 0.0
  %1763 = vmatpush.msra.mxu0 0.0
  %1764 = vmatpush.msra.mxu0 0.0
  %1765 = vmatpush.msra.mxu0 0.0
  %1766 = vmatpush.msra.mxu0 0.0
  %1767 = vmatpush.msra.mxu0 0.0
  %1768 = vmatpush.msra.mxu0 0.0
  %1769 = vmatpush.msra.mxu0 0.0
  %1770 = vmatpush.msra.mxu0 0.0
  %1771 = vmatpush.msra.mxu0 0.0
  %1772 = vmatpush.msra.mxu0 0.0
  %1773 = vmatpush.msra.mxu0 %v1747
  %1774 = vmatmul.f32.gmra.mxu0 %v1744
  %v1775 = vpop.f32.mrf.mxu0
  %v1776 = vadd.f32 0.0, %v1775
  %1777 = vdwg.mxu0
  %1778 = vmatpush.msra.mxu0 0.0
  %1779 = vmatpush.msra.mxu0 0.0
  %1780 = vmatpush.msra.mxu0 0.0
  %1781 = vmatpush.msra.mxu0 0.0
  %1782 = vmatpush.msra.mxu0 0.0
  %1783 = vmatpush.msra.mxu0 0.0
  %1784 = vmatpush.msra.mxu0 0.0
  %1785 = vmatpush.msra.mxu0 0.0
  %1786 = vmatpush.msra.mxu0 0.0
  %1787 = vmatpush.msra.mxu0 0.0
  %1788 = vmatpush.msra.mxu0 0.0
  %1789 = vmatpush.msra.mxu0 0.0
  %1790 = vmatpush.msra.mxu0 0.0
  %1791 = vmatpush.msra.mxu0 0.0
  %1792 = vmatpush.msra.mxu0 0.0
  %1793 = vmatpush.msra.mxu0 %v1750
  %1794 = vmatmul.f32.gmra.mxu0 %v1744
  %v1795 = vpop.f32.mrf.mxu0
  %v1796 = vadd.f32 0.0, %v1795
  %1797 = vdwg.mxu0
  %1798 = vmatpush.msra.mxu0 0.0
  %1799 = vmatpush.msra.mxu0 0.0
  %1800 = vmatpush.msra.mxu0 0.0
  %1801 = vmatpush.msra.mxu0 0.0
  %1802 = vmatpush.msra.mxu0 0.0
  %1803 = vmatpush.msra.mxu0 0.0
  %1804 = vmatpush.msra.mxu0 0.0
  %1805 = vmatpush.msra.mxu0 0.0
  %1806 = vmatpush.msra.mxu0 0.0
  %1807 = vmatpush.msra.mxu0 0.0
  %1808 = vmatpush.msra.mxu0 0.0
  %1809 = vmatpush.msra.mxu0 0.0
  %1810 = vmatpush.msra.mxu0 0.0
  %1811 = vmatpush.msra.mxu0 0.0
  %1812 = vmatpush.msra.mxu0 0.0
  %1813 = vmatpush.msra.mxu0 %v1753
  %1814 = vmatmul.f32.gmra.mxu0 %v1744
  %v1815 = vpop.f32.mrf.mxu0
  %v1816 = vadd.f32 0.0, %v1815
  %1817 = vdwg.mxu0
  %1818 = vmatpush.msra.mxu0 0.0
  %1819 = vmatpush.msra.mxu0 0.0
  %1820 = vmatpush.msra.mxu0 0.0
  %1821 = vmatpush.msra.mxu0 0.0
  %1822 = vmatpush.msra.mxu0 0.0
  %1823 = vmatpush.msra.mxu0 0.0
  %1824 = vmatpush.msra.mxu0 0.0
  %1825 = vmatpush.msra.mxu0 0.0
  %1826 = vmatpush.msra.mxu0 0.0
  %1827 = vmatpush.msra.mxu0 0.0
  %1828 = vmatpush.msra.mxu0 0.0
  %1829 = vmatpush.msra.mxu0 0.0
  %1830 = vmatpush.msra.mxu0 0.0
  %1831 = vmatpush.msra.mxu0 0.0
  %1832 = vmatpush.msra.mxu0 0.0
  %1833 = vmatpush.msra.mxu0 %v1756
  %1834 = vmatmul.f32.gmra.mxu0 %v1744
  %v1835 = vpop.f32.mrf.mxu0
  %v1836 = vadd.f32 0.0, %v1835
  %1837 = vdwg.mxu0
  %v1838 = vadd.f32 %v1706, %v1776
  %v1839 = vadd.f32 %v1707, %v1796
  %v1840 = vadd.f32 %v1708, %v1816
  %v1841 = vadd.f32 %v1709, %v1836
  %v1842 = vld [vmem:[%s4 + $0x1c] sm:$0xf]
  %1843 = vst [vmem:[#allocation1] ss:$2 sm:$0xff] %v905
  %s1844 = scalar_lea.vmem [#allocation1], 16
  %1845 = vst [vmem:[%s1844] ss:$2 sm:$0xff] %v906
  %v1846 = vld.sshfl [vmem:[#allocation1] sm:$0xff pattern:$0x75316420]
  %v1847 = vld.sshfl [vmem:[#allocation1 + $0x8] sm:$0xff pattern:$0x75316420]
  %v1848 = vld.sshfl [vmem:[#allocation1 + $0x10] sm:$0xff pattern:$0x75316420]
  %v1849 = vld.sshfl [vmem:[#allocation1 + $0x18] sm:$0xff pattern:$0x75316420]
  %v1851 = vsel %vm979, %v1842, 0
  %v1853 = vsel %vm725, %v1846, 0
  %v1855 = vsel %vm725, %v1847, 0
  %v1857 = vsel %vm725, %v1848, 0
  %v1859 = vsel %vm725, %v1849, 0
  %1861 = vmatpush.msra.mxu0 0.0
  %1862 = vmatpush.msra.mxu0 0.0
  %1863 = vmatpush.msra.mxu0 0.0
  %1864 = vmatpush.msra.mxu0 0.0
  %1865 = vmatpush.msra.mxu0 0.0
  %1866 = vmatpush.msra.mxu0 0.0
  %1867 = vmatpush.msra.mxu0 0.0
  %1868 = vmatpush.msra.mxu0 0.0
  %1869 = vmatpush.msra.mxu0 0.0
  %1870 = vmatpush.msra.mxu0 0.0
  %1871 = vmatpush.msra.mxu0 0.0
  %1872 = vmatpush.msra.mxu0 0.0
  %1873 = vmatpush.msra.mxu0 0.0
  %1874 = vmatpush.msra.mxu0 0.0
  %1875 = vmatpush.msra.mxu0 0.0
  %1876 = vmatpush.msra.mxu0 %v1853
  %1877 = vmatmul.f32.gmra.mxu0 %v1851
  %v1878 = vpop.f32.mrf.mxu0
  %v1879 = vadd.f32 0.0, %v1878
  %1880 = vdwg.mxu0
  %1881 = vmatpush.msra.mxu0 0.0
  %1882 = vmatpush.msra.mxu0 0.0
  %1883 = vmatpush.msra.mxu0 0.0
  %1884 = vmatpush.msra.mxu0 0.0
  %1885 = vmatpush.msra.mxu0 0.0
  %1886 = vmatpush.msra.mxu0 0.0
  %1887 = vmatpush.msra.mxu0 0.0
  %1888 = vmatpush.msra.mxu0 0.0
  %1889 = vmatpush.msra.mxu0 0.0
  %1890 = vmatpush.msra.mxu0 0.0
  %1891 = vmatpush.msra.mxu0 0.0
  %1892 = vmatpush.msra.mxu0 0.0
  %1893 = vmatpush.msra.mxu0 0.0
  %1894 = vmatpush.msra.mxu0 0.0
  %1895 = vmatpush.msra.mxu0 0.0
  %1896 = vmatpush.msra.mxu0 %v1855
  %1897 = vmatmul.f32.gmra.mxu0 %v1851
  %v1898 = vpop.f32.mrf.mxu0
  %v1899 = vadd.f32 0.0, %v1898
  %1900 = vdwg.mxu0
  %1901 = vmatpush.msra.mxu0 0.0
  %1902 = vmatpush.msra.mxu0 0.0
  %1903 = vmatpush.msra.mxu0 0.0
  %1904 = vmatpush.msra.mxu0 0.0
  %1905 = vmatpush.msra.mxu0 0.0
  %1906 = vmatpush.msra.mxu0 0.0
  %1907 = vmatpush.msra.mxu0 0.0
  %1908 = vmatpush.msra.mxu0 0.0
  %1909 = vmatpush.msra.mxu0 0.0
  %1910 = vmatpush.msra.mxu0 0.0
  %1911 = vmatpush.msra.mxu0 0.0
  %1912 = vmatpush.msra.mxu0 0.0
  %1913 = vmatpush.msra.mxu0 0.0
  %1914 = vmatpush.msra.mxu0 0.0
  %1915 = vmatpush.msra.mxu0 0.0
  %1916 = vmatpush.msra.mxu0 %v1857
  %1917 = vmatmul.f32.gmra.mxu0 %v1851
  %v1918 = vpop.f32.mrf.mxu0
  %v1919 = vadd.f32 0.0, %v1918
  %1920 = vdwg.mxu0
  %1921 = vmatpush.msra.mxu0 0.0
  %1922 = vmatpush.msra.mxu0 0.0
  %1923 = vmatpush.msra.mxu0 0.0
  %1924 = vmatpush.msra.mxu0 0.0
  %1925 = vmatpush.msra.mxu0 0.0
  %1926 = vmatpush.msra.mxu0 0.0
  %1927 = vmatpush.msra.mxu0 0.0
  %1928 = vmatpush.msra.mxu0 0.0
  %1929 = vmatpush.msra.mxu0 0.0
  %1930 = vmatpush.msra.mxu0 0.0
  %1931 = vmatpush.msra.mxu0 0.0
  %1932 = vmatpush.msra.mxu0 0.0
  %1933 = vmatpush.msra.mxu0 0.0
  %1934 = vmatpush.msra.mxu0 0.0
  %1935 = vmatpush.msra.mxu0 0.0
  %1936 = vmatpush.msra.mxu0 %v1859
  %1937 = vmatmul.f32.gmra.mxu0 %v1851
  %v1938 = vpop.f32.mrf.mxu0
  %v1939 = vadd.f32 0.0, %v1938
  %1940 = vdwg.mxu0
  %v1941 = vadd.f32 %v1838, %v1879
  %v1942 = vadd.f32 %v1839, %v1899
  %v1943 = vadd.f32 %v1840, %v1919
  %v1944 = vadd.f32 %v1841, %v1939
  %v1945 = vld [vmem:[%s4 + $0x20] sm:$0xf]
  %1946 = vst [vmem:[#allocation1] ss:$2 sm:$0xff] %v921
  %s1947 = scalar_lea.vmem [#allocation1], 16
  %1948 = vst [vmem:[%s1947] ss:$2 sm:$0xff] %v922
  %v1949 = vld.sshfl [vmem:[#allocation1] sm:$0xff pattern:$0x75316420]
  %v1950 = vld.sshfl [vmem:[#allocation1 + $0x8] sm:$0xff pattern:$0x75316420]
  %v1951 = vld.sshfl [vmem:[#allocation1 + $0x10] sm:$0xff pattern:$0x75316420]
  %v1952 = vld.sshfl [vmem:[#allocation1 + $0x18] sm:$0xff pattern:$0x75316420]
  %v1954 = vsel %vm979, %v1945, 0
  %v1956 = vsel %vm725, %v1949, 0
  %v1958 = vsel %vm725, %v1950, 0
  %v1960 = vsel %vm725, %v1951, 0
  %v1962 = vsel %vm725, %v1952, 0
  %1964 = vmatpush.msra.mxu0 0.0
  %1965 = vmatpush.msra.mxu0 0.0
  %1966 = vmatpush.msra.mxu0 0.0
  %1967 = vmatpush.msra.mxu0 0.0
  %1968 = vmatpush.msra.mxu0 0.0
  %1969 = vmatpush.msra.mxu0 0.0
  %1970 = vmatpush.msra.mxu0 0.0
  %1971 = vmatpush.msra.mxu0 0.0
  %1972 = vmatpush.msra.mxu0 0.0
  %1973 = vmatpush.msra.mxu0 0.0
  %1974 = vmatpush.msra.mxu0 0.0
  %1975 = vmatpush.msra.mxu0 0.0
  %1976 = vmatpush.msra.mxu0 0.0
  %1977 = vmatpush.msra.mxu0 0.0
  %1978 = vmatpush.msra.mxu0 0.0
  %1979 = vmatpush.msra.mxu0 %v1956
  %1980 = vmatmul.f32.gmra.mxu0 %v1954
  %v1981 = vpop.f32.mrf.mxu0
  %v1982 = vadd.f32 0.0, %v1981
  %1983 = vdwg.mxu0
  %1984 = vmatpush.msra.mxu0 0.0
  %1985 = vmatpush.msra.mxu0 0.0
  %1986 = vmatpush.msra.mxu0 0.0
  %1987 = vmatpush.msra.mxu0 0.0
  %1988 = vmatpush.msra.mxu0 0.0
  %1989 = vmatpush.msra.mxu0 0.0
  %1990 = vmatpush.msra.mxu0 0.0
  %1991 = vmatpush.msra.mxu0 0.0
  %1992 = vmatpush.msra.mxu0 0.0
  %1993 = vmatpush.msra.mxu0 0.0
  %1994 = vmatpush.msra.mxu0 0.0
  %1995 = vmatpush.msra.mxu0 0.0
  %1996 = vmatpush.msra.mxu0 0.0
  %1997 = vmatpush.msra.mxu0 0.0
  %1998 = vmatpush.msra.mxu0 0.0
  %1999 = vmatpush.msra.mxu0 %v1958
  %2000 = vmatmul.f32.gmra.mxu0 %v1954
  %v2001 = vpop.f32.mrf.mxu0
  %v2002 = vadd.f32 0.0, %v2001
  %2003 = vdwg.mxu0
  %2004 = vmatpush.msra.mxu0 0.0
  %2005 = vmatpush.msra.mxu0 0.0
  %2006 = vmatpush.msra.mxu0 0.0
  %2007 = vmatpush.msra.mxu0 0.0
  %2008 = vmatpush.msra.mxu0 0.0
  %2009 = vmatpush.msra.mxu0 0.0
  %2010 = vmatpush.msra.mxu0 0.0
  %2011 = vmatpush.msra.mxu0 0.0
  %2012 = vmatpush.msra.mxu0 0.0
  %2013 = vmatpush.msra.mxu0 0.0
  %2014 = vmatpush.msra.mxu0 0.0
  %2015 = vmatpush.msra.mxu0 0.0
  %2016 = vmatpush.msra.mxu0 0.0
  %2017 = vmatpush.msra.mxu0 0.0
  %2018 = vmatpush.msra.mxu0 0.0
  %2019 = vmatpush.msra.mxu0 %v1960
  %2020 = vmatmul.f32.gmra.mxu0 %v1954
  %v2021 = vpop.f32.mrf.mxu0
  %v2022 = vadd.f32 0.0, %v2021
  %2023 = vdwg.mxu0
  %2024 = vmatpush.msra.mxu0 0.0
  %2025 = vmatpush.msra.mxu0 0.0
  %2026 = vmatpush.msra.mxu0 0.0
  %2027 = vmatpush.msra.mxu0 0.0
  %2028 = vmatpush.msra.mxu0 0.0
  %2029 = vmatpush.msra.mxu0 0.0
  %2030 = vmatpush.msra.mxu0 0.0
  %2031 = vmatpush.msra.mxu0 0.0
  %2032 = vmatpush.msra.mxu0 0.0
  %2033 = vmatpush.msra.mxu0 0.0
  %2034 = vmatpush.msra.mxu0 0.0
  %2035 = vmatpush.msra.mxu0 0.0
  %2036 = vmatpush.msra.mxu0 0.0
  %2037 = vmatpush.msra.mxu0 0.0
  %2038 = vmatpush.msra.mxu0 0.0
  %2039 = vmatpush.msra.mxu0 %v1962
  %2040 = vmatmul.f32.gmra.mxu0 %v1954
  %v2041 = vpop.f32.mrf.mxu0
  %v2042 = vadd.f32 0.0, %v2041
  %2043 = vdwg.mxu0
  %v2044 = vadd.f32 %v1941, %v1982
  %v2045 = vadd.f32 %v1942, %v2002
  %v2046 = vadd.f32 %v1943, %v2022
  %v2047 = vadd.f32 %v1944, %v2042
  %v2052 = vrot.slane %v2045, 4
  %v2053 = vrot.slane %v2047, 4
  %v2054 = vsel %vm725, %v2044, %v2052
  %v2055 = vsel %vm725, %v2046, %v2053
  %2058 = vst [vmem:[%s9] sm:$0xff] %v2054
  %2059 = vst [vmem:[%s9 + $0x8] sm:$0xff] %v2055
  %v2060 = vld [vmem:[%s5] sm:$0xf]
  %2062 = vset.pattern.permute.xlu0 0
  %2063 = vperm.xlu0 %2062, %v2060
  %v2064 = vpop.permute.xlu0 %2063
  %v2066 = vadd.f32 %v497, %v2064
  %v2067 = vadd.f32 %v517, %v2064
  %v2068 = vadd.f32 %v537, %v2064
  %v2069 = vadd.f32 %v557, %v2064
  %v2070 = vld [vmem:[%s4] sm:$0xf]
  %v2071 = vld [vmem:[%s1110] ss:$8 sm:$0xf]
  %v2073 = vperm.slane %v2071, 0
  %v2074 = vperm.slane %v2071, 1
  %v2075 = vperm.slane %v2071, 2
  %v2076 = vperm.slane %v2071, 3
  %v2081 = vmul.f32 %v1109, %v2073
  %v2082 = vmul.f32 %v1102, %v2074
  %v2083 = vmul.f32 %v1103, %v2075
  %v2084 = vmul.f32 %v1104, %v2076
  %v2086 = vsel %vm979, %v2070, 0
  %v2089 = vsel %vm725, %v2081, 0
  %v2092 = vsel %vm725, %v2082, 0
  %v2095 = vsel %vm725, %v2083, 0
  %v2098 = vsel %vm725, %v2084, 0
  %2100 = vmatpush.msra.mxu0 0.0
  %2101 = vmatpush.msra.mxu0 0.0
  %2102 = vmatpush.msra.mxu0 0.0
  %2103 = vmatpush.msra.mxu0 0.0
  %2104 = vmatpush.msra.mxu0 0.0
  %2105 = vmatpush.msra.mxu0 0.0
  %2106 = vmatpush.msra.mxu0 0.0
  %2107 = vmatpush.msra.mxu0 0.0
  %2108 = vmatpush.msra.mxu0 0.0
  %2109 = vmatpush.msra.mxu0 0.0
  %2110 = vmatpush.msra.mxu0 0.0
  %2111 = vmatpush.msra.mxu0 0.0
  %2112 = vmatpush.msra.mxu0 0.0
  %2113 = vmatpush.msra.mxu0 0.0
  %2114 = vmatpush.msra.mxu0 0.0
  %2115 = vmatpush.msra.mxu0 %v2089
  %2116 = vmatmul.f32.gmra.mxu0 %v2086
  %v2117 = vpop.f32.mrf.mxu0
  %v2118 = vadd.f32 0.0, %v2117
  %2119 = vdwg.mxu0
  %2120 = vmatpush.msra.mxu0 0.0
  %2121 = vmatpush.msra.mxu0 0.0
  %2122 = vmatpush.msra.mxu0 0.0
  %2123 = vmatpush.msra.mxu0 0.0
  %2124 = vmatpush.msra.mxu0 0.0
  %2125 = vmatpush.msra.mxu0 0.0
  %2126 = vmatpush.msra.mxu0 0.0
  %2127 = vmatpush.msra.mxu0 0.0
  %2128 = vmatpush.msra.mxu0 0.0
  %2129 = vmatpush.msra.mxu0 0.0
  %2130 = vmatpush.msra.mxu0 0.0
  %2131 = vmatpush.msra.mxu0 0.0
  %2132 = vmatpush.msra.mxu0 0.0
  %2133 = vmatpush.msra.mxu0 0.0
  %2134 = vmatpush.msra.mxu0 0.0
  %2135 = vmatpush.msra.mxu0 %v2092
  %2136 = vmatmul.f32.gmra.mxu0 %v2086
  %v2137 = vpop.f32.mrf.mxu0
  %v2138 = vadd.f32 0.0, %v2137
  %2139 = vdwg.mxu0
  %2140 = vmatpush.msra.mxu0 0.0
  %2141 = vmatpush.msra.mxu0 0.0
  %2142 = vmatpush.msra.mxu0 0.0
  %2143 = vmatpush.msra.mxu0 0.0
  %2144 = vmatpush.msra.mxu0 0.0
  %2145 = vmatpush.msra.mxu0 0.0
  %2146 = vmatpush.msra.mxu0 0.0
  %2147 = vmatpush.msra.mxu0 0.0
  %2148 = vmatpush.msra.mxu0 0.0
  %2149 = vmatpush.msra.mxu0 0.0
  %2150 = vmatpush.msra.mxu0 0.0
  %2151 = vmatpush.msra.mxu0 0.0
  %2152 = vmatpush.msra.mxu0 0.0
  %2153 = vmatpush.msra.mxu0 0.0
  %2154 = vmatpush.msra.mxu0 0.0
  %2155 = vmatpush.msra.mxu0 %v2095
  %2156 = vmatmul.f32.gmra.mxu0 %v2086
  %v2157 = vpop.f32.mrf.mxu0
  %v2158 = vadd.f32 0.0, %v2157
  %2159 = vdwg.mxu0
  %2160 = vmatpush.msra.mxu0 0.0
  %2161 = vmatpush.msra.mxu0 0.0
  %2162 = vmatpush.msra.mxu0 0.0
  %2163 = vmatpush.msra.mxu0 0.0
  %2164 = vmatpush.msra.mxu0 0.0
  %2165 = vmatpush.msra.mxu0 0.0
  %2166 = vmatpush.msra.mxu0 0.0
  %2167 = vmatpush.msra.mxu0 0.0
  %2168 = vmatpush.msra.mxu0 0.0
  %2169 = vmatpush.msra.mxu0 0.0
  %2170 = vmatpush.msra.mxu0 0.0
  %2171 = vmatpush.msra.mxu0 0.0
  %2172 = vmatpush.msra.mxu0 0.0
  %2173 = vmatpush.msra.mxu0 0.0
  %2174 = vmatpush.msra.mxu0 0.0
  %2175 = vmatpush.msra.mxu0 %v2098
  %2176 = vmatmul.f32.gmra.mxu0 %v2086
  %v2177 = vpop.f32.mrf.mxu0
  %v2178 = vadd.f32 0.0, %v2177
  %2179 = vdwg.mxu0
  %v2180 = vadd.f32 %v2066, %v2118
  %v2181 = vadd.f32 %v2067, %v2138
  %v2182 = vadd.f32 %v2068, %v2158
  %v2183 = vadd.f32 %v2069, %v2178
  %v2184 = vld [vmem:[%s4 + $0x4] sm:$0xf]
  %v2185 = vmul.f32 %v1252, %v2073
  %v2186 = vmul.f32 %v1245, %v2074
  %v2187 = vmul.f32 %v1246, %v2075
  %v2188 = vmul.f32 %v1247, %v2076
  %v2190 = vsel %vm979, %v2184, 0
  %v2193 = vsel %vm725, %v2185, 0
  %v2196 = vsel %vm725, %v2186, 0
  %v2199 = vsel %vm725, %v2187, 0
  %v2202 = vsel %vm725, %v2188, 0
  %2204 = vmatpush.msra.mxu0 0.0
  %2205 = vmatpush.msra.mxu0 0.0
  %2206 = vmatpush.msra.mxu0 0.0
  %2207 = vmatpush.msra.mxu0 0.0
  %2208 = vmatpush.msra.mxu0 0.0
  %2209 = vmatpush.msra.mxu0 0.0
  %2210 = vmatpush.msra.mxu0 0.0
  %2211 = vmatpush.msra.mxu0 0.0
  %2212 = vmatpush.msra.mxu0 0.0
  %2213 = vmatpush.msra.mxu0 0.0
  %2214 = vmatpush.msra.mxu0 0.0
  %2215 = vmatpush.msra.mxu0 0.0
  %2216 = vmatpush.msra.mxu0 0.0
  %2217 = vmatpush.msra.mxu0 0.0
  %2218 = vmatpush.msra.mxu0 0.0
  %2219 = vmatpush.msra.mxu0 %v2193
  %2220 = vmatmul.f32.gmra.mxu0 %v2190
  %v2221 = vpop.f32.mrf.mxu0
  %v2222 = vadd.f32 0.0, %v2221
  %2223 = vdwg.mxu0
  %2224 = vmatpush.msra.mxu0 0.0
  %2225 = vmatpush.msra.mxu0 0.0
  %2226 = vmatpush.msra.mxu0 0.0
  %2227 = vmatpush.msra.mxu0 0.0
  %2228 = vmatpush.msra.mxu0 0.0
  %2229 = vmatpush.msra.mxu0 0.0
  %2230 = vmatpush.msra.mxu0 0.0
  %2231 = vmatpush.msra.mxu0 0.0
  %2232 = vmatpush.msra.mxu0 0.0
  %2233 = vmatpush.msra.mxu0 0.0
  %2234 = vmatpush.msra.mxu0 0.0
  %2235 = vmatpush.msra.mxu0 0.0
  %2236 = vmatpush.msra.mxu0 0.0
  %2237 = vmatpush.msra.mxu0 0.0
  %2238 = vmatpush.msra.mxu0 0.0
  %2239 = vmatpush.msra.mxu0 %v2196
  %2240 = vmatmul.f32.gmra.mxu0 %v2190
  %v2241 = vpop.f32.mrf.mxu0
  %v2242 = vadd.f32 0.0, %v2241
  %2243 = vdwg.mxu0
  %2244 = vmatpush.msra.mxu0 0.0
  %2245 = vmatpush.msra.mxu0 0.0
  %2246 = vmatpush.msra.mxu0 0.0
  %2247 = vmatpush.msra.mxu0 0.0
  %2248 = vmatpush.msra.mxu0 0.0
  %2249 = vmatpush.msra.mxu0 0.0
  %2250 = vmatpush.msra.mxu0 0.0
  %2251 = vmatpush.msra.mxu0 0.0
  %2252 = vmatpush.msra.mxu0 0.0
  %2253 = vmatpush.msra.mxu0 0.0
  %2254 = vmatpush.msra.mxu0 0.0
  %2255 = vmatpush.msra.mxu0 0.0
  %2256 = vmatpush.msra.mxu0 0.0
  %2257 = vmatpush.msra.mxu0 0.0
  %2258 = vmatpush.msra.mxu0 0.0
  %2259 = vmatpush.msra.mxu0 %v2199
  %2260 = vmatmul.f32.gmra.mxu0 %v2190
  %v2261 = vpop.f32.mrf.mxu0
  %v2262 = vadd.f32 0.0, %v2261
  %2263 = vdwg.mxu0
  %2264 = vmatpush.msra.mxu0 0.0
  %2265 = vmatpush.msra.mxu0 0.0
  %2266 = vmatpush.msra.mxu0 0.0
  %2267 = vmatpush.msra.mxu0 0.0
  %2268 = vmatpush.msra.mxu0 0.0
  %2269 = vmatpush.msra.mxu0 0.0
  %2270 = vmatpush.msra.mxu0 0.0
  %2271 = vmatpush.msra.mxu0 0.0
  %2272 = vmatpush.msra.mxu0 0.0
  %2273 = vmatpush.msra.mxu0 0.0
  %2274 = vmatpush.msra.mxu0 0.0
  %2275 = vmatpush.msra.mxu0 0.0
  %2276 = vmatpush.msra.mxu0 0.0
  %2277 = vmatpush.msra.mxu0 0.0
  %2278 = vmatpush.msra.mxu0 0.0
  %2279 = vmatpush.msra.mxu0 %v2202
  %2280 = vmatmul.f32.gmra.mxu0 %v2190
  %v2281 = vpop.f32.mrf.mxu0
  %v2282 = vadd.f32 0.0, %v2281
  %2283 = vdwg.mxu0
  %v2284 = vadd.f32 %v2180, %v2222
  %v2285 = vadd.f32 %v2181, %v2242
  %v2286 = vadd.f32 %v2182, %v2262
  %v2287 = vadd.f32 %v2183, %v2282
  %v2288 = vld [vmem:[%s4 + $0x8] sm:$0xf]
  %2289 = vst [vmem:[#allocation1] ss:$2 sm:$0xff] %v906
  %v2290 = vld.sshfl [vmem:[#allocation1 + $0x8] sm:$0xff pattern:$0x75316420]
  %2291 = vrot.lane.b32.xlu0 %v2290, 15
  %v2292 = vpop.permute.xlu0 %2291
  %2294 = vst [vmem:[#allocation1] ss:$2 sm:$0xff] %v905
  %s2295 = scalar_lea.vmem [#allocation1], 16
  %2296 = vst [vmem:[%s2295] ss:$2 sm:$0xff] %v906
  %v2297 = vld.sshfl [vmem:[#allocation1] sm:$0xff pattern:$0x75316420]
  %v2298 = vld.sshfl [vmem:[#allocation1 + $0x8] sm:$0xff pattern:$0x75316420]
  %v2299 = vld.sshfl [vmem:[#allocation1 + $0x10] sm:$0xff pattern:$0x75316420]
  %v2300 = vld.sshfl [vmem:[#allocation1 + $0x18] sm:$0xff pattern:$0x75316420]
  %2301 = vrot.lane.b32.xlu0 %v2297, 15
  %v2302 = vpop.permute.xlu0 %2301
  %2303 = vrot.lane.b32.xlu0 %v2298, 15
  %v2304 = vpop.permute.xlu0 %2303
  %2305 = vrot.lane.b32.xlu0 %v2299, 15
  %v2306 = vpop.permute.xlu0 %2305
  %2307 = vrot.lane.b32.xlu0 %v2300, 15
  %v2308 = vpop.permute.xlu0 %2307
  %vm2309 = vcmask 121856
  %v2310 = vsel %vm2309, %v2302, %v2304
  %v2311 = vsel %vm2309, %v2304, %v2306
  %v2312 = vsel %vm2309, %v2306, %v2308
  %v2317 = vsel %vm2309, %v2292, %v2302
  %s2318 = scalar_lea.vmem %s8, 2
  %v2319 = vld [vmem:[%s2318] ss:$8 sm:$0xf]
  %v2321 = vperm.slane %v2319, 0
  %v2322 = vperm.slane %v2319, 1
  %v2323 = vperm.slane %v2319, 2
  %v2324 = vperm.slane %v2319, 3
  %v2329 = vmul.f32 %v2317, %v2321
  %v2330 = vmul.f32 %v2310, %v2322
  %v2331 = vmul.f32 %v2311, %v2323
  %v2332 = vmul.f32 %v2312, %v2324
  %v2334 = vsel %vm979, %v2288, 0
  %v2337 = vsel %vm725, %v2329, 0
  %v2340 = vsel %vm725, %v2330, 0
  %v2343 = vsel %vm725, %v2331, 0
  %v2346 = vsel %vm725, %v2332, 0
  %2348 = vmatpush.msra.mxu0 0.0
  %2349 = vmatpush.msra.mxu0 0.0
  %2350 = vmatpush.msra.mxu0 0.0
  %2351 = vmatpush.msra.mxu0 0.0
  %2352 = vmatpush.msra.mxu0 0.0
  %2353 = vmatpush.msra.mxu0 0.0
  %2354 = vmatpush.msra.mxu0 0.0
  %2355 = vmatpush.msra.mxu0 0.0
  %2356 = vmatpush.msra.mxu0 0.0
  %2357 = vmatpush.msra.mxu0 0.0
  %2358 = vmatpush.msra.mxu0 0.0
  %2359 = vmatpush.msra.mxu0 0.0
  %2360 = vmatpush.msra.mxu0 0.0
  %2361 = vmatpush.msra.mxu0 0.0
  %2362 = vmatpush.msra.mxu0 0.0
  %2363 = vmatpush.msra.mxu0 %v2337
  %2364 = vmatmul.f32.gmra.mxu0 %v2334
  %v2365 = vpop.f32.mrf.mxu0
  %v2366 = vadd.f32 0.0, %v2365
  %2367 = vdwg.mxu0
  %2368 = vmatpush.msra.mxu0 0.0
  %2369 = vmatpush.msra.mxu0 0.0
  %2370 = vmatpush.msra.mxu0 0.0
  %2371 = vmatpush.msra.mxu0 0.0
  %2372 = vmatpush.msra.mxu0 0.0
  %2373 = vmatpush.msra.mxu0 0.0
  %2374 = vmatpush.msra.mxu0 0.0
  %2375 = vmatpush.msra.mxu0 0.0
  %2376 = vmatpush.msra.mxu0 0.0
  %2377 = vmatpush.msra.mxu0 0.0
  %2378 = vmatpush.msra.mxu0 0.0
  %2379 = vmatpush.msra.mxu0 0.0
  %2380 = vmatpush.msra.mxu0 0.0
  %2381 = vmatpush.msra.mxu0 0.0
  %2382 = vmatpush.msra.mxu0 0.0
  %2383 = vmatpush.msra.mxu0 %v2340
  %2384 = vmatmul.f32.gmra.mxu0 %v2334
  %v2385 = vpop.f32.mrf.mxu0
  %v2386 = vadd.f32 0.0, %v2385
  %2387 = vdwg.mxu0
  %2388 = vmatpush.msra.mxu0 0.0
  %2389 = vmatpush.msra.mxu0 0.0
  %2390 = vmatpush.msra.mxu0 0.0
  %2391 = vmatpush.msra.mxu0 0.0
  %2392 = vmatpush.msra.mxu0 0.0
  %2393 = vmatpush.msra.mxu0 0.0
  %2394 = vmatpush.msra.mxu0 0.0
  %2395 = vmatpush.msra.mxu0 0.0
  %2396 = vmatpush.msra.mxu0 0.0
  %2397 = vmatpush.msra.mxu0 0.0
  %2398 = vmatpush.msra.mxu0 0.0
  %2399 = vmatpush.msra.mxu0 0.0
  %2400 = vmatpush.msra.mxu0 0.0
  %2401 = vmatpush.msra.mxu0 0.0
  %2402 = vmatpush.msra.mxu0 0.0
  %2403 = vmatpush.msra.mxu0 %v2343
  %2404 = vmatmul.f32.gmra.mxu0 %v2334
  %v2405 = vpop.f32.mrf.mxu0
  %v2406 = vadd.f32 0.0, %v2405
  %2407 = vdwg.mxu0
  %2408 = vmatpush.msra.mxu0 0.0
  %2409 = vmatpush.msra.mxu0 0.0
  %2410 = vmatpush.msra.mxu0 0.0
  %2411 = vmatpush.msra.mxu0 0.0
  %2412 = vmatpush.msra.mxu0 0.0
  %2413 = vmatpush.msra.mxu0 0.0
  %2414 = vmatpush.msra.mxu0 0.0
  %2415 = vmatpush.msra.mxu0 0.0
  %2416 = vmatpush.msra.mxu0 0.0
  %2417 = vmatpush.msra.mxu0 0.0
  %2418 = vmatpush.msra.mxu0 0.0
  %2419 = vmatpush.msra.mxu0 0.0
  %2420 = vmatpush.msra.mxu0 0.0
  %2421 = vmatpush.msra.mxu0 0.0
  %2422 = vmatpush.msra.mxu0 0.0
  %2423 = vmatpush.msra.mxu0 %v2346
  %2424 = vmatmul.f32.gmra.mxu0 %v2334
  %v2425 = vpop.f32.mrf.mxu0
  %v2426 = vadd.f32 0.0, %v2425
  %2427 = vdwg.mxu0
  %v2428 = vadd.f32 %v2284, %v2366
  %v2429 = vadd.f32 %v2285, %v2386
  %v2430 = vadd.f32 %v2286, %v2406
  %v2431 = vadd.f32 %v2287, %v2426
  %v2432 = vld [vmem:[%s4 + $0xc] sm:$0xf]
  %2433 = vst [vmem:[#allocation1] ss:$2 sm:$0xff] %v873
  %s2434 = scalar_lea.vmem [#allocation1], 16
  %2435 = vst [vmem:[%s2434] ss:$2 sm:$0xff] %v874
  %v2436 = vld.sshfl [vmem:[#allocation1] sm:$0xff pattern:$0x75316420]
  %v2437 = vld.sshfl [vmem:[#allocation1 + $0x8] sm:$0xff pattern:$0x75316420]
  %v2438 = vld.sshfl [vmem:[#allocation1 + $0x10] sm:$0xff pattern:$0x75316420]
  %v2439 = vld.sshfl [vmem:[#allocation1 + $0x18] sm:$0xff pattern:$0x75316420]
  %v2441 = vsel %vm979, %v2432, 0
  %v2443 = vsel %vm725, %v2436, 0
  %v2445 = vsel %vm725, %v2437, 0
  %v2447 = vsel %vm725, %v2438, 0
  %v2449 = vsel %vm725, %v2439, 0
  %2451 = vmatpush.msra.mxu0 0.0
  %2452 = vmatpush.msra.mxu0 0.0
  %2453 = vmatpush.msra.mxu0 0.0
  %2454 = vmatpush.msra.mxu0 0.0
  %2455 = vmatpush.msra.mxu0 0.0
  %2456 = vmatpush.msra.mxu0 0.0
  %2457 = vmatpush.msra.mxu0 0.0
  %2458 = vmatpush.msra.mxu0 0.0
  %2459 = vmatpush.msra.mxu0 0.0
  %2460 = vmatpush.msra.mxu0 0.0
  %2461 = vmatpush.msra.mxu0 0.0
  %2462 = vmatpush.msra.mxu0 0.0
  %2463 = vmatpush.msra.mxu0 0.0
  %2464 = vmatpush.msra.mxu0 0.0
  %2465 = vmatpush.msra.mxu0 0.0
  %2466 = vmatpush.msra.mxu0 %v2443
  %2467 = vmatmul.f32.gmra.mxu0 %v2441
  %v2468 = vpop.f32.mrf.mxu0
  %v2469 = vadd.f32 0.0, %v2468
  %2470 = vdwg.mxu0
  %2471 = vmatpush.msra.mxu0 0.0
  %2472 = vmatpush.msra.mxu0 0.0
  %2473 = vmatpush.msra.mxu0 0.0
  %2474 = vmatpush.msra.mxu0 0.0
  %2475 = vmatpush.msra.mxu0 0.0
  %2476 = vmatpush.msra.mxu0 0.0
  %2477 = vmatpush.msra.mxu0 0.0
  %2478 = vmatpush.msra.mxu0 0.0
  %2479 = vmatpush.msra.mxu0 0.0
  %2480 = vmatpush.msra.mxu0 0.0
  %2481 = vmatpush.msra.mxu0 0.0
  %2482 = vmatpush.msra.mxu0 0.0
  %2483 = vmatpush.msra.mxu0 0.0
  %2484 = vmatpush.msra.mxu0 0.0
  %2485 = vmatpush.msra.mxu0 0.0
  %2486 = vmatpush.msra.mxu0 %v2445
  %2487 = vmatmul.f32.gmra.mxu0 %v2441
  %v2488 = vpop.f32.mrf.mxu0
  %v2489 = vadd.f32 0.0, %v2488
  %2490 = vdwg.mxu0
  %2491 = vmatpush.msra.mxu0 0.0
  %2492 = vmatpush.msra.mxu0 0.0
  %2493 = vmatpush.msra.mxu0 0.0
  %2494 = vmatpush.msra.mxu0 0.0
  %2495 = vmatpush.msra.mxu0 0.0
  %2496 = vmatpush.msra.mxu0 0.0
  %2497 = vmatpush.msra.mxu0 0.0
  %2498 = vmatpush.msra.mxu0 0.0
  %2499 = vmatpush.msra.mxu0 0.0
  %2500 = vmatpush.msra.mxu0 0.0
  %2501 = vmatpush.msra.mxu0 0.0
  %2502 = vmatpush.msra.mxu0 0.0
  %2503 = vmatpush.msra.mxu0 0.0
  %2504 = vmatpush.msra.mxu0 0.0
  %2505 = vmatpush.msra.mxu0 0.0
  %2506 = vmatpush.msra.mxu0 %v2447
  %2507 = vmatmul.f32.gmra.mxu0 %v2441
  %v2508 = vpop.f32.mrf.mxu0
  %v2509 = vadd.f32 0.0, %v2508
  %2510 = vdwg.mxu0
  %2511 = vmatpush.msra.mxu0 0.0
  %2512 = vmatpush.msra.mxu0 0.0
  %2513 = vmatpush.msra.mxu0 0.0
  %2514 = vmatpush.msra.mxu0 0.0
  %2515 = vmatpush.msra.mxu0 0.0
  %2516 = vmatpush.msra.mxu0 0.0
  %2517 = vmatpush.msra.mxu0 0.0
  %2518 = vmatpush.msra.mxu0 0.0
  %2519 = vmatpush.msra.mxu0 0.0
  %2520 = vmatpush.msra.mxu0 0.0
  %2521 = vmatpush.msra.mxu0 0.0
  %2522 = vmatpush.msra.mxu0 0.0
  %2523 = vmatpush.msra.mxu0 0.0
  %2524 = vmatpush.msra.mxu0 0.0
  %2525 = vmatpush.msra.mxu0 0.0
  %2526 = vmatpush.msra.mxu0 %v2449
  %2527 = vmatmul.f32.gmra.mxu0 %v2441
  %v2528 = vpop.f32.mrf.mxu0
  %v2529 = vadd.f32 0.0, %v2528
  %2530 = vdwg.mxu0
  %v2531 = vadd.f32 %v2428, %v2469
  %v2532 = vadd.f32 %v2429, %v2489
  %v2533 = vadd.f32 %v2430, %v2509
  %v2534 = vadd.f32 %v2431, %v2529
  %v2535 = vld [vmem:[%s4 + $0x10] sm:$0xf]
  %2536 = vst [vmem:[#allocation1] ss:$2 sm:$0xff] %v889
  %s2537 = scalar_lea.vmem [#allocation1], 16
  %2538 = vst [vmem:[%s2537] ss:$2 sm:$0xff] %v890
  %v2539 = vld.sshfl [vmem:[#allocation1] sm:$0xff pattern:$0x75316420]
  %v2540 = vld.sshfl [vmem:[#allocation1 + $0x8] sm:$0xff pattern:$0x75316420]
  %v2541 = vld.sshfl [vmem:[#allocation1 + $0x10] sm:$0xff pattern:$0x75316420]
  %v2542 = vld.sshfl [vmem:[#allocation1 + $0x18] sm:$0xff pattern:$0x75316420]
  %v2544 = vsel %vm979, %v2535, 0
  %v2546 = vsel %vm725, %v2539, 0
  %v2548 = vsel %vm725, %v2540, 0
  %v2550 = vsel %vm725, %v2541, 0
  %v2552 = vsel %vm725, %v2542, 0
  %2554 = vmatpush.msra.mxu0 0.0
  %2555 = vmatpush.msra.mxu0 0.0
  %2556 = vmatpush.msra.mxu0 0.0
  %2557 = vmatpush.msra.mxu0 0.0
  %2558 = vmatpush.msra.mxu0 0.0
  %2559 = vmatpush.msra.mxu0 0.0
  %2560 = vmatpush.msra.mxu0 0.0
  %2561 = vmatpush.msra.mxu0 0.0
  %2562 = vmatpush.msra.mxu0 0.0
  %2563 = vmatpush.msra.mxu0 0.0
  %2564 = vmatpush.msra.mxu0 0.0
  %2565 = vmatpush.msra.mxu0 0.0
  %2566 = vmatpush.msra.mxu0 0.0
  %2567 = vmatpush.msra.mxu0 0.0
  %2568 = vmatpush.msra.mxu0 0.0
  %2569 = vmatpush.msra.mxu0 %v2546
  %2570 = vmatmul.f32.gmra.mxu0 %v2544
  %v2571 = vpop.f32.mrf.mxu0
  %v2572 = vadd.f32 0.0, %v2571
  %2573 = vdwg.mxu0
  %2574 = vmatpush.msra.mxu0 0.0
  %2575 = vmatpush.msra.mxu0 0.0
  %2576 = vmatpush.msra.mxu0 0.0
  %2577 = vmatpush.msra.mxu0 0.0
  %2578 = vmatpush.msra.mxu0 0.0
  %2579 = vmatpush.msra.mxu0 0.0
  %2580 = vmatpush.msra.mxu0 0.0
  %2581 = vmatpush.msra.mxu0 0.0
  %2582 = vmatpush.msra.mxu0 0.0
  %2583 = vmatpush.msra.mxu0 0.0
  %2584 = vmatpush.msra.mxu0 0.0
  %2585 = vmatpush.msra.mxu0 0.0
  %2586 = vmatpush.msra.mxu0 0.0
  %2587 = vmatpush.msra.mxu0 0.0
  %2588 = vmatpush.msra.mxu0 0.0
  %2589 = vmatpush.msra.mxu0 %v2548
  %2590 = vmatmul.f32.gmra.mxu0 %v2544
  %v2591 = vpop.f32.mrf.mxu0
  %v2592 = vadd.f32 0.0, %v2591
  %2593 = vdwg.mxu0
  %2594 = vmatpush.msra.mxu0 0.0
  %2595 = vmatpush.msra.mxu0 0.0
  %2596 = vmatpush.msra.mxu0 0.0
  %2597 = vmatpush.msra.mxu0 0.0
  %2598 = vmatpush.msra.mxu0 0.0
  %2599 = vmatpush.msra.mxu0 0.0
  %2600 = vmatpush.msra.mxu0 0.0
  %2601 = vmatpush.msra.mxu0 0.0
  %2602 = vmatpush.msra.mxu0 0.0
  %2603 = vmatpush.msra.mxu0 0.0
  %2604 = vmatpush.msra.mxu0 0.0
  %2605 = vmatpush.msra.mxu0 0.0
  %2606 = vmatpush.msra.mxu0 0.0
  %2607 = vmatpush.msra.mxu0 0.0
  %2608 = vmatpush.msra.mxu0 0.0
  %2609 = vmatpush.msra.mxu0 %v2550
  %2610 = vmatmul.f32.gmra.mxu0 %v2544
  %v2611 = vpop.f32.mrf.mxu0
  %v2612 = vadd.f32 0.0, %v2611
  %2613 = vdwg.mxu0
  %2614 = vmatpush.msra.mxu0 0.0
  %2615 = vmatpush.msra.mxu0 0.0
  %2616 = vmatpush.msra.mxu0 0.0
  %2617 = vmatpush.msra.mxu0 0.0
  %2618 = vmatpush.msra.mxu0 0.0
  %2619 = vmatpush.msra.mxu0 0.0
  %2620 = vmatpush.msra.mxu0 0.0
  %2621 = vmatpush.msra.mxu0 0.0
  %2622 = vmatpush.msra.mxu0 0.0
  %2623 = vmatpush.msra.mxu0 0.0
  %2624 = vmatpush.msra.mxu0 0.0
  %2625 = vmatpush.msra.mxu0 0.0
  %2626 = vmatpush.msra.mxu0 0.0
  %2627 = vmatpush.msra.mxu0 0.0
  %2628 = vmatpush.msra.mxu0 0.0
  %2629 = vmatpush.msra.mxu0 %v2552
  %2630 = vmatmul.f32.gmra.mxu0 %v2544
  %v2631 = vpop.f32.mrf.mxu0
  %v2632 = vadd.f32 0.0, %v2631
  %2633 = vdwg.mxu0
  %v2634 = vadd.f32 %v2531, %v2572
  %v2635 = vadd.f32 %v2532, %v2592
  %v2636 = vadd.f32 %v2533, %v2612
  %v2637 = vadd.f32 %v2534, %v2632
  %v2638 = vld [vmem:[%s4 + $0x14] sm:$0xf]
  %2639 = vst [vmem:[#allocation1] ss:$2 sm:$0xff] %v873
  %s2640 = scalar_lea.vmem [#allocation1], 16
  %2641 = vst [vmem:[%s2640] ss:$2 sm:$0xff] %v874
  %v2642 = vld.sshfl [vmem:[#allocation1] sm:$0xff pattern:$0x75316420]
  %v2643 = vld.sshfl [vmem:[#allocation1 + $0x8] sm:$0xff pattern:$0x75316420]
  %v2644 = vld.sshfl [vmem:[#allocation1 + $0x10] sm:$0xff pattern:$0x75316420]
  %v2645 = vld.sshfl [vmem:[#allocation1 + $0x18] sm:$0xff pattern:$0x75316420]
  %2646 = vrot.lane.b32.xlu0 %v2642, 127
  %v2647 = vpop.permute.xlu0 %2646
  %2648 = vrot.lane.b32.xlu0 %v2643, 127
  %v2649 = vpop.permute.xlu0 %2648
  %2650 = vrot.lane.b32.xlu0 %v2644, 127
  %v2651 = vpop.permute.xlu0 %2650
  %2652 = vrot.lane.b32.xlu0 %v2645, 127
  %v2653 = vpop.permute.xlu0 %2652
  %vm2654 = vcmask 1039360
  %v2655 = vsel %vm2654, %v2647, %v2649
  %v2656 = vsel %vm2654, %v2649, %v2651
  %v2657 = vsel %vm2654, %v2651, %v2653
  %2662 = vst [vmem:[#allocation1] ss:$2 sm:$0xff] %v873
  %v2663 = vld.sshfl [vmem:[#allocation1] sm:$0xff pattern:$0x75316420]
  %2664 = vrot.lane.b32.xlu0 %v2663, 127
  %v2665 = vpop.permute.xlu0 %2664
  %v2667 = vsel %vm2654, %v2653, %v2665
  %s2668 = scalar_lea.vmem %s8, 5
  %v2669 = vld [vmem:[%s2668] ss:$8 sm:$0xf]
  %v2671 = vperm.slane %v2669, 0
  %v2672 = vperm.slane %v2669, 1
  %v2673 = vperm.slane %v2669, 2
  %v2674 = vperm.slane %v2669, 3
  %v2679 = vmul.f32 %v2655, %v2671
  %v2680 = vmul.f32 %v2656, %v2672
  %v2681 = vmul.f32 %v2657, %v2673
  %v2682 = vmul.f32 %v2667, %v2674
  %v2684 = vsel %vm979, %v2638, 0
  %v2687 = vsel %vm725, %v2679, 0
  %v2690 = vsel %vm725, %v2680, 0
  %v2693 = vsel %vm725, %v2681, 0
  %v2696 = vsel %vm725, %v2682, 0
  %2698 = vmatpush.msra.mxu0 0.0
  %2699 = vmatpush.msra.mxu0 0.0
  %2700 = vmatpush.msra.mxu0 0.0
  %2701 = vmatpush.msra.mxu0 0.0
  %2702 = vmatpush.msra.mxu0 0.0
  %2703 = vmatpush.msra.mxu0 0.0
  %2704 = vmatpush.msra.mxu0 0.0
  %2705 = vmatpush.msra.mxu0 0.0
  %2706 = vmatpush.msra.mxu0 0.0
  %2707 = vmatpush.msra.mxu0 0.0
  %2708 = vmatpush.msra.mxu0 0.0
  %2709 = vmatpush.msra.mxu0 0.0
  %2710 = vmatpush.msra.mxu0 0.0
  %2711 = vmatpush.msra.mxu0 0.0
  %2712 = vmatpush.msra.mxu0 0.0
  %2713 = vmatpush.msra.mxu0 %v2687
  %2714 = vmatmul.f32.gmra.mxu0 %v2684
  %v2715 = vpop.f32.mrf.mxu0
  %v2716 = vadd.f32 0.0, %v2715
  %2717 = vdwg.mxu0
  %2718 = vmatpush.msra.mxu0 0.0
  %2719 = vmatpush.msra.mxu0 0.0
  %2720 = vmatpush.msra.mxu0 0.0
  %2721 = vmatpush.msra.mxu0 0.0
  %2722 = vmatpush.msra.mxu0 0.0
  %2723 = vmatpush.msra.mxu0 0.0
  %2724 = vmatpush.msra.mxu0 0.0
  %2725 = vmatpush.msra.mxu0 0.0
  %2726 = vmatpush.msra.mxu0 0.0
  %2727 = vmatpush.msra.mxu0 0.0
  %2728 = vmatpush.msra.mxu0 0.0
  %2729 = vmatpush.msra.mxu0 0.0
  %2730 = vmatpush.msra.mxu0 0.0
  %2731 = vmatpush.msra.mxu0 0.0
  %2732 = vmatpush.msra.mxu0 0.0
  %2733 = vmatpush.msra.mxu0 %v2690
  %2734 = vmatmul.f32.gmra.mxu0 %v2684
  %v2735 = vpop.f32.mrf.mxu0
  %v2736 = vadd.f32 0.0, %v2735
  %2737 = vdwg.mxu0
  %2738 = vmatpush.msra.mxu0 0.0
  %2739 = vmatpush.msra.mxu0 0.0
  %2740 = vmatpush.msra.mxu0 0.0
  %2741 = vmatpush.msra.mxu0 0.0
  %2742 = vmatpush.msra.mxu0 0.0
  %2743 = vmatpush.msra.mxu0 0.0
  %2744 = vmatpush.msra.mxu0 0.0
  %2745 = vmatpush.msra.mxu0 0.0
  %2746 = vmatpush.msra.mxu0 0.0
  %2747 = vmatpush.msra.mxu0 0.0
  %2748 = vmatpush.msra.mxu0 0.0
  %2749 = vmatpush.msra.mxu0 0.0
  %2750 = vmatpush.msra.mxu0 0.0
  %2751 = vmatpush.msra.mxu0 0.0
  %2752 = vmatpush.msra.mxu0 0.0
  %2753 = vmatpush.msra.mxu0 %v2693
  %2754 = vmatmul.f32.gmra.mxu0 %v2684
  %v2755 = vpop.f32.mrf.mxu0
  %v2756 = vadd.f32 0.0, %v2755
  %2757 = vdwg.mxu0
  %2758 = vmatpush.msra.mxu0 0.0
  %2759 = vmatpush.msra.mxu0 0.0
  %2760 = vmatpush.msra.mxu0 0.0
  %2761 = vmatpush.msra.mxu0 0.0
  %2762 = vmatpush.msra.mxu0 0.0
  %2763 = vmatpush.msra.mxu0 0.0
  %2764 = vmatpush.msra.mxu0 0.0
  %2765 = vmatpush.msra.mxu0 0.0
  %2766 = vmatpush.msra.mxu0 0.0
  %2767 = vmatpush.msra.mxu0 0.0
  %2768 = vmatpush.msra.mxu0 0.0
  %2769 = vmatpush.msra.mxu0 0.0
  %2770 = vmatpush.msra.mxu0 0.0
  %2771 = vmatpush.msra.mxu0 0.0
  %2772 = vmatpush.msra.mxu0 0.0
  %2773 = vmatpush.msra.mxu0 %v2696
  %2774 = vmatmul.f32.gmra.mxu0 %v2684
  %v2775 = vpop.f32.mrf.mxu0
  %v2776 = vadd.f32 0.0, %v2775
  %2777 = vdwg.mxu0
  %v2778 = vadd.f32 %v2634, %v2716
  %v2779 = vadd.f32 %v2635, %v2736
  %v2780 = vadd.f32 %v2636, %v2756
  %v2781 = vadd.f32 %v2637, %v2776
  %v2782 = vld [vmem:[%s4 + $0x18] sm:$0xf]
  %2783 = vst [vmem:[#allocation1] ss:$2 sm:$0xff] %v905
  %s2784 = scalar_lea.vmem [#allocation1], 16
  %2785 = vst [vmem:[%s2784] ss:$2 sm:$0xff] %v906
  %v2786 = vld.sshfl [vmem:[#allocation1] sm:$0xff pattern:$0x75316420]
  %v2787 = vld.sshfl [vmem:[#allocation1 + $0x8] sm:$0xff pattern:$0x75316420]
  %v2788 = vld.sshfl [vmem:[#allocation1 + $0x10] sm:$0xff pattern:$0x75316420]
  %v2789 = vld.sshfl [vmem:[#allocation1 + $0x18] sm:$0xff pattern:$0x75316420]
  %v2791 = vsel %vm979, %v2782, 0
  %v2793 = vsel %vm725, %v2786, 0
  %v2795 = vsel %vm725, %v2787, 0
  %v2797 = vsel %vm725, %v2788, 0
  %v2799 = vsel %vm725, %v2789, 0
  %2801 = vmatpush.msra.mxu0 0.0
  %2802 = vmatpush.msra.mxu0 0.0
  %2803 = vmatpush.msra.mxu0 0.0
  %2804 = vmatpush.msra.mxu0 0.0
  %2805 = vmatpush.msra.mxu0 0.0
  %2806 = vmatpush.msra.mxu0 0.0
  %2807 = vmatpush.msra.mxu0 0.0
  %2808 = vmatpush.msra.mxu0 0.0
  %2809 = vmatpush.msra.mxu0 0.0
  %2810 = vmatpush.msra.mxu0 0.0
  %2811 = vmatpush.msra.mxu0 0.0
  %2812 = vmatpush.msra.mxu0 0.0
  %2813 = vmatpush.msra.mxu0 0.0
  %2814 = vmatpush.msra.mxu0 0.0
  %2815 = vmatpush.msra.mxu0 0.0
  %2816 = vmatpush.msra.mxu0 %v2793
  %2817 = vmatmul.f32.gmra.mxu0 %v2791
  %v2818 = vpop.f32.mrf.mxu0
  %v2819 = vadd.f32 0.0, %v2818
  %2820 = vdwg.mxu0
  %2821 = vmatpush.msra.mxu0 0.0
  %2822 = vmatpush.msra.mxu0 0.0
  %2823 = vmatpush.msra.mxu0 0.0
  %2824 = vmatpush.msra.mxu0 0.0
  %2825 = vmatpush.msra.mxu0 0.0
  %2826 = vmatpush.msra.mxu0 0.0
  %2827 = vmatpush.msra.mxu0 0.0
  %2828 = vmatpush.msra.mxu0 0.0
  %2829 = vmatpush.msra.mxu0 0.0
  %2830 = vmatpush.msra.mxu0 0.0
  %2831 = vmatpush.msra.mxu0 0.0
  %2832 = vmatpush.msra.mxu0 0.0
  %2833 = vmatpush.msra.mxu0 0.0
  %2834 = vmatpush.msra.mxu0 0.0
  %2835 = vmatpush.msra.mxu0 0.0
  %2836 = vmatpush.msra.mxu0 %v2795
  %2837 = vmatmul.f32.gmra.mxu0 %v2791
  %v2838 = vpop.f32.mrf.mxu0
  %v2839 = vadd.f32 0.0, %v2838
  %2840 = vdwg.mxu0
  %2841 = vmatpush.msra.mxu0 0.0
  %2842 = vmatpush.msra.mxu0 0.0
  %2843 = vmatpush.msra.mxu0 0.0
  %2844 = vmatpush.msra.mxu0 0.0
  %2845 = vmatpush.msra.mxu0 0.0
  %2846 = vmatpush.msra.mxu0 0.0
  %2847 = vmatpush.msra.mxu0 0.0
  %2848 = vmatpush.msra.mxu0 0.0
  %2849 = vmatpush.msra.mxu0 0.0
  %2850 = vmatpush.msra.mxu0 0.0
  %2851 = vmatpush.msra.mxu0 0.0
  %2852 = vmatpush.msra.mxu0 0.0
  %2853 = vmatpush.msra.mxu0 0.0
  %2854 = vmatpush.msra.mxu0 0.0
  %2855 = vmatpush.msra.mxu0 0.0
  %2856 = vmatpush.msra.mxu0 %v2797
  %2857 = vmatmul.f32.gmra.mxu0 %v2791
  %v2858 = vpop.f32.mrf.mxu0
  %v2859 = vadd.f32 0.0, %v2858
  %2860 = vdwg.mxu0
  %2861 = vmatpush.msra.mxu0 0.0
  %2862 = vmatpush.msra.mxu0 0.0
  %2863 = vmatpush.msra.mxu0 0.0
  %2864 = vmatpush.msra.mxu0 0.0
  %2865 = vmatpush.msra.mxu0 0.0
  %2866 = vmatpush.msra.mxu0 0.0
  %2867 = vmatpush.msra.mxu0 0.0
  %2868 = vmatpush.msra.mxu0 0.0
  %2869 = vmatpush.msra.mxu0 0.0
  %2870 = vmatpush.msra.mxu0 0.0
  %2871 = vmatpush.msra.mxu0 0.0
  %2872 = vmatpush.msra.mxu0 0.0
  %2873 = vmatpush.msra.mxu0 0.0
  %2874 = vmatpush.msra.mxu0 0.0
  %2875 = vmatpush.msra.mxu0 0.0
  %2876 = vmatpush.msra.mxu0 %v2799
  %2877 = vmatmul.f32.gmra.mxu0 %v2791
  %v2878 = vpop.f32.mrf.mxu0
  %v2879 = vadd.f32 0.0, %v2878
  %2880 = vdwg.mxu0
  %v2881 = vadd.f32 %v2778, %v2819
  %v2882 = vadd.f32 %v2779, %v2839
  %v2883 = vadd.f32 %v2780, %v2859
  %v2884 = vadd.f32 %v2781, %v2879
  %v2885 = vld [vmem:[%s4 + $0x1c] sm:$0xf]
  %2886 = vst [vmem:[#allocation1] ss:$2 sm:$0xff] %v921
  %s2887 = scalar_lea.vmem [#allocation1], 16
  %2888 = vst [vmem:[%s2887] ss:$2 sm:$0xff] %v922
  %v2889 = vld.sshfl [vmem:[#allocation1] sm:$0xff pattern:$0x75316420]
  %v2890 = vld.sshfl [vmem:[#allocation1 + $0x8] sm:$0xff pattern:$0x75316420]
  %v2891 = vld.sshfl [vmem:[#allocation1 + $0x10] sm:$0xff pattern:$0x75316420]
  %v2892 = vld.sshfl [vmem:[#allocation1 + $0x18] sm:$0xff pattern:$0x75316420]
  %v2894 = vsel %vm979, %v2885, 0
  %v2896 = vsel %vm725, %v2889, 0
  %v2898 = vsel %vm725, %v2890, 0
  %v2900 = vsel %vm725, %v2891, 0
  %v2902 = vsel %vm725, %v2892, 0
  %2904 = vmatpush.msra.mxu0 0.0
  %2905 = vmatpush.msra.mxu0 0.0
  %2906 = vmatpush.msra.mxu0 0.0
  %2907 = vmatpush.msra.mxu0 0.0
  %2908 = vmatpush.msra.mxu0 0.0
  %2909 = vmatpush.msra.mxu0 0.0
  %2910 = vmatpush.msra.mxu0 0.0
  %2911 = vmatpush.msra.mxu0 0.0
  %2912 = vmatpush.msra.mxu0 0.0
  %2913 = vmatpush.msra.mxu0 0.0
  %2914 = vmatpush.msra.mxu0 0.0
  %2915 = vmatpush.msra.mxu0 0.0
  %2916 = vmatpush.msra.mxu0 0.0
  %2917 = vmatpush.msra.mxu0 0.0
  %2918 = vmatpush.msra.mxu0 0.0
  %2919 = vmatpush.msra.mxu0 %v2896
  %2920 = vmatmul.f32.gmra.mxu0 %v2894
  %v2921 = vpop.f32.mrf.mxu0
  %v2922 = vadd.f32 0.0, %v2921
  %2923 = vdwg.mxu0
  %2924 = vmatpush.msra.mxu0 0.0
  %2925 = vmatpush.msra.mxu0 0.0
  %2926 = vmatpush.msra.mxu0 0.0
  %2927 = vmatpush.msra.mxu0 0.0
  %2928 = vmatpush.msra.mxu0 0.0
  %2929 = vmatpush.msra.mxu0 0.0
  %2930 = vmatpush.msra.mxu0 0.0
  %2931 = vmatpush.msra.mxu0 0.0
  %2932 = vmatpush.msra.mxu0 0.0
  %2933 = vmatpush.msra.mxu0 0.0
  %2934 = vmatpush.msra.mxu0 0.0
  %2935 = vmatpush.msra.mxu0 0.0
  %2936 = vmatpush.msra.mxu0 0.0
  %2937 = vmatpush.msra.mxu0 0.0
  %2938 = vmatpush.msra.mxu0 0.0
  %2939 = vmatpush.msra.mxu0 %v2898
  %2940 = vmatmul.f32.gmra.mxu0 %v2894
  %v2941 = vpop.f32.mrf.mxu0
  %v2942 = vadd.f32 0.0, %v2941
  %2943 = vdwg.mxu0
  %2944 = vmatpush.msra.mxu0 0.0
  %2945 = vmatpush.msra.mxu0 0.0
  %2946 = vmatpush.msra.mxu0 0.0
  %2947 = vmatpush.msra.mxu0 0.0
  %2948 = vmatpush.msra.mxu0 0.0
  %2949 = vmatpush.msra.mxu0 0.0
  %2950 = vmatpush.msra.mxu0 0.0
  %2951 = vmatpush.msra.mxu0 0.0
  %2952 = vmatpush.msra.mxu0 0.0
  %2953 = vmatpush.msra.mxu0 0.0
  %2954 = vmatpush.msra.mxu0 0.0
  %2955 = vmatpush.msra.mxu0 0.0
  %2956 = vmatpush.msra.mxu0 0.0
  %2957 = vmatpush.msra.mxu0 0.0
  %2958 = vmatpush.msra.mxu0 0.0
  %2959 = vmatpush.msra.mxu0 %v2900
  %2960 = vmatmul.f32.gmra.mxu0 %v2894
  %v2961 = vpop.f32.mrf.mxu0
  %v2962 = vadd.f32 0.0, %v2961
  %2963 = vdwg.mxu0
  %2964 = vmatpush.msra.mxu0 0.0
  %2965 = vmatpush.msra.mxu0 0.0
  %2966 = vmatpush.msra.mxu0 0.0
  %2967 = vmatpush.msra.mxu0 0.0
  %2968 = vmatpush.msra.mxu0 0.0
  %2969 = vmatpush.msra.mxu0 0.0
  %2970 = vmatpush.msra.mxu0 0.0
  %2971 = vmatpush.msra.mxu0 0.0
  %2972 = vmatpush.msra.mxu0 0.0
  %2973 = vmatpush.msra.mxu0 0.0
  %2974 = vmatpush.msra.mxu0 0.0
  %2975 = vmatpush.msra.mxu0 0.0
  %2976 = vmatpush.msra.mxu0 0.0
  %2977 = vmatpush.msra.mxu0 0.0
  %2978 = vmatpush.msra.mxu0 0.0
  %2979 = vmatpush.msra.mxu0 %v2902
  %2980 = vmatmul.f32.gmra.mxu0 %v2894
  %v2981 = vpop.f32.mrf.mxu0
  %v2982 = vadd.f32 0.0, %v2981
  %2983 = vdwg.mxu0
  %v2984 = vadd.f32 %v2881, %v2922
  %v2985 = vadd.f32 %v2882, %v2942
  %v2986 = vadd.f32 %v2883, %v2962
  %v2987 = vadd.f32 %v2884, %v2982
  %v2988 = vld [vmem:[%s4 + $0x20] sm:$0xf]
  %2989 = vst [vmem:[#allocation1] ss:$2 sm:$0xff] %v905
  %s2990 = scalar_lea.vmem [#allocation1], 16
  %2991 = vst [vmem:[%s2990] ss:$2 sm:$0xff] %v906
  %v2992 = vld.sshfl [vmem:[#allocation1] sm:$0xff pattern:$0x75316420]
  %v2993 = vld.sshfl [vmem:[#allocation1 + $0x8] sm:$0xff pattern:$0x75316420]
  %v2994 = vld.sshfl [vmem:[#allocation1 + $0x10] sm:$0xff pattern:$0x75316420]
  %v2995 = vld.sshfl [vmem:[#allocation1 + $0x18] sm:$0xff pattern:$0x75316420]
  %2996 = vrot.lane.b32.xlu0 %v2992, 127
  %v2997 = vpop.permute.xlu0 %2996
  %2998 = vrot.lane.b32.xlu0 %v2993, 127
  %v2999 = vpop.permute.xlu0 %2998
  %3000 = vrot.lane.b32.xlu0 %v2994, 127
  %v3001 = vpop.permute.xlu0 %3000
  %3002 = vrot.lane.b32.xlu0 %v2995, 127
  %v3003 = vpop.permute.xlu0 %3002
  %v3004 = vsel %vm2654, %v2997, %v2999
  %v3005 = vsel %vm2654, %v2999, %v3001
  %v3006 = vsel %vm2654, %v3001, %v3003
  %3011 = vst [vmem:[#allocation1] ss:$2 sm:$0xff] %v905
  %v3012 = vld.sshfl [vmem:[#allocation1] sm:$0xff pattern:$0x75316420]
  %3013 = vrot.lane.b32.xlu0 %v3012, 127
  %v3014 = vpop.permute.xlu0 %3013
  %v3016 = vsel %vm2654, %v3003, %v3014
  %v3017 = vmul.f32 %v3004, %v2671
  %v3018 = vmul.f32 %v3005, %v2672
  %v3019 = vmul.f32 %v3006, %v2673
  %v3020 = vmul.f32 %v3016, %v2674
  %v3022 = vsel %vm979, %v2988, 0
  %v3025 = vsel %vm725, %v3017, 0
  %v3028 = vsel %vm725, %v3018, 0
  %v3031 = vsel %vm725, %v3019, 0
  %v3034 = vsel %vm725, %v3020, 0
  %3036 = vmatpush.msra.mxu0 0.0
  %3037 = vmatpush.msra.mxu0 0.0
  %3038 = vmatpush.msra.mxu0 0.0
  %3039 = vmatpush.msra.mxu0 0.0
  %3040 = vmatpush.msra.mxu0 0.0
  %3041 = vmatpush.msra.mxu0 0.0
  %3042 = vmatpush.msra.mxu0 0.0
  %3043 = vmatpush.msra.mxu0 0.0
  %3044 = vmatpush.msra.mxu0 0.0
  %3045 = vmatpush.msra.mxu0 0.0
  %3046 = vmatpush.msra.mxu0 0.0
  %3047 = vmatpush.msra.mxu0 0.0
  %3048 = vmatpush.msra.mxu0 0.0
  %3049 = vmatpush.msra.mxu0 0.0
  %3050 = vmatpush.msra.mxu0 0.0
  %3051 = vmatpush.msra.mxu0 %v3025
  %3052 = vmatmul.f32.gmra.mxu0 %v3022
  %v3053 = vpop.f32.mrf.mxu0
  %v3054 = vadd.f32 0.0, %v3053
  %3055 = vdwg.mxu0
  %3056 = vmatpush.msra.mxu0 0.0
  %3057 = vmatpush.msra.mxu0 0.0
  %3058 = vmatpush.msra.mxu0 0.0
  %3059 = vmatpush.msra.mxu0 0.0
  %3060 = vmatpush.msra.mxu0 0.0
  %3061 = vmatpush.msra.mxu0 0.0
  %3062 = vmatpush.msra.mxu0 0.0
  %3063 = vmatpush.msra.mxu0 0.0
  %3064 = vmatpush.msra.mxu0 0.0
  %3065 = vmatpush.msra.mxu0 0.0
  %3066 = vmatpush.msra.mxu0 0.0
  %3067 = vmatpush.msra.mxu0 0.0
  %3068 = vmatpush.msra.mxu0 0.0
  %3069 = vmatpush.msra.mxu0 0.0
  %3070 = vmatpush.msra.mxu0 0.0
  %3071 = vmatpush.msra.mxu0 %v3028
  %3072 = vmatmul.f32.gmra.mxu0 %v3022
  %v3073 = vpop.f32.mrf.mxu0
  %v3074 = vadd.f32 0.0, %v3073
  %3075 = vdwg.mxu0
  %3076 = vmatpush.msra.mxu0 0.0
  %3077 = vmatpush.msra.mxu0 0.0
  %3078 = vmatpush.msra.mxu0 0.0
  %3079 = vmatpush.msra.mxu0 0.0
  %3080 = vmatpush.msra.mxu0 0.0
  %3081 = vmatpush.msra.mxu0 0.0
  %3082 = vmatpush.msra.mxu0 0.0
  %3083 = vmatpush.msra.mxu0 0.0
  %3084 = vmatpush.msra.mxu0 0.0
  %3085 = vmatpush.msra.mxu0 0.0
  %3086 = vmatpush.msra.mxu0 0.0
  %3087 = vmatpush.msra.mxu0 0.0
  %3088 = vmatpush.msra.mxu0 0.0
  %3089 = vmatpush.msra.mxu0 0.0
  %3090 = vmatpush.msra.mxu0 0.0
  %3091 = vmatpush.msra.mxu0 %v3031
  %3092 = vmatmul.f32.gmra.mxu0 %v3022
  %v3093 = vpop.f32.mrf.mxu0
  %v3094 = vadd.f32 0.0, %v3093
  %3095 = vdwg.mxu0
  %3096 = vmatpush.msra.mxu0 0.0
  %3097 = vmatpush.msra.mxu0 0.0
  %3098 = vmatpush.msra.mxu0 0.0
  %3099 = vmatpush.msra.mxu0 0.0
  %3100 = vmatpush.msra.mxu0 0.0
  %3101 = vmatpush.msra.mxu0 0.0
  %3102 = vmatpush.msra.mxu0 0.0
  %3103 = vmatpush.msra.mxu0 0.0
  %3104 = vmatpush.msra.mxu0 0.0
  %3105 = vmatpush.msra.mxu0 0.0
  %3106 = vmatpush.msra.mxu0 0.0
  %3107 = vmatpush.msra.mxu0 0.0
  %3108 = vmatpush.msra.mxu0 0.0
  %3109 = vmatpush.msra.mxu0 0.0
  %3110 = vmatpush.msra.mxu0 0.0
  %3111 = vmatpush.msra.mxu0 %v3034
  %3112 = vmatmul.f32.gmra.mxu0 %v3022
  %v3113 = vpop.f32.mrf.mxu0
  %v3114 = vadd.f32 0.0, %v3113
  %3115 = vdwg.mxu0
  %v3116 = vadd.f32 %v2984, %v3054
  %v3117 = vadd.f32 %v2985, %v3074
  %v3118 = vadd.f32 %v2986, %v3094
  %v3119 = vadd.f32 %v2987, %v3114
  %v3124 = vrot.slane %v3117, 4
  %v3125 = vrot.slane %v3119, 4
  %v3126 = vsel %vm725, %v3116, %v3124
  %v3127 = vsel %vm725, %v3118, %v3125
  %s3130 = scalar_lea.vmem %s9, 16
  %3131 = vst [vmem:[%s3130] sm:$0xff] %v3126
  %3132 = vst [vmem:[%s3130 + $0x8] sm:$0xff] %v3127
  %v3133 = vld [vmem:[%s5] sm:$0xf]
  %3135 = vset.pattern.permute.xlu0 0
  %3136 = vperm.xlu0 %3135, %v3133
  %v3137 = vpop.permute.xlu0 %3136
  %v3139 = vadd.f32 %v580, %v3137
  %v3140 = vadd.f32 %v600, %v3137
  %v3141 = vadd.f32 %v620, %v3137
  %v3142 = vadd.f32 %v640, %v3137
  %v3143 = vld [vmem:[%s4] sm:$0xf]
  %v3144 = vld [vmem:[%s1388] ss:$8 sm:$0xf]
  %v3146 = vperm.slane %v3144, 0
  %v3147 = vperm.slane %v3144, 1
  %v3148 = vperm.slane %v3144, 2
  %v3149 = vperm.slane %v3144, 3
  %v3154 = vmul.f32 %v1387, %v3146
  %v3155 = vmul.f32 %v1380, %v3147
  %v3156 = vmul.f32 %v1381, %v3148
  %v3157 = vmul.f32 %v1382, %v3149
  %v3159 = vsel %vm979, %v3143, 0
  %v3162 = vsel %vm725, %v3154, 0
  %v3165 = vsel %vm725, %v3155, 0
  %v3168 = vsel %vm725, %v3156, 0
  %v3171 = vsel %vm725, %v3157, 0
  %3173 = vmatpush.msra.mxu0 0.0
  %3174 = vmatpush.msra.mxu0 0.0
  %3175 = vmatpush.msra.mxu0 0.0
  %3176 = vmatpush.msra.mxu0 0.0
  %3177 = vmatpush.msra.mxu0 0.0
  %3178 = vmatpush.msra.mxu0 0.0
  %3179 = vmatpush.msra.mxu0 0.0
  %3180 = vmatpush.msra.mxu0 0.0
  %3181 = vmatpush.msra.mxu0 0.0
  %3182 = vmatpush.msra.mxu0 0.0
  %3183 = vmatpush.msra.mxu0 0.0
  %3184 = vmatpush.msra.mxu0 0.0
  %3185 = vmatpush.msra.mxu0 0.0
  %3186 = vmatpush.msra.mxu0 0.0
  %3187 = vmatpush.msra.mxu0 0.0
  %3188 = vmatpush.msra.mxu0 %v3162
  %3189 = vmatmul.f32.gmra.mxu0 %v3159
  %v3190 = vpop.f32.mrf.mxu0
  %v3191 = vadd.f32 0.0, %v3190
  %3192 = vdwg.mxu0
  %3193 = vmatpush.msra.mxu0 0.0
  %3194 = vmatpush.msra.mxu0 0.0
  %3195 = vmatpush.msra.mxu0 0.0
  %3196 = vmatpush.msra.mxu0 0.0
  %3197 = vmatpush.msra.mxu0 0.0
  %3198 = vmatpush.msra.mxu0 0.0
  %3199 = vmatpush.msra.mxu0 0.0
  %3200 = vmatpush.msra.mxu0 0.0
  %3201 = vmatpush.msra.mxu0 0.0
  %3202 = vmatpush.msra.mxu0 0.0
  %3203 = vmatpush.msra.mxu0 0.0
  %3204 = vmatpush.msra.mxu0 0.0
  %3205 = vmatpush.msra.mxu0 0.0
  %3206 = vmatpush.msra.mxu0 0.0
  %3207 = vmatpush.msra.mxu0 0.0
  %3208 = vmatpush.msra.mxu0 %v3165
  %3209 = vmatmul.f32.gmra.mxu0 %v3159
  %v3210 = vpop.f32.mrf.mxu0
  %v3211 = vadd.f32 0.0, %v3210
  %3212 = vdwg.mxu0
  %3213 = vmatpush.msra.mxu0 0.0
  %3214 = vmatpush.msra.mxu0 0.0
  %3215 = vmatpush.msra.mxu0 0.0
  %3216 = vmatpush.msra.mxu0 0.0
  %3217 = vmatpush.msra.mxu0 0.0
  %3218 = vmatpush.msra.mxu0 0.0
  %3219 = vmatpush.msra.mxu0 0.0
  %3220 = vmatpush.msra.mxu0 0.0
  %3221 = vmatpush.msra.mxu0 0.0
  %3222 = vmatpush.msra.mxu0 0.0
  %3223 = vmatpush.msra.mxu0 0.0
  %3224 = vmatpush.msra.mxu0 0.0
  %3225 = vmatpush.msra.mxu0 0.0
  %3226 = vmatpush.msra.mxu0 0.0
  %3227 = vmatpush.msra.mxu0 0.0
  %3228 = vmatpush.msra.mxu0 %v3168
  %3229 = vmatmul.f32.gmra.mxu0 %v3159
  %v3230 = vpop.f32.mrf.mxu0
  %v3231 = vadd.f32 0.0, %v3230
  %3232 = vdwg.mxu0
  %3233 = vmatpush.msra.mxu0 0.0
  %3234 = vmatpush.msra.mxu0 0.0
  %3235 = vmatpush.msra.mxu0 0.0
  %3236 = vmatpush.msra.mxu0 0.0
  %3237 = vmatpush.msra.mxu0 0.0
  %3238 = vmatpush.msra.mxu0 0.0
  %3239 = vmatpush.msra.mxu0 0.0
  %3240 = vmatpush.msra.mxu0 0.0
  %3241 = vmatpush.msra.mxu0 0.0
  %3242 = vmatpush.msra.mxu0 0.0
  %3243 = vmatpush.msra.mxu0 0.0
  %3244 = vmatpush.msra.mxu0 0.0
  %3245 = vmatpush.msra.mxu0 0.0
  %3246 = vmatpush.msra.mxu0 0.0
  %3247 = vmatpush.msra.mxu0 0.0
  %3248 = vmatpush.msra.mxu0 %v3171
  %3249 = vmatmul.f32.gmra.mxu0 %v3159
  %v3250 = vpop.f32.mrf.mxu0
  %v3251 = vadd.f32 0.0, %v3250
  %3252 = vdwg.mxu0
  %v3253 = vadd.f32 %v3139, %v3191
  %v3254 = vadd.f32 %v3140, %v3211
  %v3255 = vadd.f32 %v3141, %v3231
  %v3256 = vadd.f32 %v3142, %v3251
  %v3257 = vld [vmem:[%s4 + $0x4] sm:$0xf]
  %3258 = vst [vmem:[#allocation1] ss:$2 sm:$0xff] %v873
  %s3259 = scalar_lea.vmem [#allocation1], 16
  %3260 = vst [vmem:[%s3259] ss:$2 sm:$0xff] %v874
  %v3261 = vld.sshfl [vmem:[#allocation1] sm:$0xff pattern:$0x75316420]
  %v3262 = vld.sshfl [vmem:[#allocation1 + $0x8] sm:$0xff pattern:$0x75316420]
  %v3263 = vld.sshfl [vmem:[#allocation1 + $0x10] sm:$0xff pattern:$0x75316420]
  %v3264 = vld.sshfl [vmem:[#allocation1 + $0x18] sm:$0xff pattern:$0x75316420]
  %v3266 = vsel %vm979, %v3257, 0
  %v3268 = vsel %vm725, %v3261, 0
  %v3270 = vsel %vm725, %v3262, 0
  %v3272 = vsel %vm725, %v3263, 0
  %v3274 = vsel %vm725, %v3264, 0
  %3276 = vmatpush.msra.mxu0 0.0
  %3277 = vmatpush.msra.mxu0 0.0
  %3278 = vmatpush.msra.mxu0 0.0
  %3279 = vmatpush.msra.mxu0 0.0
  %3280 = vmatpush.msra.mxu0 0.0
  %3281 = vmatpush.msra.mxu0 0.0
  %3282 = vmatpush.msra.mxu0 0.0
  %3283 = vmatpush.msra.mxu0 0.0
  %3284 = vmatpush.msra.mxu0 0.0
  %3285 = vmatpush.msra.mxu0 0.0
  %3286 = vmatpush.msra.mxu0 0.0
  %3287 = vmatpush.msra.mxu0 0.0
  %3288 = vmatpush.msra.mxu0 0.0
  %3289 = vmatpush.msra.mxu0 0.0
  %3290 = vmatpush.msra.mxu0 0.0
  %3291 = vmatpush.msra.mxu0 %v3268
  %3292 = vmatmul.f32.gmra.mxu0 %v3266
  %v3293 = vpop.f32.mrf.mxu0
  %v3294 = vadd.f32 0.0, %v3293
  %3295 = vdwg.mxu0
  %3296 = vmatpush.msra.mxu0 0.0
  %3297 = vmatpush.msra.mxu0 0.0
  %3298 = vmatpush.msra.mxu0 0.0
  %3299 = vmatpush.msra.mxu0 0.0
  %3300 = vmatpush.msra.mxu0 0.0
  %3301 = vmatpush.msra.mxu0 0.0
  %3302 = vmatpush.msra.mxu0 0.0
  %3303 = vmatpush.msra.mxu0 0.0
  %3304 = vmatpush.msra.mxu0 0.0
  %3305 = vmatpush.msra.mxu0 0.0
  %3306 = vmatpush.msra.mxu0 0.0
  %3307 = vmatpush.msra.mxu0 0.0
  %3308 = vmatpush.msra.mxu0 0.0
  %3309 = vmatpush.msra.mxu0 0.0
  %3310 = vmatpush.msra.mxu0 0.0
  %3311 = vmatpush.msra.mxu0 %v3270
  %3312 = vmatmul.f32.gmra.mxu0 %v3266
  %v3313 = vpop.f32.mrf.mxu0
  %v3314 = vadd.f32 0.0, %v3313
  %3315 = vdwg.mxu0
  %3316 = vmatpush.msra.mxu0 0.0
  %3317 = vmatpush.msra.mxu0 0.0
  %3318 = vmatpush.msra.mxu0 0.0
  %3319 = vmatpush.msra.mxu0 0.0
  %3320 = vmatpush.msra.mxu0 0.0
  %3321 = vmatpush.msra.mxu0 0.0
  %3322 = vmatpush.msra.mxu0 0.0
  %3323 = vmatpush.msra.mxu0 0.0
  %3324 = vmatpush.msra.mxu0 0.0
  %3325 = vmatpush.msra.mxu0 0.0
  %3326 = vmatpush.msra.mxu0 0.0
  %3327 = vmatpush.msra.mxu0 0.0
  %3328 = vmatpush.msra.mxu0 0.0
  %3329 = vmatpush.msra.mxu0 0.0
  %3330 = vmatpush.msra.mxu0 0.0
  %3331 = vmatpush.msra.mxu0 %v3272
  %3332 = vmatmul.f32.gmra.mxu0 %v3266
  %v3333 = vpop.f32.mrf.mxu0
  %v3334 = vadd.f32 0.0, %v3333
  %3335 = vdwg.mxu0
  %3336 = vmatpush.msra.mxu0 0.0
  %3337 = vmatpush.msra.mxu0 0.0
  %3338 = vmatpush.msra.mxu0 0.0
  %3339 = vmatpush.msra.mxu0 0.0
  %3340 = vmatpush.msra.mxu0 0.0
  %3341 = vmatpush.msra.mxu0 0.0
  %3342 = vmatpush.msra.mxu0 0.0
  %3343 = vmatpush.msra.mxu0 0.0
  %3344 = vmatpush.msra.mxu0 0.0
  %3345 = vmatpush.msra.mxu0 0.0
  %3346 = vmatpush.msra.mxu0 0.0
  %3347 = vmatpush.msra.mxu0 0.0
  %3348 = vmatpush.msra.mxu0 0.0
  %3349 = vmatpush.msra.mxu0 0.0
  %3350 = vmatpush.msra.mxu0 0.0
  %3351 = vmatpush.msra.mxu0 %v3274
  %3352 = vmatmul.f32.gmra.mxu0 %v3266
  %v3353 = vpop.f32.mrf.mxu0
  %v3354 = vadd.f32 0.0, %v3353
  %3355 = vdwg.mxu0
  %v3356 = vadd.f32 %v3253, %v3294
  %v3357 = vadd.f32 %v3254, %v3314
  %v3358 = vadd.f32 %v3255, %v3334
  %v3359 = vadd.f32 %v3256, %v3354
  %v3360 = vld [vmem:[%s4 + $0x8] sm:$0xf]
  %3361 = vst [vmem:[#allocation1] ss:$2 sm:$0xff] %v889
  %s3362 = scalar_lea.vmem [#allocation1], 16
  %3363 = vst [vmem:[%s3362] ss:$2 sm:$0xff] %v890
  %v3364 = vld.sshfl [vmem:[#allocation1] sm:$0xff pattern:$0x75316420]
  %v3365 = vld.sshfl [vmem:[#allocation1 + $0x8] sm:$0xff pattern:$0x75316420]
  %v3366 = vld.sshfl [vmem:[#allocation1 + $0x10] sm:$0xff pattern:$0x75316420]
  %v3367 = vld.sshfl [vmem:[#allocation1 + $0x18] sm:$0xff pattern:$0x75316420]
  %v3369 = vsel %vm979, %v3360, 0
  %v3371 = vsel %vm725, %v3364, 0
  %v3373 = vsel %vm725, %v3365, 0
  %v3375 = vsel %vm725, %v3366, 0
  %v3377 = vsel %vm725, %v3367, 0
  %3379 = vmatpush.msra.mxu0 0.0
  %3380 = vmatpush.msra.mxu0 0.0
  %3381 = vmatpush.msra.mxu0 0.0
  %3382 = vmatpush.msra.mxu0 0.0
  %3383 = vmatpush.msra.mxu0 0.0
  %3384 = vmatpush.msra.mxu0 0.0
  %3385 = vmatpush.msra.mxu0 0.0
  %3386 = vmatpush.msra.mxu0 0.0
  %3387 = vmatpush.msra.mxu0 0.0
  %3388 = vmatpush.msra.mxu0 0.0
  %3389 = vmatpush.msra.mxu0 0.0
  %3390 = vmatpush.msra.mxu0 0.0
  %3391 = vmatpush.msra.mxu0 0.0
  %3392 = vmatpush.msra.mxu0 0.0
  %3393 = vmatpush.msra.mxu0 0.0
  %3394 = vmatpush.msra.mxu0 %v3371
  %3395 = vmatmul.f32.gmra.mxu0 %v3369
  %v3396 = vpop.f32.mrf.mxu0
  %v3397 = vadd.f32 0.0, %v3396
  %3398 = vdwg.mxu0
  %3399 = vmatpush.msra.mxu0 0.0
  %3400 = vmatpush.msra.mxu0 0.0
  %3401 = vmatpush.msra.mxu0 0.0
  %3402 = vmatpush.msra.mxu0 0.0
  %3403 = vmatpush.msra.mxu0 0.0
  %3404 = vmatpush.msra.mxu0 0.0
  %3405 = vmatpush.msra.mxu0 0.0
  %3406 = vmatpush.msra.mxu0 0.0
  %3407 = vmatpush.msra.mxu0 0.0
  %3408 = vmatpush.msra.mxu0 0.0
  %3409 = vmatpush.msra.mxu0 0.0
  %3410 = vmatpush.msra.mxu0 0.0
  %3411 = vmatpush.msra.mxu0 0.0
  %3412 = vmatpush.msra.mxu0 0.0
  %3413 = vmatpush.msra.mxu0 0.0
  %3414 = vmatpush.msra.mxu0 %v3373
  %3415 = vmatmul.f32.gmra.mxu0 %v3369
  %v3416 = vpop.f32.mrf.mxu0
  %v3417 = vadd.f32 0.0, %v3416
  %3418 = vdwg.mxu0
  %3419 = vmatpush.msra.mxu0 0.0
  %3420 = vmatpush.msra.mxu0 0.0
  %3421 = vmatpush.msra.mxu0 0.0
  %3422 = vmatpush.msra.mxu0 0.0
  %3423 = vmatpush.msra.mxu0 0.0
  %3424 = vmatpush.msra.mxu0 0.0
  %3425 = vmatpush.msra.mxu0 0.0
  %3426 = vmatpush.msra.mxu0 0.0
  %3427 = vmatpush.msra.mxu0 0.0
  %3428 = vmatpush.msra.mxu0 0.0
  %3429 = vmatpush.msra.mxu0 0.0
  %3430 = vmatpush.msra.mxu0 0.0
  %3431 = vmatpush.msra.mxu0 0.0
  %3432 = vmatpush.msra.mxu0 0.0
  %3433 = vmatpush.msra.mxu0 0.0
  %3434 = vmatpush.msra.mxu0 %v3375
  %3435 = vmatmul.f32.gmra.mxu0 %v3369
  %v3436 = vpop.f32.mrf.mxu0
  %v3437 = vadd.f32 0.0, %v3436
  %3438 = vdwg.mxu0
  %3439 = vmatpush.msra.mxu0 0.0
  %3440 = vmatpush.msra.mxu0 0.0
  %3441 = vmatpush.msra.mxu0 0.0
  %3442 = vmatpush.msra.mxu0 0.0
  %3443 = vmatpush.msra.mxu0 0.0
  %3444 = vmatpush.msra.mxu0 0.0
  %3445 = vmatpush.msra.mxu0 0.0
  %3446 = vmatpush.msra.mxu0 0.0
  %3447 = vmatpush.msra.mxu0 0.0
  %3448 = vmatpush.msra.mxu0 0.0
  %3449 = vmatpush.msra.mxu0 0.0
  %3450 = vmatpush.msra.mxu0 0.0
  %3451 = vmatpush.msra.mxu0 0.0
  %3452 = vmatpush.msra.mxu0 0.0
  %3453 = vmatpush.msra.mxu0 0.0
  %3454 = vmatpush.msra.mxu0 %v3377
  %3455 = vmatmul.f32.gmra.mxu0 %v3369
  %v3456 = vpop.f32.mrf.mxu0
  %v3457 = vadd.f32 0.0, %v3456
  %3458 = vdwg.mxu0
  %v3459 = vadd.f32 %v3356, %v3397
  %v3460 = vadd.f32 %v3357, %v3417
  %v3461 = vadd.f32 %v3358, %v3437
  %v3462 = vadd.f32 %v3359, %v3457
  %v3463 = vld [vmem:[%s4 + $0xc] sm:$0xf]
  %v3464 = vmul.f32 %v1738, %v3146
  %v3465 = vmul.f32 %v1731, %v3147
  %v3466 = vmul.f32 %v1732, %v3148
  %v3467 = vmul.f32 %v1733, %v3149
  %v3469 = vsel %vm979, %v3463, 0
  %v3472 = vsel %vm725, %v3464, 0
  %v3475 = vsel %vm725, %v3465, 0
  %v3478 = vsel %vm725, %v3466, 0
  %v3481 = vsel %vm725, %v3467, 0
  %3483 = vmatpush.msra.mxu0 0.0
  %3484 = vmatpush.msra.mxu0 0.0
  %3485 = vmatpush.msra.mxu0 0.0
  %3486 = vmatpush.msra.mxu0 0.0
  %3487 = vmatpush.msra.mxu0 0.0
  %3488 = vmatpush.msra.mxu0 0.0
  %3489 = vmatpush.msra.mxu0 0.0
  %3490 = vmatpush.msra.mxu0 0.0
  %3491 = vmatpush.msra.mxu0 0.0
  %3492 = vmatpush.msra.mxu0 0.0
  %3493 = vmatpush.msra.mxu0 0.0
  %3494 = vmatpush.msra.mxu0 0.0
  %3495 = vmatpush.msra.mxu0 0.0
  %3496 = vmatpush.msra.mxu0 0.0
  %3497 = vmatpush.msra.mxu0 0.0
  %3498 = vmatpush.msra.mxu0 %v3472
  %3499 = vmatmul.f32.gmra.mxu0 %v3469
  %v3500 = vpop.f32.mrf.mxu0
  %v3501 = vadd.f32 0.0, %v3500
  %3502 = vdwg.mxu0
  %3503 = vmatpush.msra.mxu0 0.0
  %3504 = vmatpush.msra.mxu0 0.0
  %3505 = vmatpush.msra.mxu0 0.0
  %3506 = vmatpush.msra.mxu0 0.0
  %3507 = vmatpush.msra.mxu0 0.0
  %3508 = vmatpush.msra.mxu0 0.0
  %3509 = vmatpush.msra.mxu0 0.0
  %3510 = vmatpush.msra.mxu0 0.0
  %3511 = vmatpush.msra.mxu0 0.0
  %3512 = vmatpush.msra.mxu0 0.0
  %3513 = vmatpush.msra.mxu0 0.0
  %3514 = vmatpush.msra.mxu0 0.0
  %3515 = vmatpush.msra.mxu0 0.0
  %3516 = vmatpush.msra.mxu0 0.0
  %3517 = vmatpush.msra.mxu0 0.0
  %3518 = vmatpush.msra.mxu0 %v3475
  %3519 = vmatmul.f32.gmra.mxu0 %v3469
  %v3520 = vpop.f32.mrf.mxu0
  %v3521 = vadd.f32 0.0, %v3520
  %3522 = vdwg.mxu0
  %3523 = vmatpush.msra.mxu0 0.0
  %3524 = vmatpush.msra.mxu0 0.0
  %3525 = vmatpush.msra.mxu0 0.0
  %3526 = vmatpush.msra.mxu0 0.0
  %3527 = vmatpush.msra.mxu0 0.0
  %3528 = vmatpush.msra.mxu0 0.0
  %3529 = vmatpush.msra.mxu0 0.0
  %3530 = vmatpush.msra.mxu0 0.0
  %3531 = vmatpush.msra.mxu0 0.0
  %3532 = vmatpush.msra.mxu0 0.0
  %3533 = vmatpush.msra.mxu0 0.0
  %3534 = vmatpush.msra.mxu0 0.0
  %3535 = vmatpush.msra.mxu0 0.0
  %3536 = vmatpush.msra.mxu0 0.0
  %3537 = vmatpush.msra.mxu0 0.0
  %3538 = vmatpush.msra.mxu0 %v3478
  %3539 = vmatmul.f32.gmra.mxu0 %v3469
  %v3540 = vpop.f32.mrf.mxu0
  %v3541 = vadd.f32 0.0, %v3540
  %3542 = vdwg.mxu0
  %3543 = vmatpush.msra.mxu0 0.0
  %3544 = vmatpush.msra.mxu0 0.0
  %3545 = vmatpush.msra.mxu0 0.0
  %3546 = vmatpush.msra.mxu0 0.0
  %3547 = vmatpush.msra.mxu0 0.0
  %3548 = vmatpush.msra.mxu0 0.0
  %3549 = vmatpush.msra.mxu0 0.0
  %3550 = vmatpush.msra.mxu0 0.0
  %3551 = vmatpush.msra.mxu0 0.0
  %3552 = vmatpush.msra.mxu0 0.0
  %3553 = vmatpush.msra.mxu0 0.0
  %3554 = vmatpush.msra.mxu0 0.0
  %3555 = vmatpush.msra.mxu0 0.0
  %3556 = vmatpush.msra.mxu0 0.0
  %3557 = vmatpush.msra.mxu0 0.0
  %3558 = vmatpush.msra.mxu0 %v3481
  %3559 = vmatmul.f32.gmra.mxu0 %v3469
  %v3560 = vpop.f32.mrf.mxu0
  %v3561 = vadd.f32 0.0, %v3560
  %3562 = vdwg.mxu0
  %v3563 = vadd.f32 %v3459, %v3501
  %v3564 = vadd.f32 %v3460, %v3521
  %v3565 = vadd.f32 %v3461, %v3541
  %v3566 = vadd.f32 %v3462, %v3561
  %v3567 = vld [vmem:[%s4 + $0x10] sm:$0xf]
  %3568 = vst [vmem:[#allocation1] ss:$2 sm:$0xff] %v905
  %s3569 = scalar_lea.vmem [#allocation1], 16
  %3570 = vst [vmem:[%s3569] ss:$2 sm:$0xff] %v906
  %v3571 = vld.sshfl [vmem:[#allocation1] sm:$0xff pattern:$0x75316420]
  %v3572 = vld.sshfl [vmem:[#allocation1 + $0x8] sm:$0xff pattern:$0x75316420]
  %v3573 = vld.sshfl [vmem:[#allocation1 + $0x10] sm:$0xff pattern:$0x75316420]
  %v3574 = vld.sshfl [vmem:[#allocation1 + $0x18] sm:$0xff pattern:$0x75316420]
  %v3576 = vsel %vm979, %v3567, 0
  %v3578 = vsel %vm725, %v3571, 0
  %v3580 = vsel %vm725, %v3572, 0
  %v3582 = vsel %vm725, %v3573, 0
  %v3584 = vsel %vm725, %v3574, 0
  %3586 = vmatpush.msra.mxu0 0.0
  %3587 = vmatpush.msra.mxu0 0.0
  %3588 = vmatpush.msra.mxu0 0.0
  %3589 = vmatpush.msra.mxu0 0.0
  %3590 = vmatpush.msra.mxu0 0.0
  %3591 = vmatpush.msra.mxu0 0.0
  %3592 = vmatpush.msra.mxu0 0.0
  %3593 = vmatpush.msra.mxu0 0.0
  %3594 = vmatpush.msra.mxu0 0.0
  %3595 = vmatpush.msra.mxu0 0.0
  %3596 = vmatpush.msra.mxu0 0.0
  %3597 = vmatpush.msra.mxu0 0.0
  %3598 = vmatpush.msra.mxu0 0.0
  %3599 = vmatpush.msra.mxu0 0.0
  %3600 = vmatpush.msra.mxu0 0.0
  %3601 = vmatpush.msra.mxu0 %v3578
  %3602 = vmatmul.f32.gmra.mxu0 %v3576
  %v3603 = vpop.f32.mrf.mxu0
  %v3604 = vadd.f32 0.0, %v3603
  %3605 = vdwg.mxu0
  %3606 = vmatpush.msra.mxu0 0.0
  %3607 = vmatpush.msra.mxu0 0.0
  %3608 = vmatpush.msra.mxu0 0.0
  %3609 = vmatpush.msra.mxu0 0.0
  %3610 = vmatpush.msra.mxu0 0.0
  %3611 = vmatpush.msra.mxu0 0.0
  %3612 = vmatpush.msra.mxu0 0.0
  %3613 = vmatpush.msra.mxu0 0.0
  %3614 = vmatpush.msra.mxu0 0.0
  %3615 = vmatpush.msra.mxu0 0.0
  %3616 = vmatpush.msra.mxu0 0.0
  %3617 = vmatpush.msra.mxu0 0.0
  %3618 = vmatpush.msra.mxu0 0.0
  %3619 = vmatpush.msra.mxu0 0.0
  %3620 = vmatpush.msra.mxu0 0.0
  %3621 = vmatpush.msra.mxu0 %v3580
  %3622 = vmatmul.f32.gmra.mxu0 %v3576
  %v3623 = vpop.f32.mrf.mxu0
  %v3624 = vadd.f32 0.0, %v3623
  %3625 = vdwg.mxu0
  %3626 = vmatpush.msra.mxu0 0.0
  %3627 = vmatpush.msra.mxu0 0.0
  %3628 = vmatpush.msra.mxu0 0.0
  %3629 = vmatpush.msra.mxu0 0.0
  %3630 = vmatpush.msra.mxu0 0.0
  %3631 = vmatpush.msra.mxu0 0.0
  %3632 = vmatpush.msra.mxu0 0.0
  %3633 = vmatpush.msra.mxu0 0.0
  %3634 = vmatpush.msra.mxu0 0.0
  %3635 = vmatpush.msra.mxu0 0.0
  %3636 = vmatpush.msra.mxu0 0.0
  %3637 = vmatpush.msra.mxu0 0.0
  %3638 = vmatpush.msra.mxu0 0.0
  %3639 = vmatpush.msra.mxu0 0.0
  %3640 = vmatpush.msra.mxu0 0.0
  %3641 = vmatpush.msra.mxu0 %v3582
  %3642 = vmatmul.f32.gmra.mxu0 %v3576
  %v3643 = vpop.f32.mrf.mxu0
  %v3644 = vadd.f32 0.0, %v3643
  %3645 = vdwg.mxu0
  %3646 = vmatpush.msra.mxu0 0.0
  %3647 = vmatpush.msra.mxu0 0.0
  %3648 = vmatpush.msra.mxu0 0.0
  %3649 = vmatpush.msra.mxu0 0.0
  %3650 = vmatpush.msra.mxu0 0.0
  %3651 = vmatpush.msra.mxu0 0.0
  %3652 = vmatpush.msra.mxu0 0.0
  %3653 = vmatpush.msra.mxu0 0.0
  %3654 = vmatpush.msra.mxu0 0.0
  %3655 = vmatpush.msra.mxu0 0.0
  %3656 = vmatpush.msra.mxu0 0.0
  %3657 = vmatpush.msra.mxu0 0.0
  %3658 = vmatpush.msra.mxu0 0.0
  %3659 = vmatpush.msra.mxu0 0.0
  %3660 = vmatpush.msra.mxu0 0.0
  %3661 = vmatpush.msra.mxu0 %v3584
  %3662 = vmatmul.f32.gmra.mxu0 %v3576
  %v3663 = vpop.f32.mrf.mxu0
  %v3664 = vadd.f32 0.0, %v3663
  %3665 = vdwg.mxu0
  %v3666 = vadd.f32 %v3563, %v3604
  %v3667 = vadd.f32 %v3564, %v3624
  %v3668 = vadd.f32 %v3565, %v3644
  %v3669 = vadd.f32 %v3566, %v3664
  %v3670 = vld [vmem:[%s4 + $0x14] sm:$0xf]
  %3671 = vst [vmem:[#allocation1] ss:$2 sm:$0xff] %v921
  %s3672 = scalar_lea.vmem [#allocation1], 16
  %3673 = vst [vmem:[%s3672] ss:$2 sm:$0xff] %v922
  %v3674 = vld.sshfl [vmem:[#allocation1] sm:$0xff pattern:$0x75316420]
  %v3675 = vld.sshfl [vmem:[#allocation1 + $0x8] sm:$0xff pattern:$0x75316420]
  %v3676 = vld.sshfl [vmem:[#allocation1 + $0x10] sm:$0xff pattern:$0x75316420]
  %v3677 = vld.sshfl [vmem:[#allocation1 + $0x18] sm:$0xff pattern:$0x75316420]
  %v3679 = vsel %vm979, %v3670, 0
  %v3681 = vsel %vm725, %v3674, 0
  %v3683 = vsel %vm725, %v3675, 0
  %v3685 = vsel %vm725, %v3676, 0
  %v3687 = vsel %vm725, %v3677, 0
  %3689 = vmatpush.msra.mxu0 0.0
  %3690 = vmatpush.msra.mxu0 0.0
  %3691 = vmatpush.msra.mxu0 0.0
  %3692 = vmatpush.msra.mxu0 0.0
  %3693 = vmatpush.msra.mxu0 0.0
  %3694 = vmatpush.msra.mxu0 0.0
  %3695 = vmatpush.msra.mxu0 0.0
  %3696 = vmatpush.msra.mxu0 0.0
  %3697 = vmatpush.msra.mxu0 0.0
  %3698 = vmatpush.msra.mxu0 0.0
  %3699 = vmatpush.msra.mxu0 0.0
  %3700 = vmatpush.msra.mxu0 0.0
  %3701 = vmatpush.msra.mxu0 0.0
  %3702 = vmatpush.msra.mxu0 0.0
  %3703 = vmatpush.msra.mxu0 0.0
  %3704 = vmatpush.msra.mxu0 %v3681
  %3705 = vmatmul.f32.gmra.mxu0 %v3679
  %v3706 = vpop.f32.mrf.mxu0
  %v3707 = vadd.f32 0.0, %v3706
  %3708 = vdwg.mxu0
  %3709 = vmatpush.msra.mxu0 0.0
  %3710 = vmatpush.msra.mxu0 0.0
  %3711 = vmatpush.msra.mxu0 0.0
  %3712 = vmatpush.msra.mxu0 0.0
  %3713 = vmatpush.msra.mxu0 0.0
  %3714 = vmatpush.msra.mxu0 0.0
  %3715 = vmatpush.msra.mxu0 0.0
  %3716 = vmatpush.msra.mxu0 0.0
  %3717 = vmatpush.msra.mxu0 0.0
  %3718 = vmatpush.msra.mxu0 0.0
  %3719 = vmatpush.msra.mxu0 0.0
  %3720 = vmatpush.msra.mxu0 0.0
  %3721 = vmatpush.msra.mxu0 0.0
  %3722 = vmatpush.msra.mxu0 0.0
  %3723 = vmatpush.msra.mxu0 0.0
  %3724 = vmatpush.msra.mxu0 %v3683
  %3725 = vmatmul.f32.gmra.mxu0 %v3679
  %v3726 = vpop.f32.mrf.mxu0
  %v3727 = vadd.f32 0.0, %v3726
  %3728 = vdwg.mxu0
  %3729 = vmatpush.msra.mxu0 0.0
  %3730 = vmatpush.msra.mxu0 0.0
  %3731 = vmatpush.msra.mxu0 0.0
  %3732 = vmatpush.msra.mxu0 0.0
  %3733 = vmatpush.msra.mxu0 0.0
  %3734 = vmatpush.msra.mxu0 0.0
  %3735 = vmatpush.msra.mxu0 0.0
  %3736 = vmatpush.msra.mxu0 0.0
  %3737 = vmatpush.msra.mxu0 0.0
  %3738 = vmatpush.msra.mxu0 0.0
  %3739 = vmatpush.msra.mxu0 0.0
  %3740 = vmatpush.msra.mxu0 0.0
  %3741 = vmatpush.msra.mxu0 0.0
  %3742 = vmatpush.msra.mxu0 0.0
  %3743 = vmatpush.msra.mxu0 0.0
  %3744 = vmatpush.msra.mxu0 %v3685
  %3745 = vmatmul.f32.gmra.mxu0 %v3679
  %v3746 = vpop.f32.mrf.mxu0
  %v3747 = vadd.f32 0.0, %v3746
  %3748 = vdwg.mxu0
  %3749 = vmatpush.msra.mxu0 0.0
  %3750 = vmatpush.msra.mxu0 0.0
  %3751 = vmatpush.msra.mxu0 0.0
  %3752 = vmatpush.msra.mxu0 0.0
  %3753 = vmatpush.msra.mxu0 0.0
  %3754 = vmatpush.msra.mxu0 0.0
  %3755 = vmatpush.msra.mxu0 0.0
  %3756 = vmatpush.msra.mxu0 0.0
  %3757 = vmatpush.msra.mxu0 0.0
  %3758 = vmatpush.msra.mxu0 0.0
  %3759 = vmatpush.msra.mxu0 0.0
  %3760 = vmatpush.msra.mxu0 0.0
  %3761 = vmatpush.msra.mxu0 0.0
  %3762 = vmatpush.msra.mxu0 0.0
  %3763 = vmatpush.msra.mxu0 0.0
  %3764 = vmatpush.msra.mxu0 %v3687
  %3765 = vmatmul.f32.gmra.mxu0 %v3679
  %v3766 = vpop.f32.mrf.mxu0
  %v3767 = vadd.f32 0.0, %v3766
  %3768 = vdwg.mxu0
  %v3769 = vadd.f32 %v3666, %v3707
  %v3770 = vadd.f32 %v3667, %v3727
  %v3771 = vadd.f32 %v3668, %v3747
  %v3772 = vadd.f32 %v3669, %v3767
  %v3773 = vld [vmem:[%s4 + $0x18] sm:$0xf]
  %3774 = vst [vmem:[#allocation1] ss:$2 sm:$0xff] %v889
  %s3775 = scalar_lea.vmem [#allocation1], 16
  %3776 = vst [vmem:[%s3775] ss:$2 sm:$0xff] %v890
  %v3777 = vld.sshfl [vmem:[#allocation1] sm:$0xff pattern:$0x75316420]
  %v3778 = vld.sshfl [vmem:[#allocation1 + $0x8] sm:$0xff pattern:$0x75316420]
  %v3779 = vld.sshfl [vmem:[#allocation1 + $0x10] sm:$0xff pattern:$0x75316420]
  %v3780 = vld.sshfl [vmem:[#allocation1 + $0x18] sm:$0xff pattern:$0x75316420]
  %3781 = vrot.lane.b32.xlu0 %v3777, 113
  %v3782 = vpop.permute.xlu0 %3781
  %3783 = vrot.lane.b32.xlu0 %v3778, 113
  %v3784 = vpop.permute.xlu0 %3783
  %3785 = vrot.lane.b32.xlu0 %v3779, 113
  %v3786 = vpop.permute.xlu0 %3785
  %3787 = vrot.lane.b32.xlu0 %v3780, 113
  %v3788 = vpop.permute.xlu0 %3787
  %vm3789 = vcmask 924672
  %v3790 = vsel %vm3789, %v3782, %v3784
  %v3791 = vsel %vm3789, %v3784, %v3786
  %v3792 = vsel %vm3789, %v3786, %v3788
  %3797 = vst [vmem:[#allocation1] ss:$2 sm:$0xff] %v889
  %v3798 = vld.sshfl [vmem:[#allocation1] sm:$0xff pattern:$0x75316420]
  %3799 = vrot.lane.b32.xlu0 %v3798, 113
  %v3800 = vpop.permute.xlu0 %3799
  %v3802 = vsel %vm3789, %v3788, %v3800
  %s3803 = scalar_lea.vmem %s8, 6
  %v3804 = vld [vmem:[%s3803] ss:$8 sm:$0xf]
  %v3806 = vperm.slane %v3804, 0
  %v3807 = vperm.slane %v3804, 1
  %v3808 = vperm.slane %v3804, 2
  %v3809 = vperm.slane %v3804, 3
  %v3814 = vmul.f32 %v3790, %v3806
  %v3815 = vmul.f32 %v3791, %v3807
  %v3816 = vmul.f32 %v3792, %v3808
  %v3817 = vmul.f32 %v3802, %v3809
  %v3819 = vsel %vm979, %v3773, 0
  %v3822 = vsel %vm725, %v3814, 0
  %v3825 = vsel %vm725, %v3815, 0
  %v3828 = vsel %vm725, %v3816, 0
  %v3831 = vsel %vm725, %v3817, 0
  %3833 = vmatpush.msra.mxu0 0.0
  %3834 = vmatpush.msra.mxu0 0.0
  %3835 = vmatpush.msra.mxu0 0.0
  %3836 = vmatpush.msra.mxu0 0.0
  %3837 = vmatpush.msra.mxu0 0.0
  %3838 = vmatpush.msra.mxu0 0.0
  %3839 = vmatpush.msra.mxu0 0.0
  %3840 = vmatpush.msra.mxu0 0.0
  %3841 = vmatpush.msra.mxu0 0.0
  %3842 = vmatpush.msra.mxu0 0.0
  %3843 = vmatpush.msra.mxu0 0.0
  %3844 = vmatpush.msra.mxu0 0.0
  %3845 = vmatpush.msra.mxu0 0.0
  %3846 = vmatpush.msra.mxu0 0.0
  %3847 = vmatpush.msra.mxu0 0.0
  %3848 = vmatpush.msra.mxu0 %v3822
  %3849 = vmatmul.f32.gmra.mxu0 %v3819
  %v3850 = vpop.f32.mrf.mxu0
  %v3851 = vadd.f32 0.0, %v3850
  %3852 = vdwg.mxu0
  %3853 = vmatpush.msra.mxu0 0.0
  %3854 = vmatpush.msra.mxu0 0.0
  %3855 = vmatpush.msra.mxu0 0.0
  %3856 = vmatpush.msra.mxu0 0.0
  %3857 = vmatpush.msra.mxu0 0.0
  %3858 = vmatpush.msra.mxu0 0.0
  %3859 = vmatpush.msra.mxu0 0.0
  %3860 = vmatpush.msra.mxu0 0.0
  %3861 = vmatpush.msra.mxu0 0.0
  %3862 = vmatpush.msra.mxu0 0.0
  %3863 = vmatpush.msra.mxu0 0.0
  %3864 = vmatpush.msra.mxu0 0.0
  %3865 = vmatpush.msra.mxu0 0.0
  %3866 = vmatpush.msra.mxu0 0.0
  %3867 = vmatpush.msra.mxu0 0.0
  %3868 = vmatpush.msra.mxu0 %v3825
  %3869 = vmatmul.f32.gmra.mxu0 %v3819
  %v3870 = vpop.f32.mrf.mxu0
  %v3871 = vadd.f32 0.0, %v3870
  %3872 = vdwg.mxu0
  %3873 = vmatpush.msra.mxu0 0.0
  %3874 = vmatpush.msra.mxu0 0.0
  %3875 = vmatpush.msra.mxu0 0.0
  %3876 = vmatpush.msra.mxu0 0.0
  %3877 = vmatpush.msra.mxu0 0.0
  %3878 = vmatpush.msra.mxu0 0.0
  %3879 = vmatpush.msra.mxu0 0.0
  %3880 = vmatpush.msra.mxu0 0.0
  %3881 = vmatpush.msra.mxu0 0.0
  %3882 = vmatpush.msra.mxu0 0.0
  %3883 = vmatpush.msra.mxu0 0.0
  %3884 = vmatpush.msra.mxu0 0.0
  %3885 = vmatpush.msra.mxu0 0.0
  %3886 = vmatpush.msra.mxu0 0.0
  %3887 = vmatpush.msra.mxu0 0.0
  %3888 = vmatpush.msra.mxu0 %v3828
  %3889 = vmatmul.f32.gmra.mxu0 %v3819
  %v3890 = vpop.f32.mrf.mxu0
  %v3891 = vadd.f32 0.0, %v3890
  %3892 = vdwg.mxu0
  %3893 = vmatpush.msra.mxu0 0.0
  %3894 = vmatpush.msra.mxu0 0.0
  %3895 = vmatpush.msra.mxu0 0.0
  %3896 = vmatpush.msra.mxu0 0.0
  %3897 = vmatpush.msra.mxu0 0.0
  %3898 = vmatpush.msra.mxu0 0.0
  %3899 = vmatpush.msra.mxu0 0.0
  %3900 = vmatpush.msra.mxu0 0.0
  %3901 = vmatpush.msra.mxu0 0.0
  %3902 = vmatpush.msra.mxu0 0.0
  %3903 = vmatpush.msra.mxu0 0.0
  %3904 = vmatpush.msra.mxu0 0.0
  %3905 = vmatpush.msra.mxu0 0.0
  %3906 = vmatpush.msra.mxu0 0.0
  %3907 = vmatpush.msra.mxu0 0.0
  %3908 = vmatpush.msra.mxu0 %v3831
  %3909 = vmatmul.f32.gmra.mxu0 %v3819
  %v3910 = vpop.f32.mrf.mxu0
  %v3911 = vadd.f32 0.0, %v3910
  %3912 = vdwg.mxu0
  %v3913 = vadd.f32 %v3769, %v3851
  %v3914 = vadd.f32 %v3770, %v3871
  %v3915 = vadd.f32 %v3771, %v3891
  %v3916 = vadd.f32 %v3772, %v3911
  %v3917 = vld [vmem:[%s4 + $0x1c] sm:$0xf]
  %3918 = vst [vmem:[#allocation1] ss:$2 sm:$0xff] %v873
  %s3919 = scalar_lea.vmem [#allocation1], 16
  %3920 = vst [vmem:[%s3919] ss:$2 sm:$0xff] %v874
  %v3921 = vld.sshfl [vmem:[#allocation1] sm:$0xff pattern:$0x75316420]
  %v3922 = vld.sshfl [vmem:[#allocation1 + $0x8] sm:$0xff pattern:$0x75316420]
  %v3923 = vld.sshfl [vmem:[#allocation1 + $0x10] sm:$0xff pattern:$0x75316420]
  %v3924 = vld.sshfl [vmem:[#allocation1 + $0x18] sm:$0xff pattern:$0x75316420]
  %3925 = vrot.lane.b32.xlu0 %v3921, 112
  %v3926 = vpop.permute.xlu0 %3925
  %3927 = vrot.lane.b32.xlu0 %v3922, 112
  %v3928 = vpop.permute.xlu0 %3927
  %3929 = vrot.lane.b32.xlu0 %v3923, 112
  %v3930 = vpop.permute.xlu0 %3929
  %3931 = vrot.lane.b32.xlu0 %v3924, 112
  %v3932 = vpop.permute.xlu0 %3931
  %vm3933 = vcmask 916480
  %v3934 = vsel %vm3933, %v3926, %v3928
  %v3935 = vsel %vm3933, %v3928, %v3930
  %v3936 = vsel %vm3933, %v3930, %v3932
  %3941 = vst [vmem:[#allocation1] ss:$2 sm:$0xff] %v873
  %v3942 = vld.sshfl [vmem:[#allocation1] sm:$0xff pattern:$0x75316420]
  %3943 = vrot.lane.b32.xlu0 %v3942, 112
  %v3944 = vpop.permute.xlu0 %3943
  %v3946 = vsel %vm3933, %v3932, %v3944
  %s3947 = scalar_lea.vmem %s8, 7
  %v3948 = vld [vmem:[%s3947] ss:$8 sm:$0xf]
  %v3950 = vperm.slane %v3948, 0
  %v3951 = vperm.slane %v3948, 1
  %v3952 = vperm.slane %v3948, 2
  %v3953 = vperm.slane %v3948, 3
  %v3958 = vmul.f32 %v3934, %v3950
  %v3959 = vmul.f32 %v3935, %v3951
  %v3960 = vmul.f32 %v3936, %v3952
  %v3961 = vmul.f32 %v3946, %v3953
  %v3963 = vsel %vm979, %v3917, 0
  %v3966 = vsel %vm725, %v3958, 0
  %v3969 = vsel %vm725, %v3959, 0
  %v3972 = vsel %vm725, %v3960, 0
  %v3975 = vsel %vm725, %v3961, 0
  %3977 = vmatpush.msra.mxu0 0.0
  %3978 = vmatpush.msra.mxu0 0.0
  %3979 = vmatpush.msra.mxu0 0.0
  %3980 = vmatpush.msra.mxu0 0.0
  %3981 = vmatpush.msra.mxu0 0.0
  %3982 = vmatpush.msra.mxu0 0.0
  %3983 = vmatpush.msra.mxu0 0.0
  %3984 = vmatpush.msra.mxu0 0.0
  %3985 = vmatpush.msra.mxu0 0.0
  %3986 = vmatpush.msra.mxu0 0.0
  %3987 = vmatpush.msra.mxu0 0.0
  %3988 = vmatpush.msra.mxu0 0.0
  %3989 = vmatpush.msra.mxu0 0.0
  %3990 = vmatpush.msra.mxu0 0.0
  %3991 = vmatpush.msra.mxu0 0.0
  %3992 = vmatpush.msra.mxu0 %v3966
  %3993 = vmatmul.f32.gmra.mxu0 %v3963
  %v3994 = vpop.f32.mrf.mxu0
  %v3995 = vadd.f32 0.0, %v3994
  %3996 = vdwg.mxu0
  %3997 = vmatpush.msra.mxu0 0.0
  %3998 = vmatpush.msra.mxu0 0.0
  %3999 = vmatpush.msra.mxu0 0.0
  %4000 = vmatpush.msra.mxu0 0.0
  %4001 = vmatpush.msra.mxu0 0.0
  %4002 = vmatpush.msra.mxu0 0.0
  %4003 = vmatpush.msra.mxu0 0.0
  %4004 = vmatpush.msra.mxu0 0.0
  %4005 = vmatpush.msra.mxu0 0.0
  %4006 = vmatpush.msra.mxu0 0.0
  %4007 = vmatpush.msra.mxu0 0.0
  %4008 = vmatpush.msra.mxu0 0.0
  %4009 = vmatpush.msra.mxu0 0.0
  %4010 = vmatpush.msra.mxu0 0.0
  %4011 = vmatpush.msra.mxu0 0.0
  %4012 = vmatpush.msra.mxu0 %v3969
  %4013 = vmatmul.f32.gmra.mxu0 %v3963
  %v4014 = vpop.f32.mrf.mxu0
  %v4015 = vadd.f32 0.0, %v4014
  %4016 = vdwg.mxu0
  %4017 = vmatpush.msra.mxu0 0.0
  %4018 = vmatpush.msra.mxu0 0.0
  %4019 = vmatpush.msra.mxu0 0.0
  %4020 = vmatpush.msra.mxu0 0.0
  %4021 = vmatpush.msra.mxu0 0.0
  %4022 = vmatpush.msra.mxu0 0.0
  %4023 = vmatpush.msra.mxu0 0.0
  %4024 = vmatpush.msra.mxu0 0.0
  %4025 = vmatpush.msra.mxu0 0.0
  %4026 = vmatpush.msra.mxu0 0.0
  %4027 = vmatpush.msra.mxu0 0.0
  %4028 = vmatpush.msra.mxu0 0.0
  %4029 = vmatpush.msra.mxu0 0.0
  %4030 = vmatpush.msra.mxu0 0.0
  %4031 = vmatpush.msra.mxu0 0.0
  %4032 = vmatpush.msra.mxu0 %v3972
  %4033 = vmatmul.f32.gmra.mxu0 %v3963
  %v4034 = vpop.f32.mrf.mxu0
  %v4035 = vadd.f32 0.0, %v4034
  %4036 = vdwg.mxu0
  %4037 = vmatpush.msra.mxu0 0.0
  %4038 = vmatpush.msra.mxu0 0.0
  %4039 = vmatpush.msra.mxu0 0.0
  %4040 = vmatpush.msra.mxu0 0.0
  %4041 = vmatpush.msra.mxu0 0.0
  %4042 = vmatpush.msra.mxu0 0.0
  %4043 = vmatpush.msra.mxu0 0.0
  %4044 = vmatpush.msra.mxu0 0.0
  %4045 = vmatpush.msra.mxu0 0.0
  %4046 = vmatpush.msra.mxu0 0.0
  %4047 = vmatpush.msra.mxu0 0.0
  %4048 = vmatpush.msra.mxu0 0.0
  %4049 = vmatpush.msra.mxu0 0.0
  %4050 = vmatpush.msra.mxu0 0.0
  %4051 = vmatpush.msra.mxu0 0.0
  %4052 = vmatpush.msra.mxu0 %v3975
  %4053 = vmatmul.f32.gmra.mxu0 %v3963
  %v4054 = vpop.f32.mrf.mxu0
  %v4055 = vadd.f32 0.0, %v4054
  %4056 = vdwg.mxu0
  %v4057 = vadd.f32 %v3913, %v3995
  %v4058 = vadd.f32 %v3914, %v4015
  %v4059 = vadd.f32 %v3915, %v4035
  %v4060 = vadd.f32 %v3916, %v4055
  %v4061 = vld [vmem:[%s4 + $0x20] sm:$0xf]
  %4062 = vst [vmem:[#allocation1] ss:$2 sm:$0xff] %v889
  %s4063 = scalar_lea.vmem [#allocation1], 16
  %4064 = vst [vmem:[%s4063] ss:$2 sm:$0xff] %v890
  %v4065 = vld.sshfl [vmem:[#allocation1] sm:$0xff pattern:$0x75316420]
  %v4066 = vld.sshfl [vmem:[#allocation1 + $0x8] sm:$0xff pattern:$0x75316420]
  %v4067 = vld.sshfl [vmem:[#allocation1 + $0x10] sm:$0xff pattern:$0x75316420]
  %v4068 = vld.sshfl [vmem:[#allocation1 + $0x18] sm:$0xff pattern:$0x75316420]
  %4069 = vrot.lane.b32.xlu0 %v4065, 112
  %v4070 = vpop.permute.xlu0 %4069
  %4071 = vrot.lane.b32.xlu0 %v4066, 112
  %v4072 = vpop.permute.xlu0 %4071
  %4073 = vrot.lane.b32.xlu0 %v4067, 112
  %v4074 = vpop.permute.xlu0 %4073
  %4075 = vrot.lane.b32.xlu0 %v4068, 112
  %v4076 = vpop.permute.xlu0 %4075
  %v4077 = vsel %vm3933, %v4070, %v4072
  %v4078 = vsel %vm3933, %v4072, %v4074
  %v4079 = vsel %vm3933, %v4074, %v4076
  %4084 = vst [vmem:[#allocation1] ss:$2 sm:$0xff] %v889
  %v4085 = vld.sshfl [vmem:[#allocation1] sm:$0xff pattern:$0x75316420]
  %4086 = vrot.lane.b32.xlu0 %v4085, 112
  %v4087 = vpop.permute.xlu0 %4086
  %v4089 = vsel %vm3933, %v4076, %v4087
  %v4090 = vmul.f32 %v4077, %v3950
  %v4091 = vmul.f32 %v4078, %v3951
  %v4092 = vmul.f32 %v4079, %v3952
  %v4093 = vmul.f32 %v4089, %v3953
  %v4095 = vsel %vm979, %v4061, 0
  %v4098 = vsel %vm725, %v4090, 0
  %v4101 = vsel %vm725, %v4091, 0
  %v4104 = vsel %vm725, %v4092, 0
  %v4107 = vsel %vm725, %v4093, 0
  %4109 = vmatpush.msra.mxu0 0.0
  %4110 = vmatpush.msra.mxu0 0.0
  %4111 = vmatpush.msra.mxu0 0.0
  %4112 = vmatpush.msra.mxu0 0.0
  %4113 = vmatpush.msra.mxu0 0.0
  %4114 = vmatpush.msra.mxu0 0.0
  %4115 = vmatpush.msra.mxu0 0.0
  %4116 = vmatpush.msra.mxu0 0.0
  %4117 = vmatpush.msra.mxu0 0.0
  %4118 = vmatpush.msra.mxu0 0.0
  %4119 = vmatpush.msra.mxu0 0.0
  %4120 = vmatpush.msra.mxu0 0.0
  %4121 = vmatpush.msra.mxu0 0.0
  %4122 = vmatpush.msra.mxu0 0.0
  %4123 = vmatpush.msra.mxu0 0.0
  %4124 = vmatpush.msra.mxu0 %v4098
  %4125 = vmatmul.f32.gmra.mxu0 %v4095
  %v4126 = vpop.f32.mrf.mxu0
  %v4127 = vadd.f32 0.0, %v4126
  %4128 = vdwg.mxu0
  %4129 = vmatpush.msra.mxu0 0.0
  %4130 = vmatpush.msra.mxu0 0.0
  %4131 = vmatpush.msra.mxu0 0.0
  %4132 = vmatpush.msra.mxu0 0.0
  %4133 = vmatpush.msra.mxu0 0.0
  %4134 = vmatpush.msra.mxu0 0.0
  %4135 = vmatpush.msra.mxu0 0.0
  %4136 = vmatpush.msra.mxu0 0.0
  %4137 = vmatpush.msra.mxu0 0.0
  %4138 = vmatpush.msra.mxu0 0.0
  %4139 = vmatpush.msra.mxu0 0.0
  %4140 = vmatpush.msra.mxu0 0.0
  %4141 = vmatpush.msra.mxu0 0.0
  %4142 = vmatpush.msra.mxu0 0.0
  %4143 = vmatpush.msra.mxu0 0.0
  %4144 = vmatpush.msra.mxu0 %v4101
  %4145 = vmatmul.f32.gmra.mxu0 %v4095
  %v4146 = vpop.f32.mrf.mxu0
  %v4147 = vadd.f32 0.0, %v4146
  %4148 = vdwg.mxu0
  %4149 = vmatpush.msra.mxu0 0.0
  %4150 = vmatpush.msra.mxu0 0.0
  %4151 = vmatpush.msra.mxu0 0.0
  %4152 = vmatpush.msra.mxu0 0.0
  %4153 = vmatpush.msra.mxu0 0.0
  %4154 = vmatpush.msra.mxu0 0.0
  %4155 = vmatpush.msra.mxu0 0.0
  %4156 = vmatpush.msra.mxu0 0.0
  %4157 = vmatpush.msra.mxu0 0.0
  %4158 = vmatpush.msra.mxu0 0.0
  %4159 = vmatpush.msra.mxu0 0.0
  %4160 = vmatpush.msra.mxu0 0.0
  %4161 = vmatpush.msra.mxu0 0.0
  %4162 = vmatpush.msra.mxu0 0.0
  %4163 = vmatpush.msra.mxu0 0.0
  %4164 = vmatpush.msra.mxu0 %v4104
  %4165 = vmatmul.f32.gmra.mxu0 %v4095
  %v4166 = vpop.f32.mrf.mxu0
  %v4167 = vadd.f32 0.0, %v4166
  %4168 = vdwg.mxu0
  %4169 = vmatpush.msra.mxu0 0.0
  %4170 = vmatpush.msra.mxu0 0.0
  %4171 = vmatpush.msra.mxu0 0.0
  %4172 = vmatpush.msra.mxu0 0.0
  %4173 = vmatpush.msra.mxu0 0.0
  %4174 = vmatpush.msra.mxu0 0.0
  %4175 = vmatpush.msra.mxu0 0.0
  %4176 = vmatpush.msra.mxu0 0.0
  %4177 = vmatpush.msra.mxu0 0.0
  %4178 = vmatpush.msra.mxu0 0.0
  %4179 = vmatpush.msra.mxu0 0.0
  %4180 = vmatpush.msra.mxu0 0.0
  %4181 = vmatpush.msra.mxu0 0.0
  %4182 = vmatpush.msra.mxu0 0.0
  %4183 = vmatpush.msra.mxu0 0.0
  %4184 = vmatpush.msra.mxu0 %v4107
  %4185 = vmatmul.f32.gmra.mxu0 %v4095
  %v4186 = vpop.f32.mrf.mxu0
  %v4187 = vadd.f32 0.0, %v4186
  %4188 = vdwg.mxu0
  %v4189 = vadd.f32 %v4057, %v4127
  %v4190 = vadd.f32 %v4058, %v4147
  %v4191 = vadd.f32 %v4059, %v4167
  %v4192 = vadd.f32 %v4060, %v4187
  %v4197 = vrot.slane %v4190, 4
  %v4198 = vrot.slane %v4192, 4
  %v4199 = vsel %vm725, %v4189, %v4197
  %v4200 = vsel %vm725, %v4191, %v4198
  %s4203 = scalar_lea.vmem %s9, 32
  %4204 = vst [vmem:[%s4203] sm:$0xff] %v4199
  %4205 = vst [vmem:[%s4203 + $0x8] sm:$0xff] %v4200
  %v4206 = vld [vmem:[%s5] sm:$0xf]
  %4208 = vset.pattern.permute.xlu0 0
  %4209 = vperm.xlu0 %4208, %v4206
  %v4210 = vpop.permute.xlu0 %4209
  %v4212 = vadd.f32 %v663, %v4210
  %v4213 = vadd.f32 %v683, %v4210
  %v4214 = vadd.f32 %v703, %v4210
  %v4215 = vadd.f32 %v723, %v4210
  %v4216 = vld [vmem:[%s4] sm:$0xf]
  %4217 = vst [vmem:[#allocation1] ss:$2 sm:$0xff] %v873
  %s4218 = scalar_lea.vmem [#allocation1], 16
  %4219 = vst [vmem:[%s4218] ss:$2 sm:$0xff] %v874
  %v4220 = vld.sshfl [vmem:[#allocation1] sm:$0xff pattern:$0x75316420]
  %v4221 = vld.sshfl [vmem:[#allocation1 + $0x8] sm:$0xff pattern:$0x75316420]
  %v4222 = vld.sshfl [vmem:[#allocation1 + $0x10] sm:$0xff pattern:$0x75316420]
  %v4223 = vld.sshfl [vmem:[#allocation1 + $0x18] sm:$0xff pattern:$0x75316420]
  %v4225 = vsel %vm979, %v4216, 0
  %v4227 = vsel %vm725, %v4220, 0
  %v4229 = vsel %vm725, %v4221, 0
  %v4231 = vsel %vm725, %v4222, 0
  %v4233 = vsel %vm725, %v4223, 0
  %4235 = vmatpush.msra.mxu0 0.0
  %4236 = vmatpush.msra.mxu0 0.0
  %4237 = vmatpush.msra.mxu0 0.0
  %4238 = vmatpush.msra.mxu0 0.0
  %4239 = vmatpush.msra.mxu0 0.0
  %4240 = vmatpush.msra.mxu0 0.0
  %4241 = vmatpush.msra.mxu0 0.0
  %4242 = vmatpush.msra.mxu0 0.0
  %4243 = vmatpush.msra.mxu0 0.0
  %4244 = vmatpush.msra.mxu0 0.0
  %4245 = vmatpush.msra.mxu0 0.0
  %4246 = vmatpush.msra.mxu0 0.0
  %4247 = vmatpush.msra.mxu0 0.0
  %4248 = vmatpush.msra.mxu0 0.0
  %4249 = vmatpush.msra.mxu0 0.0
  %4250 = vmatpush.msra.mxu0 %v4227
  %4251 = vmatmul.f32.gmra.mxu0 %v4225
  %v4252 = vpop.f32.mrf.mxu0
  %v4253 = vadd.f32 0.0, %v4252
  %4254 = vdwg.mxu0
  %4255 = vmatpush.msra.mxu0 0.0
  %4256 = vmatpush.msra.mxu0 0.0
  %4257 = vmatpush.msra.mxu0 0.0
  %4258 = vmatpush.msra.mxu0 0.0
  %4259 = vmatpush.msra.mxu0 0.0
  %4260 = vmatpush.msra.mxu0 0.0
  %4261 = vmatpush.msra.mxu0 0.0
  %4262 = vmatpush.msra.mxu0 0.0
  %4263 = vmatpush.msra.mxu0 0.0
  %4264 = vmatpush.msra.mxu0 0.0
  %4265 = vmatpush.msra.mxu0 0.0
  %4266 = vmatpush.msra.mxu0 0.0
  %4267 = vmatpush.msra.mxu0 0.0
  %4268 = vmatpush.msra.mxu0 0.0
  %4269 = vmatpush.msra.mxu0 0.0
  %4270 = vmatpush.msra.mxu0 %v4229
  %4271 = vmatmul.f32.gmra.mxu0 %v4225
  %v4272 = vpop.f32.mrf.mxu0
  %v4273 = vadd.f32 0.0, %v4272
  %4274 = vdwg.mxu0
  %4275 = vmatpush.msra.mxu0 0.0
  %4276 = vmatpush.msra.mxu0 0.0
  %4277 = vmatpush.msra.mxu0 0.0
  %4278 = vmatpush.msra.mxu0 0.0
  %4279 = vmatpush.msra.mxu0 0.0
  %4280 = vmatpush.msra.mxu0 0.0
  %4281 = vmatpush.msra.mxu0 0.0
  %4282 = vmatpush.msra.mxu0 0.0
  %4283 = vmatpush.msra.mxu0 0.0
  %4284 = vmatpush.msra.mxu0 0.0
  %4285 = vmatpush.msra.mxu0 0.0
  %4286 = vmatpush.msra.mxu0 0.0
  %4287 = vmatpush.msra.mxu0 0.0
  %4288 = vmatpush.msra.mxu0 0.0
  %4289 = vmatpush.msra.mxu0 0.0
  %4290 = vmatpush.msra.mxu0 %v4231
  %4291 = vmatmul.f32.gmra.mxu0 %v4225
  %v4292 = vpop.f32.mrf.mxu0
  %v4293 = vadd.f32 0.0, %v4292
  %4294 = vdwg.mxu0
  %4295 = vmatpush.msra.mxu0 0.0
  %4296 = vmatpush.msra.mxu0 0.0
  %4297 = vmatpush.msra.mxu0 0.0
  %4298 = vmatpush.msra.mxu0 0.0
  %4299 = vmatpush.msra.mxu0 0.0
  %4300 = vmatpush.msra.mxu0 0.0
  %4301 = vmatpush.msra.mxu0 0.0
  %4302 = vmatpush.msra.mxu0 0.0
  %4303 = vmatpush.msra.mxu0 0.0
  %4304 = vmatpush.msra.mxu0 0.0
  %4305 = vmatpush.msra.mxu0 0.0
  %4306 = vmatpush.msra.mxu0 0.0
  %4307 = vmatpush.msra.mxu0 0.0
  %4308 = vmatpush.msra.mxu0 0.0
  %4309 = vmatpush.msra.mxu0 0.0
  %4310 = vmatpush.msra.mxu0 %v4233
  %4311 = vmatmul.f32.gmra.mxu0 %v4225
  %v4312 = vpop.f32.mrf.mxu0
  %v4313 = vadd.f32 0.0, %v4312
  %4314 = vdwg.mxu0
  %v4315 = vadd.f32 %v4212, %v4253
  %v4316 = vadd.f32 %v4213, %v4273
  %v4317 = vadd.f32 %v4214, %v4293
  %v4318 = vadd.f32 %v4215, %v4313
  %v4319 = vld [vmem:[%s4 + $0x4] sm:$0xf]
  %4320 = vst [vmem:[#allocation1] ss:$2 sm:$0xff] %v889
  %s4321 = scalar_lea.vmem [#allocation1], 16
  %4322 = vst [vmem:[%s4321] ss:$2 sm:$0xff] %v890
  %v4323 = vld.sshfl [vmem:[#allocation1] sm:$0xff pattern:$0x75316420]
  %v4324 = vld.sshfl [vmem:[#allocation1 + $0x8] sm:$0xff pattern:$0x75316420]
  %v4325 = vld.sshfl [vmem:[#allocation1 + $0x10] sm:$0xff pattern:$0x75316420]
  %v4326 = vld.sshfl [vmem:[#allocation1 + $0x18] sm:$0xff pattern:$0x75316420]
  %v4328 = vsel %vm979, %v4319, 0
  %v4330 = vsel %vm725, %v4323, 0
  %v4332 = vsel %vm725, %v4324, 0
  %v4334 = vsel %vm725, %v4325, 0
  %v4336 = vsel %vm725, %v4326, 0
  %4338 = vmatpush.msra.mxu0 0.0
  %4339 = vmatpush.msra.mxu0 0.0
  %4340 = vmatpush.msra.mxu0 0.0
  %4341 = vmatpush.msra.mxu0 0.0
  %4342 = vmatpush.msra.mxu0 0.0
  %4343 = vmatpush.msra.mxu0 0.0
  %4344 = vmatpush.msra.mxu0 0.0
  %4345 = vmatpush.msra.mxu0 0.0
  %4346 = vmatpush.msra.mxu0 0.0
  %4347 = vmatpush.msra.mxu0 0.0
  %4348 = vmatpush.msra.mxu0 0.0
  %4349 = vmatpush.msra.mxu0 0.0
  %4350 = vmatpush.msra.mxu0 0.0
  %4351 = vmatpush.msra.mxu0 0.0
  %4352 = vmatpush.msra.mxu0 0.0
  %4353 = vmatpush.msra.mxu0 %v4330
  %4354 = vmatmul.f32.gmra.mxu0 %v4328
  %v4355 = vpop.f32.mrf.mxu0
  %v4356 = vadd.f32 0.0, %v4355
  %4357 = vdwg.mxu0
  %4358 = vmatpush.msra.mxu0 0.0
  %4359 = vmatpush.msra.mxu0 0.0
  %4360 = vmatpush.msra.mxu0 0.0
  %4361 = vmatpush.msra.mxu0 0.0
  %4362 = vmatpush.msra.mxu0 0.0
  %4363 = vmatpush.msra.mxu0 0.0
  %4364 = vmatpush.msra.mxu0 0.0
  %4365 = vmatpush.msra.mxu0 0.0
  %4366 = vmatpush.msra.mxu0 0.0
  %4367 = vmatpush.msra.mxu0 0.0
  %4368 = vmatpush.msra.mxu0 0.0
  %4369 = vmatpush.msra.mxu0 0.0
  %4370 = vmatpush.msra.mxu0 0.0
  %4371 = vmatpush.msra.mxu0 0.0
  %4372 = vmatpush.msra.mxu0 0.0
  %4373 = vmatpush.msra.mxu0 %v4332
  %4374 = vmatmul.f32.gmra.mxu0 %v4328
  %v4375 = vpop.f32.mrf.mxu0
  %v4376 = vadd.f32 0.0, %v4375
  %4377 = vdwg.mxu0
  %4378 = vmatpush.msra.mxu0 0.0
  %4379 = vmatpush.msra.mxu0 0.0
  %4380 = vmatpush.msra.mxu0 0.0
  %4381 = vmatpush.msra.mxu0 0.0
  %4382 = vmatpush.msra.mxu0 0.0
  %4383 = vmatpush.msra.mxu0 0.0
  %4384 = vmatpush.msra.mxu0 0.0
  %4385 = vmatpush.msra.mxu0 0.0
  %4386 = vmatpush.msra.mxu0 0.0
  %4387 = vmatpush.msra.mxu0 0.0
  %4388 = vmatpush.msra.mxu0 0.0
  %4389 = vmatpush.msra.mxu0 0.0
  %4390 = vmatpush.msra.mxu0 0.0
  %4391 = vmatpush.msra.mxu0 0.0
  %4392 = vmatpush.msra.mxu0 0.0
  %4393 = vmatpush.msra.mxu0 %v4334
  %4394 = vmatmul.f32.gmra.mxu0 %v4328
  %v4395 = vpop.f32.mrf.mxu0
  %v4396 = vadd.f32 0.0, %v4395
  %4397 = vdwg.mxu0
  %4398 = vmatpush.msra.mxu0 0.0
  %4399 = vmatpush.msra.mxu0 0.0
  %4400 = vmatpush.msra.mxu0 0.0
  %4401 = vmatpush.msra.mxu0 0.0
  %4402 = vmatpush.msra.mxu0 0.0
  %4403 = vmatpush.msra.mxu0 0.0
  %4404 = vmatpush.msra.mxu0 0.0
  %4405 = vmatpush.msra.mxu0 0.0
  %4406 = vmatpush.msra.mxu0 0.0
  %4407 = vmatpush.msra.mxu0 0.0
  %4408 = vmatpush.msra.mxu0 0.0
  %4409 = vmatpush.msra.mxu0 0.0
  %4410 = vmatpush.msra.mxu0 0.0
  %4411 = vmatpush.msra.mxu0 0.0
  %4412 = vmatpush.msra.mxu0 0.0
  %4413 = vmatpush.msra.mxu0 %v4336
  %4414 = vmatmul.f32.gmra.mxu0 %v4328
  %v4415 = vpop.f32.mrf.mxu0
  %v4416 = vadd.f32 0.0, %v4415
  %4417 = vdwg.mxu0
  %v4418 = vadd.f32 %v4315, %v4356
  %v4419 = vadd.f32 %v4316, %v4376
  %v4420 = vadd.f32 %v4317, %v4396
  %v4421 = vadd.f32 %v4318, %v4416
  %v4422 = vld [vmem:[%s4 + $0x8] sm:$0xf]
  %v4423 = vld [vmem:[%s2668] ss:$8 sm:$0xf]
  %v4425 = vperm.slane %v4423, 0
  %v4426 = vperm.slane %v4423, 1
  %v4427 = vperm.slane %v4423, 2
  %v4428 = vperm.slane %v4423, 3
  %v4433 = vmul.f32 %v2655, %v4425
  %v4434 = vmul.f32 %v2656, %v4426
  %v4435 = vmul.f32 %v2657, %v4427
  %v4436 = vmul.f32 %v2667, %v4428
  %v4438 = vsel %vm979, %v4422, 0
  %v4441 = vsel %vm725, %v4433, 0
  %v4444 = vsel %vm725, %v4434, 0
  %v4447 = vsel %vm725, %v4435, 0
  %v4450 = vsel %vm725, %v4436, 0
  %4452 = vmatpush.msra.mxu0 0.0
  %4453 = vmatpush.msra.mxu0 0.0
  %4454 = vmatpush.msra.mxu0 0.0
  %4455 = vmatpush.msra.mxu0 0.0
  %4456 = vmatpush.msra.mxu0 0.0
  %4457 = vmatpush.msra.mxu0 0.0
  %4458 = vmatpush.msra.mxu0 0.0
  %4459 = vmatpush.msra.mxu0 0.0
  %4460 = vmatpush.msra.mxu0 0.0
  %4461 = vmatpush.msra.mxu0 0.0
  %4462 = vmatpush.msra.mxu0 0.0
  %4463 = vmatpush.msra.mxu0 0.0
  %4464 = vmatpush.msra.mxu0 0.0
  %4465 = vmatpush.msra.mxu0 0.0
  %4466 = vmatpush.msra.mxu0 0.0
  %4467 = vmatpush.msra.mxu0 %v4441
  %4468 = vmatmul.f32.gmra.mxu0 %v4438
  %v4469 = vpop.f32.mrf.mxu0
  %v4470 = vadd.f32 0.0, %v4469
  %4471 = vdwg.mxu0
  %4472 = vmatpush.msra.mxu0 0.0
  %4473 = vmatpush.msra.mxu0 0.0
  %4474 = vmatpush.msra.mxu0 0.0
  %4475 = vmatpush.msra.mxu0 0.0
  %4476 = vmatpush.msra.mxu0 0.0
  %4477 = vmatpush.msra.mxu0 0.0
  %4478 = vmatpush.msra.mxu0 0.0
  %4479 = vmatpush.msra.mxu0 0.0
  %4480 = vmatpush.msra.mxu0 0.0
  %4481 = vmatpush.msra.mxu0 0.0
  %4482 = vmatpush.msra.mxu0 0.0
  %4483 = vmatpush.msra.mxu0 0.0
  %4484 = vmatpush.msra.mxu0 0.0
  %4485 = vmatpush.msra.mxu0 0.0
  %4486 = vmatpush.msra.mxu0 0.0
  %4487 = vmatpush.msra.mxu0 %v4444
  %4488 = vmatmul.f32.gmra.mxu0 %v4438
  %v4489 = vpop.f32.mrf.mxu0
  %v4490 = vadd.f32 0.0, %v4489
  %4491 = vdwg.mxu0
  %4492 = vmatpush.msra.mxu0 0.0
  %4493 = vmatpush.msra.mxu0 0.0
  %4494 = vmatpush.msra.mxu0 0.0
  %4495 = vmatpush.msra.mxu0 0.0
  %4496 = vmatpush.msra.mxu0 0.0
  %4497 = vmatpush.msra.mxu0 0.0
  %4498 = vmatpush.msra.mxu0 0.0
  %4499 = vmatpush.msra.mxu0 0.0
  %4500 = vmatpush.msra.mxu0 0.0
  %4501 = vmatpush.msra.mxu0 0.0
  %4502 = vmatpush.msra.mxu0 0.0
  %4503 = vmatpush.msra.mxu0 0.0
  %4504 = vmatpush.msra.mxu0 0.0
  %4505 = vmatpush.msra.mxu0 0.0
  %4506 = vmatpush.msra.mxu0 0.0
  %4507 = vmatpush.msra.mxu0 %v4447
  %4508 = vmatmul.f32.gmra.mxu0 %v4438
  %v4509 = vpop.f32.mrf.mxu0
  %v4510 = vadd.f32 0.0, %v4509
  %4511 = vdwg.mxu0
  %4512 = vmatpush.msra.mxu0 0.0
  %4513 = vmatpush.msra.mxu0 0.0
  %4514 = vmatpush.msra.mxu0 0.0
  %4515 = vmatpush.msra.mxu0 0.0
  %4516 = vmatpush.msra.mxu0 0.0
  %4517 = vmatpush.msra.mxu0 0.0
  %4518 = vmatpush.msra.mxu0 0.0
  %4519 = vmatpush.msra.mxu0 0.0
  %4520 = vmatpush.msra.mxu0 0.0
  %4521 = vmatpush.msra.mxu0 0.0
  %4522 = vmatpush.msra.mxu0 0.0
  %4523 = vmatpush.msra.mxu0 0.0
  %4524 = vmatpush.msra.mxu0 0.0
  %4525 = vmatpush.msra.mxu0 0.0
  %4526 = vmatpush.msra.mxu0 0.0
  %4527 = vmatpush.msra.mxu0 %v4450
  %4528 = vmatmul.f32.gmra.mxu0 %v4438
  %v4529 = vpop.f32.mrf.mxu0
  %v4530 = vadd.f32 0.0, %v4529
  %4531 = vdwg.mxu0
  %v4532 = vadd.f32 %v4418, %v4470
  %v4533 = vadd.f32 %v4419, %v4490
  %v4534 = vadd.f32 %v4420, %v4510
  %v4535 = vadd.f32 %v4421, %v4530
  %v4536 = vld [vmem:[%s4 + $0xc] sm:$0xf]
  %4537 = vst [vmem:[#allocation1] ss:$2 sm:$0xff] %v905
  %s4538 = scalar_lea.vmem [#allocation1], 16
  %4539 = vst [vmem:[%s4538] ss:$2 sm:$0xff] %v906
  %v4540 = vld.sshfl [vmem:[#allocation1] sm:$0xff pattern:$0x75316420]
  %v4541 = vld.sshfl [vmem:[#allocation1 + $0x8] sm:$0xff pattern:$0x75316420]
  %v4542 = vld.sshfl [vmem:[#allocation1 + $0x10] sm:$0xff pattern:$0x75316420]
  %v4543 = vld.sshfl [vmem:[#allocation1 + $0x18] sm:$0xff pattern:$0x75316420]
  %v4545 = vsel %vm979, %v4536, 0
  %v4547 = vsel %vm725, %v4540, 0
  %v4549 = vsel %vm725, %v4541, 0
  %v4551 = vsel %vm725, %v4542, 0
  %v4553 = vsel %vm725, %v4543, 0
  %4555 = vmatpush.msra.mxu0 0.0
  %4556 = vmatpush.msra.mxu0 0.0
  %4557 = vmatpush.msra.mxu0 0.0
  %4558 = vmatpush.msra.mxu0 0.0
  %4559 = vmatpush.msra.mxu0 0.0
  %4560 = vmatpush.msra.mxu0 0.0
  %4561 = vmatpush.msra.mxu0 0.0
  %4562 = vmatpush.msra.mxu0 0.0
  %4563 = vmatpush.msra.mxu0 0.0
  %4564 = vmatpush.msra.mxu0 0.0
  %4565 = vmatpush.msra.mxu0 0.0
  %4566 = vmatpush.msra.mxu0 0.0
  %4567 = vmatpush.msra.mxu0 0.0
  %4568 = vmatpush.msra.mxu0 0.0
  %4569 = vmatpush.msra.mxu0 0.0
  %4570 = vmatpush.msra.mxu0 %v4547
  %4571 = vmatmul.f32.gmra.mxu0 %v4545
  %v4572 = vpop.f32.mrf.mxu0
  %v4573 = vadd.f32 0.0, %v4572
  %4574 = vdwg.mxu0
  %4575 = vmatpush.msra.mxu0 0.0
  %4576 = vmatpush.msra.mxu0 0.0
  %4577 = vmatpush.msra.mxu0 0.0
  %4578 = vmatpush.msra.mxu0 0.0
  %4579 = vmatpush.msra.mxu0 0.0
  %4580 = vmatpush.msra.mxu0 0.0
  %4581 = vmatpush.msra.mxu0 0.0
  %4582 = vmatpush.msra.mxu0 0.0
  %4583 = vmatpush.msra.mxu0 0.0
  %4584 = vmatpush.msra.mxu0 0.0
  %4585 = vmatpush.msra.mxu0 0.0
  %4586 = vmatpush.msra.mxu0 0.0
  %4587 = vmatpush.msra.mxu0 0.0
  %4588 = vmatpush.msra.mxu0 0.0
  %4589 = vmatpush.msra.mxu0 0.0
  %4590 = vmatpush.msra.mxu0 %v4549
  %4591 = vmatmul.f32.gmra.mxu0 %v4545
  %v4592 = vpop.f32.mrf.mxu0
  %v4593 = vadd.f32 0.0, %v4592
  %4594 = vdwg.mxu0
  %4595 = vmatpush.msra.mxu0 0.0
  %4596 = vmatpush.msra.mxu0 0.0
  %4597 = vmatpush.msra.mxu0 0.0
  %4598 = vmatpush.msra.mxu0 0.0
  %4599 = vmatpush.msra.mxu0 0.0
  %4600 = vmatpush.msra.mxu0 0.0
  %4601 = vmatpush.msra.mxu0 0.0
  %4602 = vmatpush.msra.mxu0 0.0
  %4603 = vmatpush.msra.mxu0 0.0
  %4604 = vmatpush.msra.mxu0 0.0
  %4605 = vmatpush.msra.mxu0 0.0
  %4606 = vmatpush.msra.mxu0 0.0
  %4607 = vmatpush.msra.mxu0 0.0
  %4608 = vmatpush.msra.mxu0 0.0
  %4609 = vmatpush.msra.mxu0 0.0
  %4610 = vmatpush.msra.mxu0 %v4551
  %4611 = vmatmul.f32.gmra.mxu0 %v4545
  %v4612 = vpop.f32.mrf.mxu0
  %v4613 = vadd.f32 0.0, %v4612
  %4614 = vdwg.mxu0
  %4615 = vmatpush.msra.mxu0 0.0
  %4616 = vmatpush.msra.mxu0 0.0
  %4617 = vmatpush.msra.mxu0 0.0
  %4618 = vmatpush.msra.mxu0 0.0
  %4619 = vmatpush.msra.mxu0 0.0
  %4620 = vmatpush.msra.mxu0 0.0
  %4621 = vmatpush.msra.mxu0 0.0
  %4622 = vmatpush.msra.mxu0 0.0
  %4623 = vmatpush.msra.mxu0 0.0
  %4624 = vmatpush.msra.mxu0 0.0
  %4625 = vmatpush.msra.mxu0 0.0
  %4626 = vmatpush.msra.mxu0 0.0
  %4627 = vmatpush.msra.mxu0 0.0
  %4628 = vmatpush.msra.mxu0 0.0
  %4629 = vmatpush.msra.mxu0 0.0
  %4630 = vmatpush.msra.mxu0 %v4553
  %4631 = vmatmul.f32.gmra.mxu0 %v4545
  %v4632 = vpop.f32.mrf.mxu0
  %v4633 = vadd.f32 0.0, %v4632
  %4634 = vdwg.mxu0
  %v4635 = vadd.f32 %v4532, %v4573
  %v4636 = vadd.f32 %v4533, %v4593
  %v4637 = vadd.f32 %v4534, %v4613
  %v4638 = vadd.f32 %v4535, %v4633
  %v4639 = vld [vmem:[%s4 + $0x10] sm:$0xf]
  %4640 = vst [vmem:[#allocation1] ss:$2 sm:$0xff] %v921
  %s4641 = scalar_lea.vmem [#allocation1], 16
  %4642 = vst [vmem:[%s4641] ss:$2 sm:$0xff] %v922
  %v4643 = vld.sshfl [vmem:[#allocation1] sm:$0xff pattern:$0x75316420]
  %v4644 = vld.sshfl [vmem:[#allocation1 + $0x8] sm:$0xff pattern:$0x75316420]
  %v4645 = vld.sshfl [vmem:[#allocation1 + $0x10] sm:$0xff pattern:$0x75316420]
  %v4646 = vld.sshfl [vmem:[#allocation1 + $0x18] sm:$0xff pattern:$0x75316420]
  %v4648 = vsel %vm979, %v4639, 0
  %v4650 = vsel %vm725, %v4643, 0
  %v4652 = vsel %vm725, %v4644, 0
  %v4654 = vsel %vm725, %v4645, 0
  %v4656 = vsel %vm725, %v4646, 0
  %4658 = vmatpush.msra.mxu0 0.0
  %4659 = vmatpush.msra.mxu0 0.0
  %4660 = vmatpush.msra.mxu0 0.0
  %4661 = vmatpush.msra.mxu0 0.0
  %4662 = vmatpush.msra.mxu0 0.0
  %4663 = vmatpush.msra.mxu0 0.0
  %4664 = vmatpush.msra.mxu0 0.0
  %4665 = vmatpush.msra.mxu0 0.0
  %4666 = vmatpush.msra.mxu0 0.0
  %4667 = vmatpush.msra.mxu0 0.0
  %4668 = vmatpush.msra.mxu0 0.0
  %4669 = vmatpush.msra.mxu0 0.0
  %4670 = vmatpush.msra.mxu0 0.0
  %4671 = vmatpush.msra.mxu0 0.0
  %4672 = vmatpush.msra.mxu0 0.0
  %4673 = vmatpush.msra.mxu0 %v4650
  %4674 = vmatmul.f32.gmra.mxu0 %v4648
  %v4675 = vpop.f32.mrf.mxu0
  %v4676 = vadd.f32 0.0, %v4675
  %4677 = vdwg.mxu0
  %4678 = vmatpush.msra.mxu0 0.0
  %4679 = vmatpush.msra.mxu0 0.0
  %4680 = vmatpush.msra.mxu0 0.0
  %4681 = vmatpush.msra.mxu0 0.0
  %4682 = vmatpush.msra.mxu0 0.0
  %4683 = vmatpush.msra.mxu0 0.0
  %4684 = vmatpush.msra.mxu0 0.0
  %4685 = vmatpush.msra.mxu0 0.0
  %4686 = vmatpush.msra.mxu0 0.0
  %4687 = vmatpush.msra.mxu0 0.0
  %4688 = vmatpush.msra.mxu0 0.0
  %4689 = vmatpush.msra.mxu0 0.0
  %4690 = vmatpush.msra.mxu0 0.0
  %4691 = vmatpush.msra.mxu0 0.0
  %4692 = vmatpush.msra.mxu0 0.0
  %4693 = vmatpush.msra.mxu0 %v4652
  %4694 = vmatmul.f32.gmra.mxu0 %v4648
  %v4695 = vpop.f32.mrf.mxu0
  %v4696 = vadd.f32 0.0, %v4695
  %4697 = vdwg.mxu0
  %4698 = vmatpush.msra.mxu0 0.0
  %4699 = vmatpush.msra.mxu0 0.0
  %4700 = vmatpush.msra.mxu0 0.0
  %4701 = vmatpush.msra.mxu0 0.0
  %4702 = vmatpush.msra.mxu0 0.0
  %4703 = vmatpush.msra.mxu0 0.0
  %4704 = vmatpush.msra.mxu0 0.0
  %4705 = vmatpush.msra.mxu0 0.0
  %4706 = vmatpush.msra.mxu0 0.0
  %4707 = vmatpush.msra.mxu0 0.0
  %4708 = vmatpush.msra.mxu0 0.0
  %4709 = vmatpush.msra.mxu0 0.0
  %4710 = vmatpush.msra.mxu0 0.0
  %4711 = vmatpush.msra.mxu0 0.0
  %4712 = vmatpush.msra.mxu0 0.0
  %4713 = vmatpush.msra.mxu0 %v4654
  %4714 = vmatmul.f32.gmra.mxu0 %v4648
  %v4715 = vpop.f32.mrf.mxu0
  %v4716 = vadd.f32 0.0, %v4715
  %4717 = vdwg.mxu0
  %4718 = vmatpush.msra.mxu0 0.0
  %4719 = vmatpush.msra.mxu0 0.0
  %4720 = vmatpush.msra.mxu0 0.0
  %4721 = vmatpush.msra.mxu0 0.0
  %4722 = vmatpush.msra.mxu0 0.0
  %4723 = vmatpush.msra.mxu0 0.0
  %4724 = vmatpush.msra.mxu0 0.0
  %4725 = vmatpush.msra.mxu0 0.0
  %4726 = vmatpush.msra.mxu0 0.0
  %4727 = vmatpush.msra.mxu0 0.0
  %4728 = vmatpush.msra.mxu0 0.0
  %4729 = vmatpush.msra.mxu0 0.0
  %4730 = vmatpush.msra.mxu0 0.0
  %4731 = vmatpush.msra.mxu0 0.0
  %4732 = vmatpush.msra.mxu0 0.0
  %4733 = vmatpush.msra.mxu0 %v4656
  %4734 = vmatmul.f32.gmra.mxu0 %v4648
  %v4735 = vpop.f32.mrf.mxu0
  %v4736 = vadd.f32 0.0, %v4735
  %4737 = vdwg.mxu0
  %v4738 = vadd.f32 %v4635, %v4676
  %v4739 = vadd.f32 %v4636, %v4696
  %v4740 = vadd.f32 %v4637, %v4716
  %v4741 = vadd.f32 %v4638, %v4736
  %v4742 = vld [vmem:[%s4 + $0x14] sm:$0xf]
  %v4743 = vmul.f32 %v3004, %v4425
  %v4744 = vmul.f32 %v3005, %v4426
  %v4745 = vmul.f32 %v3006, %v4427
  %v4746 = vmul.f32 %v3016, %v4428
  %v4748 = vsel %vm979, %v4742, 0
  %v4751 = vsel %vm725, %v4743, 0
  %v4754 = vsel %vm725, %v4744, 0
  %v4757 = vsel %vm725, %v4745, 0
  %v4760 = vsel %vm725, %v4746, 0
  %4762 = vmatpush.msra.mxu0 0.0
  %4763 = vmatpush.msra.mxu0 0.0
  %4764 = vmatpush.msra.mxu0 0.0
  %4765 = vmatpush.msra.mxu0 0.0
  %4766 = vmatpush.msra.mxu0 0.0
  %4767 = vmatpush.msra.mxu0 0.0
  %4768 = vmatpush.msra.mxu0 0.0
  %4769 = vmatpush.msra.mxu0 0.0
  %4770 = vmatpush.msra.mxu0 0.0
  %4771 = vmatpush.msra.mxu0 0.0
  %4772 = vmatpush.msra.mxu0 0.0
  %4773 = vmatpush.msra.mxu0 0.0
  %4774 = vmatpush.msra.mxu0 0.0
  %4775 = vmatpush.msra.mxu0 0.0
  %4776 = vmatpush.msra.mxu0 0.0
  %4777 = vmatpush.msra.mxu0 %v4751
  %4778 = vmatmul.f32.gmra.mxu0 %v4748
  %v4779 = vpop.f32.mrf.mxu0
  %v4780 = vadd.f32 0.0, %v4779
  %4781 = vdwg.mxu0
  %4782 = vmatpush.msra.mxu0 0.0
  %4783 = vmatpush.msra.mxu0 0.0
  %4784 = vmatpush.msra.mxu0 0.0
  %4785 = vmatpush.msra.mxu0 0.0
  %4786 = vmatpush.msra.mxu0 0.0
  %4787 = vmatpush.msra.mxu0 0.0
  %4788 = vmatpush.msra.mxu0 0.0
  %4789 = vmatpush.msra.mxu0 0.0
  %4790 = vmatpush.msra.mxu0 0.0
  %4791 = vmatpush.msra.mxu0 0.0
  %4792 = vmatpush.msra.mxu0 0.0
  %4793 = vmatpush.msra.mxu0 0.0
  %4794 = vmatpush.msra.mxu0 0.0
  %4795 = vmatpush.msra.mxu0 0.0
  %4796 = vmatpush.msra.mxu0 0.0
  %4797 = vmatpush.msra.mxu0 %v4754
  %4798 = vmatmul.f32.gmra.mxu0 %v4748
  %v4799 = vpop.f32.mrf.mxu0
  %v4800 = vadd.f32 0.0, %v4799
  %4801 = vdwg.mxu0
  %4802 = vmatpush.msra.mxu0 0.0
  %4803 = vmatpush.msra.mxu0 0.0
  %4804 = vmatpush.msra.mxu0 0.0
  %4805 = vmatpush.msra.mxu0 0.0
  %4806 = vmatpush.msra.mxu0 0.0
  %4807 = vmatpush.msra.mxu0 0.0
  %4808 = vmatpush.msra.mxu0 0.0
  %4809 = vmatpush.msra.mxu0 0.0
  %4810 = vmatpush.msra.mxu0 0.0
  %4811 = vmatpush.msra.mxu0 0.0
  %4812 = vmatpush.msra.mxu0 0.0
  %4813 = vmatpush.msra.mxu0 0.0
  %4814 = vmatpush.msra.mxu0 0.0
  %4815 = vmatpush.msra.mxu0 0.0
  %4816 = vmatpush.msra.mxu0 0.0
  %4817 = vmatpush.msra.mxu0 %v4757
  %4818 = vmatmul.f32.gmra.mxu0 %v4748
  %v4819 = vpop.f32.mrf.mxu0
  %v4820 = vadd.f32 0.0, %v4819
  %4821 = vdwg.mxu0
  %4822 = vmatpush.msra.mxu0 0.0
  %4823 = vmatpush.msra.mxu0 0.0
  %4824 = vmatpush.msra.mxu0 0.0
  %4825 = vmatpush.msra.mxu0 0.0
  %4826 = vmatpush.msra.mxu0 0.0
  %4827 = vmatpush.msra.mxu0 0.0
  %4828 = vmatpush.msra.mxu0 0.0
  %4829 = vmatpush.msra.mxu0 0.0
  %4830 = vmatpush.msra.mxu0 0.0
  %4831 = vmatpush.msra.mxu0 0.0
  %4832 = vmatpush.msra.mxu0 0.0
  %4833 = vmatpush.msra.mxu0 0.0
  %4834 = vmatpush.msra.mxu0 0.0
  %4835 = vmatpush.msra.mxu0 0.0
  %4836 = vmatpush.msra.mxu0 0.0
  %4837 = vmatpush.msra.mxu0 %v4760
  %4838 = vmatmul.f32.gmra.mxu0 %v4748
  %v4839 = vpop.f32.mrf.mxu0
  %v4840 = vadd.f32 0.0, %v4839
  %4841 = vdwg.mxu0
  %v4842 = vadd.f32 %v4738, %v4780
  %v4843 = vadd.f32 %v4739, %v4800
  %v4844 = vadd.f32 %v4740, %v4820
  %v4845 = vadd.f32 %v4741, %v4840
  %v4846 = vld [vmem:[%s4 + $0x18] sm:$0xf]
  %v4847 = vld [vmem:[%s3947] ss:$8 sm:$0xf]
  %v4849 = vperm.slane %v4847, 0
  %v4850 = vperm.slane %v4847, 1
  %v4851 = vperm.slane %v4847, 2
  %v4852 = vperm.slane %v4847, 3
  %v4857 = vmul.f32 %v3934, %v4849
  %v4858 = vmul.f32 %v3935, %v4850
  %v4859 = vmul.f32 %v3936, %v4851
  %v4860 = vmul.f32 %v3946, %v4852
  %v4862 = vsel %vm979, %v4846, 0
  %v4865 = vsel %vm725, %v4857, 0
  %v4868 = vsel %vm725, %v4858, 0
  %v4871 = vsel %vm725, %v4859, 0
  %v4874 = vsel %vm725, %v4860, 0
  %4876 = vmatpush.msra.mxu0 0.0
  %4877 = vmatpush.msra.mxu0 0.0
  %4878 = vmatpush.msra.mxu0 0.0
  %4879 = vmatpush.msra.mxu0 0.0
  %4880 = vmatpush.msra.mxu0 0.0
  %4881 = vmatpush.msra.mxu0 0.0
  %4882 = vmatpush.msra.mxu0 0.0
  %4883 = vmatpush.msra.mxu0 0.0
  %4884 = vmatpush.msra.mxu0 0.0
  %4885 = vmatpush.msra.mxu0 0.0
  %4886 = vmatpush.msra.mxu0 0.0
  %4887 = vmatpush.msra.mxu0 0.0
  %4888 = vmatpush.msra.mxu0 0.0
  %4889 = vmatpush.msra.mxu0 0.0
  %4890 = vmatpush.msra.mxu0 0.0
  %4891 = vmatpush.msra.mxu0 %v4865
  %4892 = vmatmul.f32.gmra.mxu0 %v4862
  %v4893 = vpop.f32.mrf.mxu0
  %v4894 = vadd.f32 0.0, %v4893
  %4895 = vdwg.mxu0
  %4896 = vmatpush.msra.mxu0 0.0
  %4897 = vmatpush.msra.mxu0 0.0
  %4898 = vmatpush.msra.mxu0 0.0
  %4899 = vmatpush.msra.mxu0 0.0
  %4900 = vmatpush.msra.mxu0 0.0
  %4901 = vmatpush.msra.mxu0 0.0
  %4902 = vmatpush.msra.mxu0 0.0
  %4903 = vmatpush.msra.mxu0 0.0
  %4904 = vmatpush.msra.mxu0 0.0
  %4905 = vmatpush.msra.mxu0 0.0
  %4906 = vmatpush.msra.mxu0 0.0
  %4907 = vmatpush.msra.mxu0 0.0
  %4908 = vmatpush.msra.mxu0 0.0
  %4909 = vmatpush.msra.mxu0 0.0
  %4910 = vmatpush.msra.mxu0 0.0
  %4911 = vmatpush.msra.mxu0 %v4868
  %4912 = vmatmul.f32.gmra.mxu0 %v4862
  %v4913 = vpop.f32.mrf.mxu0
  %v4914 = vadd.f32 0.0, %v4913
  %4915 = vdwg.mxu0
  %4916 = vmatpush.msra.mxu0 0.0
  %4917 = vmatpush.msra.mxu0 0.0
  %4918 = vmatpush.msra.mxu0 0.0
  %4919 = vmatpush.msra.mxu0 0.0
  %4920 = vmatpush.msra.mxu0 0.0
  %4921 = vmatpush.msra.mxu0 0.0
  %4922 = vmatpush.msra.mxu0 0.0
  %4923 = vmatpush.msra.mxu0 0.0
  %4924 = vmatpush.msra.mxu0 0.0
  %4925 = vmatpush.msra.mxu0 0.0
  %4926 = vmatpush.msra.mxu0 0.0
  %4927 = vmatpush.msra.mxu0 0.0
  %4928 = vmatpush.msra.mxu0 0.0
  %4929 = vmatpush.msra.mxu0 0.0
  %4930 = vmatpush.msra.mxu0 0.0
  %4931 = vmatpush.msra.mxu0 %v4871
  %4932 = vmatmul.f32.gmra.mxu0 %v4862
  %v4933 = vpop.f32.mrf.mxu0
  %v4934 = vadd.f32 0.0, %v4933
  %4935 = vdwg.mxu0
  %4936 = vmatpush.msra.mxu0 0.0
  %4937 = vmatpush.msra.mxu0 0.0
  %4938 = vmatpush.msra.mxu0 0.0
  %4939 = vmatpush.msra.mxu0 0.0
  %4940 = vmatpush.msra.mxu0 0.0
  %4941 = vmatpush.msra.mxu0 0.0
  %4942 = vmatpush.msra.mxu0 0.0
  %4943 = vmatpush.msra.mxu0 0.0
  %4944 = vmatpush.msra.mxu0 0.0
  %4945 = vmatpush.msra.mxu0 0.0
  %4946 = vmatpush.msra.mxu0 0.0
  %4947 = vmatpush.msra.mxu0 0.0
  %4948 = vmatpush.msra.mxu0 0.0
  %4949 = vmatpush.msra.mxu0 0.0
  %4950 = vmatpush.msra.mxu0 0.0
  %4951 = vmatpush.msra.mxu0 %v4874
  %4952 = vmatmul.f32.gmra.mxu0 %v4862
  %v4953 = vpop.f32.mrf.mxu0
  %v4954 = vadd.f32 0.0, %v4953
  %4955 = vdwg.mxu0
  %v4956 = vadd.f32 %v4842, %v4894
  %v4957 = vadd.f32 %v4843, %v4914
  %v4958 = vadd.f32 %v4844, %v4934
  %v4959 = vadd.f32 %v4845, %v4954
  %v4960 = vld [vmem:[%s4 + $0x1c] sm:$0xf]
  %v4961 = vmul.f32 %v4077, %v4849
  %v4962 = vmul.f32 %v4078, %v4850
  %v4963 = vmul.f32 %v4079, %v4851
  %v4964 = vmul.f32 %v4089, %v4852
  %v4966 = vsel %vm979, %v4960, 0
  %v4969 = vsel %vm725, %v4961, 0
  %v4972 = vsel %vm725, %v4962, 0
  %v4975 = vsel %vm725, %v4963, 0
  %v4978 = vsel %vm725, %v4964, 0
  %4980 = vmatpush.msra.mxu0 0.0
  %4981 = vmatpush.msra.mxu0 0.0
  %4982 = vmatpush.msra.mxu0 0.0
  %4983 = vmatpush.msra.mxu0 0.0
  %4984 = vmatpush.msra.mxu0 0.0
  %4985 = vmatpush.msra.mxu0 0.0
  %4986 = vmatpush.msra.mxu0 0.0
  %4987 = vmatpush.msra.mxu0 0.0
  %4988 = vmatpush.msra.mxu0 0.0
  %4989 = vmatpush.msra.mxu0 0.0
  %4990 = vmatpush.msra.mxu0 0.0
  %4991 = vmatpush.msra.mxu0 0.0
  %4992 = vmatpush.msra.mxu0 0.0
  %4993 = vmatpush.msra.mxu0 0.0
  %4994 = vmatpush.msra.mxu0 0.0
  %4995 = vmatpush.msra.mxu0 %v4969
  %4996 = vmatmul.f32.gmra.mxu0 %v4966
  %v4997 = vpop.f32.mrf.mxu0
  %v4998 = vadd.f32 0.0, %v4997
  %4999 = vdwg.mxu0
  %5000 = vmatpush.msra.mxu0 0.0
  %5001 = vmatpush.msra.mxu0 0.0
  %5002 = vmatpush.msra.mxu0 0.0
  %5003 = vmatpush.msra.mxu0 0.0
  %5004 = vmatpush.msra.mxu0 0.0
  %5005 = vmatpush.msra.mxu0 0.0
  %5006 = vmatpush.msra.mxu0 0.0
  %5007 = vmatpush.msra.mxu0 0.0
  %5008 = vmatpush.msra.mxu0 0.0
  %5009 = vmatpush.msra.mxu0 0.0
  %5010 = vmatpush.msra.mxu0 0.0
  %5011 = vmatpush.msra.mxu0 0.0
  %5012 = vmatpush.msra.mxu0 0.0
  %5013 = vmatpush.msra.mxu0 0.0
  %5014 = vmatpush.msra.mxu0 0.0
  %5015 = vmatpush.msra.mxu0 %v4972
  %5016 = vmatmul.f32.gmra.mxu0 %v4966
  %v5017 = vpop.f32.mrf.mxu0
  %v5018 = vadd.f32 0.0, %v5017
  %5019 = vdwg.mxu0
  %5020 = vmatpush.msra.mxu0 0.0
  %5021 = vmatpush.msra.mxu0 0.0
  %5022 = vmatpush.msra.mxu0 0.0
  %5023 = vmatpush.msra.mxu0 0.0
  %5024 = vmatpush.msra.mxu0 0.0
  %5025 = vmatpush.msra.mxu0 0.0
  %5026 = vmatpush.msra.mxu0 0.0
  %5027 = vmatpush.msra.mxu0 0.0
  %5028 = vmatpush.msra.mxu0 0.0
  %5029 = vmatpush.msra.mxu0 0.0
  %5030 = vmatpush.msra.mxu0 0.0
  %5031 = vmatpush.msra.mxu0 0.0
  %5032 = vmatpush.msra.mxu0 0.0
  %5033 = vmatpush.msra.mxu0 0.0
  %5034 = vmatpush.msra.mxu0 0.0
  %5035 = vmatpush.msra.mxu0 %v4975
  %5036 = vmatmul.f32.gmra.mxu0 %v4966
  %v5037 = vpop.f32.mrf.mxu0
  %v5038 = vadd.f32 0.0, %v5037
  %5039 = vdwg.mxu0
  %5040 = vmatpush.msra.mxu0 0.0
  %5041 = vmatpush.msra.mxu0 0.0
  %5042 = vmatpush.msra.mxu0 0.0
  %5043 = vmatpush.msra.mxu0 0.0
  %5044 = vmatpush.msra.mxu0 0.0
  %5045 = vmatpush.msra.mxu0 0.0
  %5046 = vmatpush.msra.mxu0 0.0
  %5047 = vmatpush.msra.mxu0 0.0
  %5048 = vmatpush.msra.mxu0 0.0
  %5049 = vmatpush.msra.mxu0 0.0
  %5050 = vmatpush.msra.mxu0 0.0
  %5051 = vmatpush.msra.mxu0 0.0
  %5052 = vmatpush.msra.mxu0 0.0
  %5053 = vmatpush.msra.mxu0 0.0
  %5054 = vmatpush.msra.mxu0 0.0
  %5055 = vmatpush.msra.mxu0 %v4978
  %5056 = vmatmul.f32.gmra.mxu0 %v4966
  %v5057 = vpop.f32.mrf.mxu0
  %v5058 = vadd.f32 0.0, %v5057
  %5059 = vdwg.mxu0
  %v5060 = vadd.f32 %v4956, %v4998
  %v5061 = vadd.f32 %v4957, %v5018
  %v5062 = vadd.f32 %v4958, %v5038
  %v5063 = vadd.f32 %v4959, %v5058
  %v5064 = vld [vmem:[%s4 + $0x20] sm:$0xf]
  %5065 = vst [vmem:[#allocation1] ss:$2 sm:$0xff] %v873
  %s5066 = scalar_lea.vmem [#allocation1], 16
  %5067 = vst [vmem:[%s5066] ss:$2 sm:$0xff] %v874
  %v5068 = vld.sshfl [vmem:[#allocation1] sm:$0xff pattern:$0x75316420]
  %v5069 = vld.sshfl [vmem:[#allocation1 + $0x8] sm:$0xff pattern:$0x75316420]
  %v5070 = vld.sshfl [vmem:[#allocation1 + $0x10] sm:$0xff pattern:$0x75316420]
  %v5071 = vld.sshfl [vmem:[#allocation1 + $0x18] sm:$0xff pattern:$0x75316420]
  %5072 = vrot.lane.b32.xlu0 %v5068, 111
  %v5073 = vpop.permute.xlu0 %5072
  %5074 = vrot.lane.b32.xlu0 %v5069, 111
  %v5075 = vpop.permute.xlu0 %5074
  %5076 = vrot.lane.b32.xlu0 %v5070, 111
  %v5077 = vpop.permute.xlu0 %5076
  %5078 = vrot.lane.b32.xlu0 %v5071, 111
  %v5079 = vpop.permute.xlu0 %5078
  %vm5080 = vcmask 908288
  %v5081 = vsel %vm5080, %v5073, %v5075
  %v5082 = vsel %vm5080, %v5075, %v5077
  %v5083 = vsel %vm5080, %v5077, %v5079
  %5088 = vst [vmem:[#allocation1] ss:$2 sm:$0xff] %v873
  %v5089 = vld.sshfl [vmem:[#allocation1] sm:$0xff pattern:$0x75316420]
  %5090 = vrot.lane.b32.xlu0 %v5089, 111
  %v5091 = vpop.permute.xlu0 %5090
  %v5093 = vsel %vm5080, %v5079, %v5091
  %s5094 = scalar_lea.vmem %s8, 32
  %v5095 = vld [vmem:[%s5094] ss:$8 sm:$0xf]
  %v5097 = vperm.slane %v5095, 0
  %v5098 = vperm.slane %v5095, 1
  %v5099 = vperm.slane %v5095, 2
  %v5100 = vperm.slane %v5095, 3
  %v5105 = vmul.f32 %v5081, %v5097
  %v5106 = vmul.f32 %v5082, %v5098
  %v5107 = vmul.f32 %v5083, %v5099
  %v5108 = vmul.f32 %v5093, %v5100
  %v5110 = vsel %vm979, %v5064, 0
  %v5113 = vsel %vm725, %v5105, 0
  %v5116 = vsel %vm725, %v5106, 0
  %v5119 = vsel %vm725, %v5107, 0
  %v5122 = vsel %vm725, %v5108, 0
  %5124 = vmatpush.msra.mxu0 0.0
  %5125 = vmatpush.msra.mxu0 0.0
  %5126 = vmatpush.msra.mxu0 0.0
  %5127 = vmatpush.msra.mxu0 0.0
  %5128 = vmatpush.msra.mxu0 0.0
  %5129 = vmatpush.msra.mxu0 0.0
  %5130 = vmatpush.msra.mxu0 0.0
  %5131 = vmatpush.msra.mxu0 0.0
  %5132 = vmatpush.msra.mxu0 0.0
  %5133 = vmatpush.msra.mxu0 0.0
  %5134 = vmatpush.msra.mxu0 0.0
  %5135 = vmatpush.msra.mxu0 0.0
  %5136 = vmatpush.msra.mxu0 0.0
  %5137 = vmatpush.msra.mxu0 0.0
  %5138 = vmatpush.msra.mxu0 0.0
  %5139 = vmatpush.msra.mxu0 %v5113
  %5140 = vmatmul.f32.gmra.mxu0 %v5110
  %v5141 = vpop.f32.mrf.mxu0
  %v5142 = vadd.f32 0.0, %v5141
  %5143 = vdwg.mxu0
  %5144 = vmatpush.msra.mxu0 0.0
  %5145 = vmatpush.msra.mxu0 0.0
  %5146 = vmatpush.msra.mxu0 0.0
  %5147 = vmatpush.msra.mxu0 0.0
  %5148 = vmatpush.msra.mxu0 0.0
  %5149 = vmatpush.msra.mxu0 0.0
  %5150 = vmatpush.msra.mxu0 0.0
  %5151 = vmatpush.msra.mxu0 0.0
  %5152 = vmatpush.msra.mxu0 0.0
  %5153 = vmatpush.msra.mxu0 0.0
  %5154 = vmatpush.msra.mxu0 0.0
  %5155 = vmatpush.msra.mxu0 0.0
  %5156 = vmatpush.msra.mxu0 0.0
  %5157 = vmatpush.msra.mxu0 0.0
  %5158 = vmatpush.msra.mxu0 0.0
  %5159 = vmatpush.msra.mxu0 %v5116
  %5160 = vmatmul.f32.gmra.mxu0 %v5110
  %v5161 = vpop.f32.mrf.mxu0
  %v5162 = vadd.f32 0.0, %v5161
  %5163 = vdwg.mxu0
  %5164 = vmatpush.msra.mxu0 0.0
  %5165 = vmatpush.msra.mxu0 0.0
  %5166 = vmatpush.msra.mxu0 0.0
  %5167 = vmatpush.msra.mxu0 0.0
  %5168 = vmatpush.msra.mxu0 0.0
  %5169 = vmatpush.msra.mxu0 0.0
  %5170 = vmatpush.msra.mxu0 0.0
  %5171 = vmatpush.msra.mxu0 0.0
  %5172 = vmatpush.msra.mxu0 0.0
  %5173 = vmatpush.msra.mxu0 0.0
  %5174 = vmatpush.msra.mxu0 0.0
  %5175 = vmatpush.msra.mxu0 0.0
  %5176 = vmatpush.msra.mxu0 0.0
  %5177 = vmatpush.msra.mxu0 0.0
  %5178 = vmatpush.msra.mxu0 0.0
  %5179 = vmatpush.msra.mxu0 %v5119
  %5180 = vmatmul.f32.gmra.mxu0 %v5110
  %v5181 = vpop.f32.mrf.mxu0
  %v5182 = vadd.f32 0.0, %v5181
  %5183 = vdwg.mxu0
  %5184 = vmatpush.msra.mxu0 0.0
  %5185 = vmatpush.msra.mxu0 0.0
  %5186 = vmatpush.msra.mxu0 0.0
  %5187 = vmatpush.msra.mxu0 0.0
  %5188 = vmatpush.msra.mxu0 0.0
  %5189 = vmatpush.msra.mxu0 0.0
  %5190 = vmatpush.msra.mxu0 0.0
  %5191 = vmatpush.msra.mxu0 0.0
  %5192 = vmatpush.msra.mxu0 0.0
  %5193 = vmatpush.msra.mxu0 0.0
  %5194 = vmatpush.msra.mxu0 0.0
  %5195 = vmatpush.msra.mxu0 0.0
  %5196 = vmatpush.msra.mxu0 0.0
  %5197 = vmatpush.msra.mxu0 0.0
  %5198 = vmatpush.msra.mxu0 0.0
  %5199 = vmatpush.msra.mxu0 %v5122
  %5200 = vmatmul.f32.gmra.mxu0 %v5110
  %v5201 = vpop.f32.mrf.mxu0
  %v5202 = vadd.f32 0.0, %v5201
  %5203 = vdwg.mxu0
  %v5204 = vadd.f32 %v5060, %v5142
  %v5205 = vadd.f32 %v5061, %v5162
  %v5206 = vadd.f32 %v5062, %v5182
  %v5207 = vadd.f32 %v5063, %v5202
  %v5212 = vrot.slane %v5205, 4
  %v5213 = vrot.slane %v5207, 4
  %v5214 = vsel %vm725, %v5204, %v5212
  %v5215 = vsel %vm725, %v5206, %v5213
  %s5218 = scalar_lea.vmem %s9, 48
  %5219 = vst [vmem:[%s5218] sm:$0xff] %v5214
  %5220 = vst [vmem:[%s5218 + $0x8] sm:$0xff] %v5215
  // Predicated region
  $region38: #{optimized_g_block_forward.1} parent=0 // pred_check
    _
  $region39: #{optimized_g_block_forward.1} parent=0 // pred_check_branch
    %5222 = sbr.rel (0) target = $region41
  $region40: #{optimized_g_block_forward.1} parent=0 // pred_region
    _
  $region41: #{optimized_g_block_forward.1} parent=0 // pred_fallthru
    _
  // Predicated region
  $region42: #{optimized_g_block_forward.1} parent=0 // pred_check
    _
  $region43: #{optimized_g_block_forward.1} parent=0 // pred_check_branch
    %5224 = sbr.rel (0) target = $region45
  $region44: #{optimized_g_block_forward.1} parent=0 // pred_region
    _
  $region45: #{optimized_g_block_forward.1} parent=0 // pred_fallthru
    _

</llo_original>
